<compile_context>
chip_gen: v7x
topology: tpu7x:2x2x1
jax: 0.10.0
libtpu: 0.0.40
codegen_flags: <defaults>
</compile_context>

<pallas_src>
import jax
import jax.numpy as jnp
from jax.experimental import pallas as pl
from jax.experimental.pallas import tpu as pltpu


def _textcnn_kernel(ids_ref, p_ref, bconv_ref, mask_ref, wfc_ref, bfc_ref,
                    out_ref):
    """Fused TextCNN forward for one batch tile.

    ids_ref  : (T, TB, L)    int32  token ids shifted by tap (sentinel >= V if OOR)
    p_ref    : (T, V_pad, C) f32    per-tap emb_table @ conv_w, lane-dense (C=128)
    bconv_ref: (1, C)        f32    conv biases placed at each filter's lane group
    mask_ref : (L, C)        f32    1.0 where (time, lane) is a valid conv output
    wfc_ref  : (C, O_pad)    f32    FC weight, zero rows for dead lanes
    bfc_ref  : (1, O_pad)    f32    FC bias (lane-padded)
    out_ref  : (TB, O_pad)   f32    logits (lane-padded)
    """
    T, tb, L = ids_ref.shape
    v_pad = p_ref.shape[1]
    c = p_ref.shape[2]

    # One-hot "gather" of the pre-folded rows of P.  Hoist the iota out of the
    # tap loop (broadcasts are not CSE'd).
    iota_v = jax.lax.broadcasted_iota(jnp.int32, (tb, L, v_pad), 2)

    z = None
    for j in range(T):                       # static unroll over taps (T = max fs)
        onehot = (ids_ref[j][:, :, None] == iota_v).astype(jnp.float32)
        yj = jnp.dot(onehot.reshape(tb * L, v_pad), p_ref[j],
                     preferred_element_type=jnp.float32,
                     precision=jax.lax.Precision.HIGHEST)       # (tb*L, C)
        z = yj if z is None else z + yj

    z = z.reshape(tb, L, c)
    z = jnp.maximum(z + bconv_ref[...], 0.0)       # lane-dense bias + whole-vreg ReLU
    z = z * mask_ref[...]                          # zero invalid (time, lane) entries
    pooled = jnp.max(z, axis=1)                    # max over time, all 128 lanes

    out = jnp.dot(pooled, wfc_ref[...],
                  preferred_element_type=jnp.float32,
                  precision=jax.lax.Precision.HIGHEST) + bfc_ref[...]
    # TODO(synk): nn.Dropout is identity at inference; training-mode random
    # masking is not implemented here.
    out_ref[...] = out.astype(out_ref.dtype)


def textcnn_forward(input_ids, emb_table, conv_ws, conv_bs, w_fc, b_fc,
                    filter_sizes, attention_mask=None):
    """TextCNN forward.  input_ids: (B, L) int32.  Returns (B, output_dim) f32.

    attention_mask is accepted for signature parity but, exactly like the
    PyTorch forward, it is not used.
    """
    del attention_mask
    B, L = input_ids.shape
    V, E = emb_table.shape
    n_fs = len(filter_sizes)
    nf = conv_ws[0].shape[-1]
    f_total = n_fs * nf
    out_dim = w_fc.shape[1]
    T = max(filter_sizes)

    C = 128                                     # lane-dense conv-channel axis
    assert f_total <= C, "fused lane layout assumes len(filter_sizes)*n_filters <= 128"
    v_pad = max(128, -(-V // 128) * 128)        # lane-dense one-hot / MXU K axis
    o_pad = max(128, -(-out_dim // 128) * 128)

    # --- fold the embedding table into per-tap conv weights (once, in XLA) ---
    p_taps = []
    for j in range(T):
        w_j = jnp.zeros((E, C), jnp.float32)
        for i, fs in enumerate(filter_sizes):
            if j < fs:
                w_j = w_j.at[:, i * nf:(i + 1) * nf].set(conv_ws[i][j])
        p_taps.append(emb_table.astype(jnp.float32) @ w_j)      # (V, C)
    p = jnp.stack(p_taps)                                       # (T, V, C)
    p = jnp.pad(p, ((0, 0), (0, v_pad - V), (0, 0)))            # rows >= V are zero

    # --- tap-shifted ids: temporal alignment on 4-byte ids, not on the slab --
    ids32 = input_ids.astype(jnp.int32)
    ids_sh = jnp.stack([
        jnp.pad(ids32[:, j:], ((0, 0), (0, j)), constant_values=V)  # sentinel
        for j in range(T)
    ])                                                          # (T, B, L)

    # --- lane-dense bias, (time, lane) validity mask, expanded FC ------------
    b_conv = jnp.zeros((1, C), jnp.float32)
    mask = jnp.zeros((L, C), jnp.float32)
    for i, fs in enumerate(filter_sizes):
        b_conv = b_conv.at[0, i * nf:(i + 1) * nf].set(conv_bs[i])
        mask = mask.at[:L - fs + 1, i * nf:(i + 1) * nf].set(1.0)
    w_fc_x = jnp.zeros((C, o_pad), jnp.float32).at[:f_total, :out_dim].set(w_fc)
    b_fc_x = jnp.zeros((1, o_pad), jnp.float32).at[0, :out_dim].set(b_fc)

    # --- batch tiling ---------------------------------------------------------
    if B < 16:
        tb = B                                   # toy batches: one full block
    else:
        # >=2 grid steps so the "parallel" batch axis can shard across v7x's
        # two TensorCores; tiles capped at 512 rows (a few MiB of VMEM/block).
        tb = min(512, max(8, ((B // 2 + 7) // 8) * 8))
    grid = (pl.cdiv(B, tb),)
    # 48 MiB leaves headroom under v7x's 64 MiB/TC VMEM; v5e/v6e (128 MiB
    # physical) tolerate this or more for very large tiles.
    vmem_limit = (48 if tb > 128 else 32) * 1024 * 1024

    flops = 2 * B * L * v_pad * C * T + 2 * B * C * o_pad
    bytes_accessed = (T * B * L * 4 + T * v_pad * C * 4 + L * C * 4 + C * 4
                      + C * o_pad * 4 + o_pad * 4 + B * o_pad * 4)

    out = pl.pallas_call(
        _textcnn_kernel,
        out_shape=jax.ShapeDtypeStruct((B, o_pad), jnp.float32),
        grid=grid,
        in_specs=[
            pl.BlockSpec((T, tb, L), lambda b: (0, b, 0)),      # shifted ids
            pl.BlockSpec((T, v_pad, C), lambda b: (0, 0, 0)),   # folded emb@conv
            pl.BlockSpec((1, C), lambda b: (0, 0)),             # conv bias
            pl.BlockSpec((L, C), lambda b: (0, 0)),             # validity mask
            pl.BlockSpec((C, o_pad), lambda b: (0, 0)),         # FC weight
            pl.BlockSpec((1, o_pad), lambda b: (0, 0)),         # FC bias
        ],
        out_specs=pl.BlockSpec((tb, o_pad), lambda b: (b, 0)),
        compiler_params=pltpu.CompilerParams(
            dimension_semantics=("parallel",),
            vmem_limit_bytes=vmem_limit,
        ),
        cost_estimate=pl.CostEstimate(
            flops=flops, transcendentals=0, bytes_accessed=bytes_accessed),
    )(ids_sh, p, b_conv, mask, w_fc_x, b_fc_x)

    # Lane-dense (B, 128) logits stay padded in HBM; slice to the module's
    # (B, output_dim) view here (drop / fuse into the consumer if padded
    # logits are acceptable downstream).
    return out[:, :out_dim]


def textcnn_reference(input_ids, emb_table, conv_ws, conv_bs, w_fc, b_fc,
                      filter_sizes):
    """Pure-JAX f32 reference mirroring the PyTorch forward."""
    x = emb_table[input_ids]                    # (B, L, E)
    L = x.shape[1]
    pooled = []
    for fs, w, b in zip(filter_sizes, conv_ws, conv_bs):
        l_out = L - fs + 1
        acc = sum(jnp.einsum("ble,ef->blf", x[:, j:j + l_out, :], w[j])
                  for j in range(fs))
        pooled.append(jnp.max(jax.nn.relu(acc + b[None, None, :]), axis=1))
    return jnp.concatenate(pooled, axis=1) @ w_fc + b_fc[None, :]


if __name__ == "__main__":
    # Small, module-consistent hyperparameters.
    vocab_size = 32
    embedding_dim = 128
    n_filters = 8
    filter_sizes = [2, 3, 4]
    output_dim = 4
    pad_idx = 0
    batch, seq_len = 2, 16

    key = jax.random.PRNGKey(0)
    k_emb, k_ids, *k_ws = jax.random.split(key, 2 + 2 * len(filter_sizes) + 2)

    # Deterministic synthetic parameters (shapes follow the nn.Module __init__).
    emb_table = 0.1 * jax.random.normal(
        k_emb, (vocab_size, embedding_dim), jnp.float32)
    emb_table = emb_table.at[pad_idx].set(0.0)  # padding_idx row is zero

    conv_ws, conv_bs = [], []
    for i, fs in enumerate(filter_sizes):
        conv_ws.append(0.1 * jax.random.normal(
            k_ws[2 * i], (fs, embedding_dim, n_filters), jnp.float32))
        conv_bs.append(0.1 * jax.random.normal(
            k_ws[2 * i + 1], (n_filters,), jnp.float32))
    w_fc = 0.1 * jax.random.normal(
        k_ws[-2], (len(filter_sizes) * n_filters, output_dim), jnp.float32)
    b_fc = 0.1 * jax.random.normal(k_ws[-1], (output_dim,), jnp.float32)

    # Inputs: token ids + (unused by forward) attention mask.
    input_ids = jax.random.randint(k_ids, (batch, seq_len), 0, vocab_size)
    attention_mask = jnp.ones((batch, seq_len), jnp.int32)  # unused in forward

    logits = textcnn_forward(input_ids, emb_table, conv_ws, conv_bs, w_fc, b_fc,
                             filter_sizes, attention_mask)
    logits = jax.block_until_ready(logits)

    ref = textcnn_reference(input_ids, emb_table, conv_ws, conv_bs, w_fc, b_fc,
                            filter_sizes)
    assert logits.shape == (batch, output_dim)
    assert jnp.allclose(logits, ref, atol=2e-3, rtol=2e-3), (
        jnp.max(jnp.abs(logits - ref)))

    print("KERNEL_OK")
</pallas_src>

<mosaic_0001>
module attributes {stable_mosaic.version = 11 : i64} {
  func.func @_textcnn_kernel(%arg0: i32, %arg1: memref<4x2x16xi32, #tpu.memory_space<vmem>>, %arg2: memref<4x128x128xf32, #tpu.memory_space<vmem>>, %arg3: memref<1x128xf32, #tpu.memory_space<vmem>>, %arg4: memref<16x128xf32, #tpu.memory_space<vmem>>, %arg5: memref<128x128xf32, #tpu.memory_space<vmem>>, %arg6: memref<1x128xf32, #tpu.memory_space<vmem>>, %arg7: memref<2x128xf32, #tpu.memory_space<vmem>>) attributes {dimension_semantics = [#tpu.dimension_semantics<parallel>], iteration_bounds = array<i64: 1>, scalar_prefetch = 0 : i64, scratch_operands = 0 : i64, tpu.core_type = #tpu.core_type<tc>, window_params = [{transform_indices = @transform_0, window_bounds = array<i64: 4, 2, 16>}, {pipeline_mode = #tpu.pipeline_mode<synchronous>, transform_indices = @transform_1, window_bounds = array<i64: 4, 128, 128>}, {pipeline_mode = #tpu.pipeline_mode<synchronous>, transform_indices = @transform_2, window_bounds = array<i64: 1, 128>}, {pipeline_mode = #tpu.pipeline_mode<synchronous>, transform_indices = @transform_3, window_bounds = array<i64: 16, 128>}, {pipeline_mode = #tpu.pipeline_mode<synchronous>, transform_indices = @transform_4, window_bounds = array<i64: 128, 128>}, {pipeline_mode = #tpu.pipeline_mode<synchronous>, transform_indices = @transform_5, window_bounds = array<i64: 1, 128>}, {transform_indices = @transform_6, window_bounds = array<i64: 2, 128>}]} {
    %0 = tpu.iota {dimensions = array<i32: 2>} : vector<2x16x128xi32>
    %c0 = arith.constant 0 : index
    %c0_0 = arith.constant 0 : index
    %c0_1 = arith.constant 0 : index
    %1 = vector.load %arg1[%c0, %c0_0, %c0_1] : memref<4x2x16xi32, #tpu.memory_space<vmem>>, vector<1x2x16xi32>
    %2 = vector.shape_cast %1 : vector<1x2x16xi32> to vector<2x16xi32>
    %3 = vector.shape_cast %2 : vector<2x16xi32> to vector<2x16x1xi32>
    %4 = vector.broadcast %3 : vector<2x16x1xi32> to vector<2x16x128xi32>
    %5 = arith.cmpi eq, %4, %0 : vector<2x16x128xi32>
    %6 = arith.extui %5 : vector<2x16x128xi1> to vector<2x16x128xi32>
    %7 = arith.sitofp %6 : vector<2x16x128xi32> to vector<2x16x128xf32>
    %8 = vector.shape_cast %7 : vector<2x16x128xf32> to vector<32x128xf32>
    %c0_2 = arith.constant 0 : index
    %c0_3 = arith.constant 0 : index
    %c0_4 = arith.constant 0 : index
    %9 = vector.load %arg2[%c0_2, %c0_3, %c0_4] : memref<4x128x128xf32, #tpu.memory_space<vmem>>, vector<1x128x128xf32>
    %10 = vector.shape_cast %9 : vector<1x128x128xf32> to vector<128x128xf32>
    %cst = arith.constant dense<0.000000e+00> : vector<32x128xf32>
    %11 = tpu.matmul %8, %10, %cst {dimension_numbers = #tpu.dot_dimension_numbers<[1], [0], [0], [1], [0, 0, 1, 1], [], []>, precision = #tpu.contract_precision<fp32>} : vector<32x128xf32>, vector<128x128xf32>, vector<32x128xf32> -> vector<32x128xf32>
    %c1 = arith.constant 1 : index
    %c0_5 = arith.constant 0 : index
    %c0_6 = arith.constant 0 : index
    %12 = vector.load %arg1[%c1, %c0_5, %c0_6] : memref<4x2x16xi32, #tpu.memory_space<vmem>>, vector<1x2x16xi32>
    %13 = vector.shape_cast %12 : vector<1x2x16xi32> to vector<2x16xi32>
    %14 = vector.shape_cast %13 : vector<2x16xi32> to vector<2x16x1xi32>
    %15 = vector.broadcast %14 : vector<2x16x1xi32> to vector<2x16x128xi32>
    %16 = arith.cmpi eq, %15, %0 : vector<2x16x128xi32>
    %17 = arith.extui %16 : vector<2x16x128xi1> to vector<2x16x128xi32>
    %18 = arith.sitofp %17 : vector<2x16x128xi32> to vector<2x16x128xf32>
    %19 = vector.shape_cast %18 : vector<2x16x128xf32> to vector<32x128xf32>
    %c1_7 = arith.constant 1 : index
    %c0_8 = arith.constant 0 : index
    %c0_9 = arith.constant 0 : index
    %20 = vector.load %arg2[%c1_7, %c0_8, %c0_9] : memref<4x128x128xf32, #tpu.memory_space<vmem>>, vector<1x128x128xf32>
    %21 = vector.shape_cast %20 : vector<1x128x128xf32> to vector<128x128xf32>
    %cst_10 = arith.constant dense<0.000000e+00> : vector<32x128xf32>
    %22 = tpu.matmul %19, %21, %cst_10 {dimension_numbers = #tpu.dot_dimension_numbers<[1], [0], [0], [1], [0, 0, 1, 1], [], []>, precision = #tpu.contract_precision<fp32>} : vector<32x128xf32>, vector<128x128xf32>, vector<32x128xf32> -> vector<32x128xf32>
    %23 = arith.addf %11, %22 : vector<32x128xf32>
    %c2 = arith.constant 2 : index
    %c0_11 = arith.constant 0 : index
    %c0_12 = arith.constant 0 : index
    %24 = vector.load %arg1[%c2, %c0_11, %c0_12] : memref<4x2x16xi32, #tpu.memory_space<vmem>>, vector<1x2x16xi32>
    %25 = vector.shape_cast %24 : vector<1x2x16xi32> to vector<2x16xi32>
    %26 = vector.shape_cast %25 : vector<2x16xi32> to vector<2x16x1xi32>
    %27 = vector.broadcast %26 : vector<2x16x1xi32> to vector<2x16x128xi32>
    %28 = arith.cmpi eq, %27, %0 : vector<2x16x128xi32>
    %29 = arith.extui %28 : vector<2x16x128xi1> to vector<2x16x128xi32>
    %30 = arith.sitofp %29 : vector<2x16x128xi32> to vector<2x16x128xf32>
    %31 = vector.shape_cast %30 : vector<2x16x128xf32> to vector<32x128xf32>
    %c2_13 = arith.constant 2 : index
    %c0_14 = arith.constant 0 : index
    %c0_15 = arith.constant 0 : index
    %32 = vector.load %arg2[%c2_13, %c0_14, %c0_15] : memref<4x128x128xf32, #tpu.memory_space<vmem>>, vector<1x128x128xf32>
    %33 = vector.shape_cast %32 : vector<1x128x128xf32> to vector<128x128xf32>
    %cst_16 = arith.constant dense<0.000000e+00> : vector<32x128xf32>
    %34 = tpu.matmul %31, %33, %cst_16 {dimension_numbers = #tpu.dot_dimension_numbers<[1], [0], [0], [1], [0, 0, 1, 1], [], []>, precision = #tpu.contract_precision<fp32>} : vector<32x128xf32>, vector<128x128xf32>, vector<32x128xf32> -> vector<32x128xf32>
    %35 = arith.addf %23, %34 : vector<32x128xf32>
    %c3 = arith.constant 3 : index
    %c0_17 = arith.constant 0 : index
    %c0_18 = arith.constant 0 : index
    %36 = vector.load %arg1[%c3, %c0_17, %c0_18] : memref<4x2x16xi32, #tpu.memory_space<vmem>>, vector<1x2x16xi32>
    %37 = vector.shape_cast %36 : vector<1x2x16xi32> to vector<2x16xi32>
    %38 = vector.shape_cast %37 : vector<2x16xi32> to vector<2x16x1xi32>
    %39 = vector.broadcast %38 : vector<2x16x1xi32> to vector<2x16x128xi32>
    %40 = arith.cmpi eq, %39, %0 : vector<2x16x128xi32>
    %41 = arith.extui %40 : vector<2x16x128xi1> to vector<2x16x128xi32>
    %42 = arith.sitofp %41 : vector<2x16x128xi32> to vector<2x16x128xf32>
    %43 = vector.shape_cast %42 : vector<2x16x128xf32> to vector<32x128xf32>
    %c3_19 = arith.constant 3 : index
    %c0_20 = arith.constant 0 : index
    %c0_21 = arith.constant 0 : index
    %44 = vector.load %arg2[%c3_19, %c0_20, %c0_21] : memref<4x128x128xf32, #tpu.memory_space<vmem>>, vector<1x128x128xf32>
    %45 = vector.shape_cast %44 : vector<1x128x128xf32> to vector<128x128xf32>
    %cst_22 = arith.constant dense<0.000000e+00> : vector<32x128xf32>
    %46 = tpu.matmul %43, %45, %cst_22 {dimension_numbers = #tpu.dot_dimension_numbers<[1], [0], [0], [1], [0, 0, 1, 1], [], []>, precision = #tpu.contract_precision<fp32>} : vector<32x128xf32>, vector<128x128xf32>, vector<32x128xf32> -> vector<32x128xf32>
    %47 = arith.addf %35, %46 : vector<32x128xf32>
    %48 = vector.shape_cast %47 : vector<32x128xf32> to vector<2x16x128xf32>
    %c0_23 = arith.constant 0 : index
    %c0_24 = arith.constant 0 : index
    %49 = vector.load %arg3[%c0_23, %c0_24] : memref<1x128xf32, #tpu.memory_space<vmem>>, vector<1x128xf32>
    %50 = vector.shape_cast %49 : vector<1x128xf32> to vector<1x1x128xf32>
    %51 = vector.broadcast %50 : vector<1x1x128xf32> to vector<2x16x128xf32>
    %52 = arith.addf %48, %51 : vector<2x16x128xf32>
    %cst_25 = arith.constant 0.000000e+00 : f32
    %53 = vector.broadcast %cst_25 : f32 to vector<2x16x128xf32>
    %54 = arith.maximumf %52, %53 : vector<2x16x128xf32>
    %c0_26 = arith.constant 0 : index
    %c0_27 = arith.constant 0 : index
    %55 = vector.load %arg4[%c0_26, %c0_27] : memref<16x128xf32, #tpu.memory_space<vmem>>, vector<16x128xf32>
    %56 = vector.shape_cast %55 : vector<16x128xf32> to vector<1x16x128xf32>
    %57 = vector.broadcast %56 : vector<1x16x128xf32> to vector<2x16x128xf32>
    %58 = arith.mulf %54, %57 : vector<2x16x128xf32>
    %cst_28 = arith.constant dense<0xFF800000> : vector<2x128xf32>
    %59 = vector.multi_reduction <maximumf>, %58, %cst_28 [1] : vector<2x16x128xf32> to vector<2x128xf32>
    %c0_29 = arith.constant 0 : index
    %c0_30 = arith.constant 0 : index
    %60 = vector.load %arg5[%c0_29, %c0_30] : memref<128x128xf32, #tpu.memory_space<vmem>>, vector<128x128xf32>
    %cst_31 = arith.constant dense<0.000000e+00> : vector<2x128xf32>
    %61 = tpu.matmul %59, %60, %cst_31 {dimension_numbers = #tpu.dot_dimension_numbers<[1], [0], [0], [1], [0, 0, 1, 1], [], []>, precision = #tpu.contract_precision<fp32>} : vector<2x128xf32>, vector<128x128xf32>, vector<2x128xf32> -> vector<2x128xf32>
    %c0_32 = arith.constant 0 : index
    %c0_33 = arith.constant 0 : index
    %62 = vector.load %arg6[%c0_32, %c0_33] : memref<1x128xf32, #tpu.memory_space<vmem>>, vector<1x128xf32>
    %63 = vector.broadcast %62 : vector<1x128xf32> to vector<2x128xf32>
    %64 = arith.addf %61, %63 : vector<2x128xf32>
    %c0_34 = arith.constant 0 : index
    %c0_35 = arith.constant 0 : index
    %65 = vector.load %arg7[%c0_34, %c0_35] : memref<2x128xf32, #tpu.memory_space<vmem>>, vector<2x128xf32>
    tpu.vector_store %arg7[%c0_34, %c0_35], %64 {strides = array<i32>} : memref<2x128xf32, #tpu.memory_space<vmem>>, vector<2x128xf32>,
    return
  }
  func.func @transform_0(%arg0: i32) -> (i32, i32, i32) {
    %c0_i32 = arith.constant 0 : i32
    %c0_i32_0 = arith.constant 0 : i32
    %c0_i32_1 = arith.constant 0 : i32
    return %c0_i32, %arg0, %c0_i32_0 : i32, i32, i32
  }
  func.func @transform_1(%arg0: i32) -> (i32, i32, i32) {
    %c0_i32 = arith.constant 0 : i32
    %c0_i32_0 = arith.constant 0 : i32
    %c0_i32_1 = arith.constant 0 : i32
    %c0_i32_2 = arith.constant 0 : i32
    return %c0_i32, %c0_i32_0, %c0_i32_1 : i32, i32, i32
  }
  func.func @transform_2(%arg0: i32) -> (i32, i32) {
    %c0_i32 = arith.constant 0 : i32
    %c0_i32_0 = arith.constant 0 : i32
    %c0_i32_1 = arith.constant 0 : i32
    return %c0_i32, %c0_i32_0 : i32, i32
  }
  func.func @transform_3(%arg0: i32) -> (i32, i32) {
    %c0_i32 = arith.constant 0 : i32
    %c0_i32_0 = arith.constant 0 : i32
    %c0_i32_1 = arith.constant 0 : i32
    return %c0_i32, %c0_i32_0 : i32, i32
  }
  func.func @transform_4(%arg0: i32) -> (i32, i32) {
    %c0_i32 = arith.constant 0 : i32
    %c0_i32_0 = arith.constant 0 : i32
    %c0_i32_1 = arith.constant 0 : i32
    return %c0_i32, %c0_i32_0 : i32, i32
  }
  func.func @transform_5(%arg0: i32) -> (i32, i32) {
    %c0_i32 = arith.constant 0 : i32
    %c0_i32_0 = arith.constant 0 : i32
    %c0_i32_1 = arith.constant 0 : i32
    return %c0_i32, %c0_i32_0 : i32, i32
  }
  func.func @transform_6(%arg0: i32) -> (i32, i32) {
    %c0_i32 = arith.constant 0 : i32
    %c0_i32_0 = arith.constant 0 : i32
    return %arg0, %c0_i32 : i32, i32
  }
}

</mosaic_0001>

<llo_original>
// kernel: tpu_custom_call.1
$region0: #{tpu_custom_call.1}
  #allocation0 [shape = 'u32[]', space=smem, size = 0x4, offset = 0x4, fixed_abs, tag = 'smem constant byte address 0x4 - core index']
  #allocation1 [shape = 'u32[144,128]{1,0:T(1,128)}', space=vmem, size = 0x12000, scoped, tag = 'internal scratch']
  %s0 = inlined_call_operand.hbm [shape: s32[4,2,16], index: 0, kind: input, shape index: {}]
  %s1 = inlined_call_operand.hbm [shape: f32[4,128,128], index: 1, kind: input, shape index: {}]
  %s2 = inlined_call_operand.vmem [shape: f32[1,128], index: 2, kind: input, shape index: {}]
  %s3 = inlined_call_operand.hbm [shape: f32[16,128], index: 3, kind: input, shape index: {}]
  %s4 = inlined_call_operand.hbm [shape: f32[128,128], index: 4, kind: input, shape index: {}]
  %s5 = inlined_call_operand.vmem [shape: f32[1,128], index: 5, kind: input, shape index: {}]
  %s6 = inlined_call_operand.hbm [shape: f32[2,128], index: 6, kind: output, shape index: {}]
  %s7 = sld [smem:[#allocation0]]
  $region50: #{tpu_custom_call.1} parent=0
    _
  %s9 = ssub.s32 1, %s7
  %s10 = scalar_select 0, %s9, %s7
  $region1: #{tpu_custom_call.1} parent=0
    #allocation2 [shape = 'u8[4096]{0}', space=vmem, size = 0x1000, scoped, tag = 'input window, operand 0, single buffered']
    #allocation3 [shape = 's32[1]{0}', space=sflag, size = 0x4, scoped, tag = 'scoped memory for tpu_custom_call.1']
    #allocation4 [shape = 's32[1]{0}', space=sflag, size = 0x4, scoped, tag = 'scoped memory for tpu_custom_call.1']
    #allocation5 [shape = 'u8[262144]{0}', space=vmem, size = 0x40000, scoped, tag = 'input window, operand 1, single buffered']
    #allocation6 [shape = 's32[1]{0}', space=sflag, size = 0x4, scoped, tag = 'scoped memory for tpu_custom_call.1']
    #allocation7 [shape = 'u8[8192]{0}', space=vmem, size = 0x2000, scoped, tag = 'input window, operand 3, single buffered']
    #allocation8 [shape = 'u8[65536]{0}', space=vmem, size = 0x10000, scoped, tag = 'input window, operand 4, single buffered']
    #allocation9 [shape = 's32[1]{0}', space=sflag, size = 0x4, scoped, tag = 'scoped memory for tpu_custom_call.1']
    #allocation10 [shape = 'u8[1024]{0}', space=vmem, size = 0x400, scoped, tag = 'output window, operand 0, single buffered']
    %11 = vsyncpa [#allocation3], 0
    %12 = vsyncpa [#allocation6], 0
    %13 = vsyncpa [#allocation9], 0
    %14 = vsyncpa [#allocation4], 0
    // Predicated region
    $region2: #{tpu_custom_call.1} parent=1 // pred_check
      _
    $region3: #{tpu_custom_call.1} parent=1 // pred_check_branch
      %16 = sbr.rel (0) target = $region5
    $region4: #{tpu_custom_call.1} parent=1 // pred_region
      %s18 = ssub.s32 128, 128
      %19 = vsyncadd [#allocation3], %s18
      %s20 = sshll.u32 [#allocation2], 4
      %s21 = int_to_ptr.vmem [resolvable:$true] %s20
      %26 = dma.hbm_to_vmem [thread:$0]  %s0, 128, %s21, [#allocation3], 32, 32, 2
    $region5: #{tpu_custom_call.1} parent=1 // pred_fallthru
      _
    // Predicated region
    $region6: #{tpu_custom_call.1} parent=1 // pred_check
      _
    $region7: #{tpu_custom_call.1} parent=1 // pred_check_branch
      %28 = sbr.rel (0) target = $region9
    $region8: #{tpu_custom_call.1} parent=1 // pred_region
      %s30 = ssub.s32 8192, 8192
      %31 = vsyncadd [#allocation6], %s30
      %s32 = sshll.u32 [#allocation5], 4
      %s33 = int_to_ptr.vmem [resolvable:$true] %s32
      %38 = dma.hbm_to_vmem [thread:$0]  %s1, 8192, %s33, [#allocation6], 128, 128, 8
    $region9: #{tpu_custom_call.1} parent=1 // pred_fallthru
      _
    // Predicated region
    $region10: #{tpu_custom_call.1} parent=1 // pred_check
      _
    $region11: #{tpu_custom_call.1} parent=1 // pred_check_branch
      %40 = sbr.rel (0) target = $region13
    $region12: #{tpu_custom_call.1} parent=1 // pred_region
      _
    $region13: #{tpu_custom_call.1} parent=1 // pred_fallthru
      _
    // Predicated region
    $region14: #{tpu_custom_call.1} parent=1 // pred_check
      _
    $region15: #{tpu_custom_call.1} parent=1 // pred_check_branch
      %42 = sbr.rel (0) target = $region17
    $region16: #{tpu_custom_call.1} parent=1 // pred_region
      %s44 = ssub.s32 256, 256
      %45 = vsyncadd [#allocation6], %s44
      %s46 = sshll.u32 [#allocation7], 4
      %s47 = int_to_ptr.vmem [resolvable:$true] %s46
      %52 = dma.hbm_to_vmem [thread:$0]  %s3, 256, %s47, [#allocation6], 128, 128, 8
    $region17: #{tpu_custom_call.1} parent=1 // pred_fallthru
      _
    // Predicated region
    $region18: #{tpu_custom_call.1} parent=1 // pred_check
      _
    $region19: #{tpu_custom_call.1} parent=1 // pred_check_branch
      %54 = sbr.rel (0) target = $region21
    $region20: #{tpu_custom_call.1} parent=1 // pred_region
      %s56 = ssub.s32 2048, 2048
      %57 = vsyncadd [#allocation9], %s56
      %s58 = sshll.u32 [#allocation8], 4
      %s59 = int_to_ptr.vmem [resolvable:$true] %s58
      %64 = dma.hbm_to_vmem [thread:$0]  %s4, 2048, %s59, [#allocation9], 128, 128, 8
    $region21: #{tpu_custom_call.1} parent=1 // pred_fallthru
      _
    // Predicated region
    $region22: #{tpu_custom_call.1} parent=1 // pred_check
      _
    $region23: #{tpu_custom_call.1} parent=1 // pred_check_branch
      %66 = sbr.rel (0) target = $region25
    $region24: #{tpu_custom_call.1} parent=1 // pred_region
      _
    $region25: #{tpu_custom_call.1} parent=1 // pred_fallthru
      _
    // Predicated region
    $region26: #{tpu_custom_call.1} parent=1 // pred_check
      _
    $region27: #{tpu_custom_call.1} parent=1 // pred_check_branch
      %68 = sbr.rel (0) target = $region29
    $region28: #{tpu_custom_call.1} parent=1 // pred_region
      %69 = dma.done [#allocation3], 128
    $region29: #{tpu_custom_call.1} parent=1 // pred_fallthru
      _
    // Predicated region
    $region30: #{tpu_custom_call.1} parent=1 // pred_check
      _
    $region31: #{tpu_custom_call.1} parent=1 // pred_check_branch
      %71 = sbr.rel (0) target = $region33
    $region32: #{tpu_custom_call.1} parent=1 // pred_region
      %72 = dma.done [#allocation6], 8192
    $region33: #{tpu_custom_call.1} parent=1 // pred_fallthru
      _
    // Predicated region
    $region34: #{tpu_custom_call.1} parent=1 // pred_check
      _
    $region35: #{tpu_custom_call.1} parent=1 // pred_check_branch
      %74 = sbr.rel (0) target = $region37
    $region36: #{tpu_custom_call.1} parent=1 // pred_region
      %75 = dma.done [#allocation6], 256
    $region37: #{tpu_custom_call.1} parent=1 // pred_fallthru
      _
    // Predicated region
    $region38: #{tpu_custom_call.1} parent=1 // pred_check
      _
    $region39: #{tpu_custom_call.1} parent=1 // pred_check_branch
      %77 = sbr.rel (0) target = $region41
    $region40: #{tpu_custom_call.1} parent=1 // pred_region
      %78 = dma.done [#allocation9], 2048
    $region41: #{tpu_custom_call.1} parent=1 // pred_fallthru
      _
    %v79 = vlaneseq
    %v80 = vand.u32 %v79, 127
    %v81 = vld [vmem:[#allocation2] sm:$0x3]
    %v82 = vlaneseq
    %v83 = vshrl.u32 %v82, 7
    %v84 = vsub.s32 0, %v83
    %v85 = vrot.slane %v81, %v84
    %87 = vbcast.lane.b32.xlu0 %v85, 256
    %v88 = vpop.permute.xlu0 %87
    %s90 = sor.u32 256, 8
    %91 = vbcast.lane.b32.xlu0 %v85, %s90
    %v92 = vpop.permute.xlu0 %91
    %v93 = vlaneseq
    %v94 = vshrl.u32 %v93, 7
    %v95 = vsub.s32 1, %v94
    %v96 = vrot.slane %v81, %v95
    %98 = vbcast.lane.b32.xlu0 %v96, 256
    %v99 = vpop.permute.xlu0 %98
    %s101 = sor.u32 256, 8
    %102 = vbcast.lane.b32.xlu0 %v96, %s101
    %v103 = vpop.permute.xlu0 %102
    %vm104 = vcmp.eq.s32.totalorder %v88, %v80
    %vm105 = vcmp.eq.s32.totalorder %v92, %v80
    %vm106 = vcmp.eq.s32.totalorder %v99, %v80
    %vm107 = vcmp.eq.s32.totalorder %v103, %v80
    %v108 = vsel %vm104, 1, 0
    %v109 = vsel %vm105, 1, 0
    %v110 = vsel %vm106, 1, 0
    %v111 = vsel %vm107, 1, 0
    %v112 = vcvt.s32.f32 %v108
    %v113 = vcvt.s32.f32 %v109
    %v114 = vcvt.s32.f32 %v110
    %v115 = vcvt.s32.f32 %v111
    %v116 = vld [vmem:[#allocation5] sm:$0xff]
    %v117 = vld [vmem:[#allocation5 + $0x8] sm:$0xff]
    %v118 = vld [vmem:[#allocation5 + $0x10] sm:$0xff]
    %v119 = vld [vmem:[#allocation5 + $0x18] sm:$0xff]
    %v120 = vld [vmem:[#allocation5 + $0x20] sm:$0xff]
    %v121 = vld [vmem:[#allocation5 + $0x28] sm:$0xff]
    %v122 = vld [vmem:[#allocation5 + $0x30] sm:$0xff]
    %v123 = vld [vmem:[#allocation5 + $0x38] sm:$0xff]
    %v124 = vld [vmem:[#allocation5 + $0x40] sm:$0xff]
    %v125 = vld [vmem:[#allocation5 + $0x48] sm:$0xff]
    %v126 = vld [vmem:[#allocation5 + $0x50] sm:$0xff]
    %v127 = vld [vmem:[#allocation5 + $0x58] sm:$0xff]
    %v128 = vld [vmem:[#allocation5 + $0x60] sm:$0xff]
    %v129 = vld [vmem:[#allocation5 + $0x68] sm:$0xff]
    %v130 = vld [vmem:[#allocation5 + $0x70] sm:$0xff]
    %v131 = vld [vmem:[#allocation5 + $0x78] sm:$0xff]
    %s132 = scalar_lea.vmem [#allocation2], 2
    %v133 = vld [vmem:[%s132] sm:$0x3]
    %v134 = vlaneseq
    %v135 = vshrl.u32 %v134, 7
    %v136 = vsub.s32 0, %v135
    %v137 = vrot.slane %v133, %v136
    %139 = vbcast.lane.b32.xlu0 %v137, 256
    %v140 = vpop.permute.xlu0 %139
    %s142 = sor.u32 256, 8
    %143 = vbcast.lane.b32.xlu0 %v137, %s142
    %v144 = vpop.permute.xlu0 %143
    %v145 = vlaneseq
    %v146 = vshrl.u32 %v145, 7
    %v147 = vsub.s32 1, %v146
    %v148 = vrot.slane %v133, %v147
    %150 = vbcast.lane.b32.xlu0 %v148, 256
    %v151 = vpop.permute.xlu0 %150
    %s153 = sor.u32 256, 8
    %154 = vbcast.lane.b32.xlu0 %v148, %s153
    %v155 = vpop.permute.xlu0 %154
    %vm156 = vcmp.eq.s32.totalorder %v140, %v80
    %vm157 = vcmp.eq.s32.totalorder %v144, %v80
    %vm158 = vcmp.eq.s32.totalorder %v151, %v80
    %vm159 = vcmp.eq.s32.totalorder %v155, %v80
    %v160 = vsel %vm156, 1, 0
    %v161 = vsel %vm157, 1, 0
    %v162 = vsel %vm158, 1, 0
    %v163 = vsel %vm159, 1, 0
    %v164 = vcvt.s32.f32 %v160
    %v165 = vcvt.s32.f32 %v161
    %v166 = vcvt.s32.f32 %v162
    %v167 = vcvt.s32.f32 %v163
    %s168 = scalar_lea.vmem [#allocation5], 128
    %v169 = vld [vmem:[%s168] sm:$0xff]
    %v170 = vld [vmem:[%s168 + $0x8] sm:$0xff]
    %v171 = vld [vmem:[%s168 + $0x10] sm:$0xff]
    %v172 = vld [vmem:[%s168 + $0x18] sm:$0xff]
    %v173 = vld [vmem:[%s168 + $0x20] sm:$0xff]
    %v174 = vld [vmem:[%s168 + $0x28] sm:$0xff]
    %v175 = vld [vmem:[%s168 + $0x30] sm:$0xff]
    %v176 = vld [vmem:[%s168 + $0x38] sm:$0xff]
    %v177 = vld [vmem:[%s168 + $0x40] sm:$0xff]
    %v178 = vld [vmem:[%s168 + $0x48] sm:$0xff]
    %v179 = vld [vmem:[%s168 + $0x50] sm:$0xff]
    %v180 = vld [vmem:[%s168 + $0x58] sm:$0xff]
    %v181 = vld [vmem:[%s168 + $0x60] sm:$0xff]
    %v182 = vld [vmem:[%s168 + $0x68] sm:$0xff]
    %v183 = vld [vmem:[%s168 + $0x70] sm:$0xff]
    %v184 = vld [vmem:[%s168 + $0x78] sm:$0xff]
    %185 = vmatprep.subr.mxu0 0.0
    %v186 = vand.u32 %v169, 4294901760
    %187 = vmatpush1.msra.mxu0 %v186
    %188 = vmatprep.subr.mxu0 0.0
    %v189 = vand.u32 %v170, 4294901760
    %190 = vmatpush1.msra.mxu0 %v189
    %191 = vmatprep.subr.mxu0 0.0
    %v192 = vand.u32 %v171, 4294901760
    %193 = vmatpush1.msra.mxu0 %v192
    %194 = vmatprep.subr.mxu0 0.0
    %v195 = vand.u32 %v172, 4294901760
    %196 = vmatpush1.msra.mxu0 %v195
    %197 = vmatprep.subr.mxu0 0.0
    %v198 = vand.u32 %v173, 4294901760
    %199 = vmatpush1.msra.mxu0 %v198
    %200 = vmatprep.subr.mxu0 0.0
    %v201 = vand.u32 %v174, 4294901760
    %202 = vmatpush1.msra.mxu0 %v201
    %203 = vmatprep.subr.mxu0 0.0
    %v204 = vand.u32 %v175, 4294901760
    %205 = vmatpush1.msra.mxu0 %v204
    %206 = vmatprep.subr.mxu0 0.0
    %v207 = vand.u32 %v176, 4294901760
    %208 = vmatpush1.msra.mxu0 %v207
    %209 = vmatprep.subr.mxu0 0.0
    %v210 = vand.u32 %v177, 4294901760
    %211 = vmatpush1.msra.mxu0 %v210
    %212 = vmatprep.subr.mxu0 0.0
    %v213 = vand.u32 %v178, 4294901760
    %214 = vmatpush1.msra.mxu0 %v213
    %215 = vmatprep.subr.mxu0 0.0
    %v216 = vand.u32 %v179, 4294901760
    %217 = vmatpush1.msra.mxu0 %v216
    %218 = vmatprep.subr.mxu0 0.0
    %v219 = vand.u32 %v180, 4294901760
    %220 = vmatpush1.msra.mxu0 %v219
    %221 = vmatprep.subr.mxu0 0.0
    %v222 = vand.u32 %v181, 4294901760
    %223 = vmatpush1.msra.mxu0 %v222
    %224 = vmatprep.subr.mxu0 0.0
    %v225 = vand.u32 %v182, 4294901760
    %226 = vmatpush1.msra.mxu0 %v225
    %227 = vmatprep.subr.mxu0 0.0
    %v228 = vand.u32 %v183, 4294901760
    %229 = vmatpush1.msra.mxu0 %v228
    %230 = vmatprep.subr.mxu0 0.0
    %v231 = vand.u32 %v184, 4294901760
    %232 = vmatpush1.msra.mxu0 %v231
    %233 = vmatprep.subr.mxu0 0.0
    %234 = vmatpush1.msra.mxu0 0.0
    %235 = vmatprep.subr.mxu0 0.0
    %236 = vmatpush1.msra.mxu0 0.0
    %237 = vmatprep.subr.mxu0 0.0
    %238 = vmatpush1.msra.mxu0 0.0
    %239 = vmatprep.subr.mxu0 0.0
    %240 = vmatpush1.msra.mxu0 0.0
    %241 = vmatprep.subr.mxu0 0.0
    %242 = vmatpush1.msra.mxu0 0.0
    %243 = vmatprep.subr.mxu0 0.0
    %244 = vmatpush1.msra.mxu0 0.0
    %245 = vmatprep.subr.mxu0 0.0
    %246 = vmatpush1.msra.mxu0 0.0
    %247 = vmatprep.subr.mxu0 0.0
    %248 = vmatpush1.msra.mxu0 0.0
    %249 = vmatprep.subr.mxu0 0.0
    %250 = vmatpush1.msra.mxu0 0.0
    %251 = vmatprep.subr.mxu0 0.0
    %252 = vmatpush1.msra.mxu0 0.0
    %253 = vmatprep.subr.mxu0 0.0
    %254 = vmatpush1.msra.mxu0 0.0
    %255 = vmatprep.subr.mxu0 0.0
    %256 = vmatpush1.msra.mxu0 0.0
    %257 = vmatprep.subr.mxu0 0.0
    %258 = vmatpush1.msra.mxu0 0.0
    %259 = vmatprep.subr.mxu0 0.0
    %260 = vmatpush1.msra.mxu0 0.0
    %261 = vmatprep.subr.mxu0 0.0
    %262 = vmatpush1.msra.mxu0 0.0
    %263 = vmatprep.subr.mxu0 0.0
    %264 = vmatpush1.msra.mxu0 0.0
    %265 = vmatprep.mubr.f32.mxu0 0.0
    %v266 = vand.u32 %v164, 4294901760
    %v267 = vsub.f32 %v164, %v266
    %v268 = vand.u32 %v267, 4294901760
    %v269 = vsub.f32 %v267, %v268
    %v270 = vand.u32 %v269, 4294901760
    %271 = vmatmul.mubr.f32.gmra.mrb[0].mxu0 %v270
    %v272 = vpop.f32.mrb[0].mxu0
    %v273 = vadd.f32 0.0, %v272
    %v274 = vpop.f32.mrb[0].mxu0
    %275 = vmatprep.mubr.f32.mxu0 0.0
    %v276 = vand.u32 %v165, 4294901760
    %v277 = vsub.f32 %v165, %v276
    %v278 = vand.u32 %v277, 4294901760
    %v279 = vsub.f32 %v277, %v278
    %v280 = vand.u32 %v279, 4294901760
    %281 = vmatmul.mubr.f32.gmra.mrb[0].mxu0 %v280
    %v282 = vpop.f32.mrb[0].mxu0
    %v283 = vadd.f32 0.0, %v282
    %v284 = vpop.f32.mrb[0].mxu0
    %285 = vmatprep.mubr.f32.mxu0 0.0
    %v286 = vand.u32 %v166, 4294901760
    %v287 = vsub.f32 %v166, %v286
    %v288 = vand.u32 %v287, 4294901760
    %v289 = vsub.f32 %v287, %v288
    %v290 = vand.u32 %v289, 4294901760
    %291 = vmatmul.mubr.f32.gmra.mrb[0].mxu0 %v290
    %v292 = vpop.f32.mrb[0].mxu0
    %v293 = vadd.f32 0.0, %v292
    %v294 = vpop.f32.mrb[0].mxu0
    %295 = vmatprep.mubr.f32.mxu0 0.0
    %v296 = vand.u32 %v167, 4294901760
    %v297 = vsub.f32 %v167, %v296
    %v298 = vand.u32 %v297, 4294901760
    %v299 = vsub.f32 %v297, %v298
    %v300 = vand.u32 %v299, 4294901760
    %301 = vmatmul.mubr.f32.gmra.mrb[0].mxu0 %v300
    %v302 = vpop.f32.mrb[0].mxu0
    %v303 = vadd.f32 0.0, %v302
    %v304 = vpop.f32.mrb[0].mxu0
    %305 = vdwg.mxu0
    %306 = vmatprep.subr.mxu0 0.0
    %v307 = vand.u32 %v169, 4294901760
    %v308 = vsub.f32 %v169, %v307
    %v309 = vand.u32 %v308, 4294901760
    %v310 = vsub.f32 %v308, %v309
    %v311 = vand.u32 %v310, 4294901760
    %312 = vmatpush1.msra.mxu0 %v311
    %313 = vmatprep.subr.mxu0 0.0
    %v314 = vand.u32 %v170, 4294901760
    %v315 = vsub.f32 %v170, %v314
    %v316 = vand.u32 %v315, 4294901760
    %v317 = vsub.f32 %v315, %v316
    %v318 = vand.u32 %v317, 4294901760
    %319 = vmatpush1.msra.mxu0 %v318
    %320 = vmatprep.subr.mxu0 0.0
    %v321 = vand.u32 %v171, 4294901760
    %v322 = vsub.f32 %v171, %v321
    %v323 = vand.u32 %v322, 4294901760
    %v324 = vsub.f32 %v322, %v323
    %v325 = vand.u32 %v324, 4294901760
    %326 = vmatpush1.msra.mxu0 %v325
    %327 = vmatprep.subr.mxu0 0.0
    %v328 = vand.u32 %v172, 4294901760
    %v329 = vsub.f32 %v172, %v328
    %v330 = vand.u32 %v329, 4294901760
    %v331 = vsub.f32 %v329, %v330
    %v332 = vand.u32 %v331, 4294901760
    %333 = vmatpush1.msra.mxu0 %v332
    %334 = vmatprep.subr.mxu0 0.0
    %v335 = vand.u32 %v173, 4294901760
    %v336 = vsub.f32 %v173, %v335
    %v337 = vand.u32 %v336, 4294901760
    %v338 = vsub.f32 %v336, %v337
    %v339 = vand.u32 %v338, 4294901760
    %340 = vmatpush1.msra.mxu0 %v339
    %341 = vmatprep.subr.mxu0 0.0
    %v342 = vand.u32 %v174, 4294901760
    %v343 = vsub.f32 %v174, %v342
    %v344 = vand.u32 %v343, 4294901760
    %v345 = vsub.f32 %v343, %v344
    %v346 = vand.u32 %v345, 4294901760
    %347 = vmatpush1.msra.mxu0 %v346
    %348 = vmatprep.subr.mxu0 0.0
    %v349 = vand.u32 %v175, 4294901760
    %v350 = vsub.f32 %v175, %v349
    %v351 = vand.u32 %v350, 4294901760
    %v352 = vsub.f32 %v350, %v351
    %v353 = vand.u32 %v352, 4294901760
    %354 = vmatpush1.msra.mxu0 %v353
    %355 = vmatprep.subr.mxu0 0.0
    %v356 = vand.u32 %v176, 4294901760
    %v357 = vsub.f32 %v176, %v356
    %v358 = vand.u32 %v357, 4294901760
    %v359 = vsub.f32 %v357, %v358
    %v360 = vand.u32 %v359, 4294901760
    %361 = vmatpush1.msra.mxu0 %v360
    %362 = vmatprep.subr.mxu0 0.0
    %v363 = vand.u32 %v177, 4294901760
    %v364 = vsub.f32 %v177, %v363
    %v365 = vand.u32 %v364, 4294901760
    %v366 = vsub.f32 %v364, %v365
    %v367 = vand.u32 %v366, 4294901760
    %368 = vmatpush1.msra.mxu0 %v367
    %369 = vmatprep.subr.mxu0 0.0
    %v370 = vand.u32 %v178, 4294901760
    %v371 = vsub.f32 %v178, %v370
    %v372 = vand.u32 %v371, 4294901760
    %v373 = vsub.f32 %v371, %v372
    %v374 = vand.u32 %v373, 4294901760
    %375 = vmatpush1.msra.mxu0 %v374
    %376 = vmatprep.subr.mxu0 0.0
    %v377 = vand.u32 %v179, 4294901760
    %v378 = vsub.f32 %v179, %v377
    %v379 = vand.u32 %v378, 4294901760
    %v380 = vsub.f32 %v378, %v379
    %v381 = vand.u32 %v380, 4294901760
    %382 = vmatpush1.msra.mxu0 %v381
    %383 = vmatprep.subr.mxu0 0.0
    %v384 = vand.u32 %v180, 4294901760
    %v385 = vsub.f32 %v180, %v384
    %v386 = vand.u32 %v385, 4294901760
    %v387 = vsub.f32 %v385, %v386
    %v388 = vand.u32 %v387, 4294901760
    %389 = vmatpush1.msra.mxu0 %v388
    %390 = vmatprep.subr.mxu0 0.0
    %v391 = vand.u32 %v181, 4294901760
    %v392 = vsub.f32 %v181, %v391
    %v393 = vand.u32 %v392, 4294901760
    %v394 = vsub.f32 %v392, %v393
    %v395 = vand.u32 %v394, 4294901760
    %396 = vmatpush1.msra.mxu0 %v395
    %397 = vmatprep.subr.mxu0 0.0
    %v398 = vand.u32 %v182, 4294901760
    %v399 = vsub.f32 %v182, %v398
    %v400 = vand.u32 %v399, 4294901760
    %v401 = vsub.f32 %v399, %v400
    %v402 = vand.u32 %v401, 4294901760
    %403 = vmatpush1.msra.mxu0 %v402
    %404 = vmatprep.subr.mxu0 0.0
    %v405 = vand.u32 %v183, 4294901760
    %v406 = vsub.f32 %v183, %v405
    %v407 = vand.u32 %v406, 4294901760
    %v408 = vsub.f32 %v406, %v407
    %v409 = vand.u32 %v408, 4294901760
    %410 = vmatpush1.msra.mxu0 %v409
    %411 = vmatprep.subr.mxu0 0.0
    %v412 = vand.u32 %v184, 4294901760
    %v413 = vsub.f32 %v184, %v412
    %v414 = vand.u32 %v413, 4294901760
    %v415 = vsub.f32 %v413, %v414
    %v416 = vand.u32 %v415, 4294901760
    %417 = vmatpush1.msra.mxu0 %v416
    %418 = vmatprep.subr.mxu0 0.0
    %419 = vmatpush1.msra.mxu0 0.0
    %420 = vmatprep.subr.mxu0 0.0
    %421 = vmatpush1.msra.mxu0 0.0
    %422 = vmatprep.subr.mxu0 0.0
    %423 = vmatpush1.msra.mxu0 0.0
    %424 = vmatprep.subr.mxu0 0.0
    %425 = vmatpush1.msra.mxu0 0.0
    %426 = vmatprep.subr.mxu0 0.0
    %427 = vmatpush1.msra.mxu0 0.0
    %428 = vmatprep.subr.mxu0 0.0
    %429 = vmatpush1.msra.mxu0 0.0
    %430 = vmatprep.subr.mxu0 0.0
    %431 = vmatpush1.msra.mxu0 0.0
    %432 = vmatprep.subr.mxu0 0.0
    %433 = vmatpush1.msra.mxu0 0.0
    %434 = vmatprep.subr.mxu0 0.0
    %435 = vmatpush1.msra.mxu0 0.0
    %436 = vmatprep.subr.mxu0 0.0
    %437 = vmatpush1.msra.mxu0 0.0
    %438 = vmatprep.subr.mxu0 0.0
    %439 = vmatpush1.msra.mxu0 0.0
    %440 = vmatprep.subr.mxu0 0.0
    %441 = vmatpush1.msra.mxu0 0.0
    %442 = vmatprep.subr.mxu0 0.0
    %443 = vmatpush1.msra.mxu0 0.0
    %444 = vmatprep.subr.mxu0 0.0
    %445 = vmatpush1.msra.mxu0 0.0
    %446 = vmatprep.subr.mxu0 0.0
    %447 = vmatpush1.msra.mxu0 0.0
    %448 = vmatprep.subr.mxu0 0.0
    %449 = vmatpush1.msra.mxu0 0.0
    %450 = vmatprep.mubr.f32.mxu0 0.0
    %v451 = vand.u32 %v164, 4294901760
    %452 = vmatmul.mubr.f32.gmra.mrb[0].mxu0 %v451
    %v453 = vpop.f32.mrb[0].mxu0
    %v454 = vadd.f32 %v273, %v453
    %v455 = vpop.f32.mrb[0].mxu0
    %456 = vmatprep.mubr.f32.mxu0 0.0
    %v457 = vand.u32 %v165, 4294901760
    %458 = vmatmul.mubr.f32.gmra.mrb[0].mxu0 %v457
    %v459 = vpop.f32.mrb[0].mxu0
    %v460 = vadd.f32 %v283, %v459
    %v461 = vpop.f32.mrb[0].mxu0
    %462 = vmatprep.mubr.f32.mxu0 0.0
    %v463 = vand.u32 %v166, 4294901760
    %464 = vmatmul.mubr.f32.gmra.mrb[0].mxu0 %v463
    %v465 = vpop.f32.mrb[0].mxu0
    %v466 = vadd.f32 %v293, %v465
    %v467 = vpop.f32.mrb[0].mxu0
    %468 = vmatprep.mubr.f32.mxu0 0.0
    %v469 = vand.u32 %v167, 4294901760
    %470 = vmatmul.mubr.f32.gmra.mrb[0].mxu0 %v469
    %v471 = vpop.f32.mrb[0].mxu0
    %v472 = vadd.f32 %v303, %v471
    %v473 = vpop.f32.mrb[0].mxu0
    %474 = vdwg.mxu0
    %475 = vmatprep.subr.mxu0 0.0
    %v476 = vand.u32 %v169, 4294901760
    %v477 = vsub.f32 %v169, %v476
    %478 = vmatpush1.msra.mxu0 %v477
    %479 = vmatprep.subr.mxu0 0.0
    %v480 = vand.u32 %v170, 4294901760
    %v481 = vsub.f32 %v170, %v480
    %482 = vmatpush1.msra.mxu0 %v481
    %483 = vmatprep.subr.mxu0 0.0
    %v484 = vand.u32 %v171, 4294901760
    %v485 = vsub.f32 %v171, %v484
    %486 = vmatpush1.msra.mxu0 %v485
    %487 = vmatprep.subr.mxu0 0.0
    %v488 = vand.u32 %v172, 4294901760
    %v489 = vsub.f32 %v172, %v488
    %490 = vmatpush1.msra.mxu0 %v489
    %491 = vmatprep.subr.mxu0 0.0
    %v492 = vand.u32 %v173, 4294901760
    %v493 = vsub.f32 %v173, %v492
    %494 = vmatpush1.msra.mxu0 %v493
    %495 = vmatprep.subr.mxu0 0.0
    %v496 = vand.u32 %v174, 4294901760
    %v497 = vsub.f32 %v174, %v496
    %498 = vmatpush1.msra.mxu0 %v497
    %499 = vmatprep.subr.mxu0 0.0
    %v500 = vand.u32 %v175, 4294901760
    %v501 = vsub.f32 %v175, %v500
    %502 = vmatpush1.msra.mxu0 %v501
    %503 = vmatprep.subr.mxu0 0.0
    %v504 = vand.u32 %v176, 4294901760
    %v505 = vsub.f32 %v176, %v504
    %506 = vmatpush1.msra.mxu0 %v505
    %507 = vmatprep.subr.mxu0 0.0
    %v508 = vand.u32 %v177, 4294901760
    %v509 = vsub.f32 %v177, %v508
    %510 = vmatpush1.msra.mxu0 %v509
    %511 = vmatprep.subr.mxu0 0.0
    %v512 = vand.u32 %v178, 4294901760
    %v513 = vsub.f32 %v178, %v512
    %514 = vmatpush1.msra.mxu0 %v513
    %515 = vmatprep.subr.mxu0 0.0
    %v516 = vand.u32 %v179, 4294901760
    %v517 = vsub.f32 %v179, %v516
    %518 = vmatpush1.msra.mxu0 %v517
    %519 = vmatprep.subr.mxu0 0.0
    %v520 = vand.u32 %v180, 4294901760
    %v521 = vsub.f32 %v180, %v520
    %522 = vmatpush1.msra.mxu0 %v521
    %523 = vmatprep.subr.mxu0 0.0
    %v524 = vand.u32 %v181, 4294901760
    %v525 = vsub.f32 %v181, %v524
    %526 = vmatpush1.msra.mxu0 %v525
    %527 = vmatprep.subr.mxu0 0.0
    %v528 = vand.u32 %v182, 4294901760
    %v529 = vsub.f32 %v182, %v528
    %530 = vmatpush1.msra.mxu0 %v529
    %531 = vmatprep.subr.mxu0 0.0
    %v532 = vand.u32 %v183, 4294901760
    %v533 = vsub.f32 %v183, %v532
    %534 = vmatpush1.msra.mxu0 %v533
    %535 = vmatprep.subr.mxu0 0.0
    %v536 = vand.u32 %v184, 4294901760
    %v537 = vsub.f32 %v184, %v536
    %538 = vmatpush1.msra.mxu0 %v537
    %539 = vmatprep.subr.mxu0 0.0
    %540 = vmatpush1.msra.mxu0 0.0
    %541 = vmatprep.subr.mxu0 0.0
    %542 = vmatpush1.msra.mxu0 0.0
    %543 = vmatprep.subr.mxu0 0.0
    %544 = vmatpush1.msra.mxu0 0.0
    %545 = vmatprep.subr.mxu0 0.0
    %546 = vmatpush1.msra.mxu0 0.0
    %547 = vmatprep.subr.mxu0 0.0
    %548 = vmatpush1.msra.mxu0 0.0
    %549 = vmatprep.subr.mxu0 0.0
    %550 = vmatpush1.msra.mxu0 0.0
    %551 = vmatprep.subr.mxu0 0.0
    %552 = vmatpush1.msra.mxu0 0.0
    %553 = vmatprep.subr.mxu0 0.0
    %554 = vmatpush1.msra.mxu0 0.0
    %555 = vmatprep.subr.mxu0 0.0
    %556 = vmatpush1.msra.mxu0 0.0
    %557 = vmatprep.subr.mxu0 0.0
    %558 = vmatpush1.msra.mxu0 0.0
    %559 = vmatprep.subr.mxu0 0.0
    %560 = vmatpush1.msra.mxu0 0.0
    %561 = vmatprep.subr.mxu0 0.0
    %562 = vmatpush1.msra.mxu0 0.0
    %563 = vmatprep.subr.mxu0 0.0
    %564 = vmatpush1.msra.mxu0 0.0
    %565 = vmatprep.subr.mxu0 0.0
    %566 = vmatpush1.msra.mxu0 0.0
    %567 = vmatprep.subr.mxu0 0.0
    %568 = vmatpush1.msra.mxu0 0.0
    %569 = vmatprep.subr.mxu0 0.0
    %570 = vmatpush1.msra.mxu0 0.0
    %571 = vmatprep.mubr.f32.mxu0 0.0
    %v572 = vand.u32 %v164, 4294901760
    %v573 = vsub.f32 %v164, %v572
    %574 = vmatmul.mubr.f32.gmra.mrb[0].mxu0 %v573
    %v575 = vpop.f32.mrb[0].mxu0
    %v576 = vadd.f32 %v454, %v575
    %v577 = vpop.f32.mrb[0].mxu0
    %578 = vmatprep.mubr.f32.mxu0 0.0
    %v579 = vand.u32 %v165, 4294901760
    %v580 = vsub.f32 %v165, %v579
    %581 = vmatmul.mubr.f32.gmra.mrb[0].mxu0 %v580
    %v582 = vpop.f32.mrb[0].mxu0
    %v583 = vadd.f32 %v460, %v582
    %v584 = vpop.f32.mrb[0].mxu0
    %585 = vmatprep.mubr.f32.mxu0 0.0
    %v586 = vand.u32 %v166, 4294901760
    %v587 = vsub.f32 %v166, %v586
    %588 = vmatmul.mubr.f32.gmra.mrb[0].mxu0 %v587
    %v589 = vpop.f32.mrb[0].mxu0
    %v590 = vadd.f32 %v466, %v589
    %v591 = vpop.f32.mrb[0].mxu0
    %592 = vmatprep.mubr.f32.mxu0 0.0
    %v593 = vand.u32 %v167, 4294901760
    %v594 = vsub.f32 %v167, %v593
    %595 = vmatmul.mubr.f32.gmra.mrb[0].mxu0 %v594
    %v596 = vpop.f32.mrb[0].mxu0
    %v597 = vadd.f32 %v472, %v596
    %v598 = vpop.f32.mrb[0].mxu0
    %599 = vdwg.mxu0
    %600 = vmatprep.subr.mxu0 0.0
    %v601 = vand.u32 %v169, 4294901760
    %602 = vmatpush1.msra.mxu0 %v601
    %603 = vmatprep.subr.mxu0 0.0
    %v604 = vand.u32 %v170, 4294901760
    %605 = vmatpush1.msra.mxu0 %v604
    %606 = vmatprep.subr.mxu0 0.0
    %v607 = vand.u32 %v171, 4294901760
    %608 = vmatpush1.msra.mxu0 %v607
    %609 = vmatprep.subr.mxu0 0.0
    %v610 = vand.u32 %v172, 4294901760
    %611 = vmatpush1.msra.mxu0 %v610
    %612 = vmatprep.subr.mxu0 0.0
    %v613 = vand.u32 %v173, 4294901760
    %614 = vmatpush1.msra.mxu0 %v613
    %615 = vmatprep.subr.mxu0 0.0
    %v616 = vand.u32 %v174, 4294901760
    %617 = vmatpush1.msra.mxu0 %v616
    %618 = vmatprep.subr.mxu0 0.0
    %v619 = vand.u32 %v175, 4294901760
    %620 = vmatpush1.msra.mxu0 %v619
    %621 = vmatprep.subr.mxu0 0.0
    %v622 = vand.u32 %v176, 4294901760
    %623 = vmatpush1.msra.mxu0 %v622
    %624 = vmatprep.subr.mxu0 0.0
    %v625 = vand.u32 %v177, 4294901760
    %626 = vmatpush1.msra.mxu0 %v625
    %627 = vmatprep.subr.mxu0 0.0
    %v628 = vand.u32 %v178, 4294901760
    %629 = vmatpush1.msra.mxu0 %v628
    %630 = vmatprep.subr.mxu0 0.0
    %v631 = vand.u32 %v179, 4294901760
    %632 = vmatpush1.msra.mxu0 %v631
    %633 = vmatprep.subr.mxu0 0.0
    %v634 = vand.u32 %v180, 4294901760
    %635 = vmatpush1.msra.mxu0 %v634
    %636 = vmatprep.subr.mxu0 0.0
    %v637 = vand.u32 %v181, 4294901760
    %638 = vmatpush1.msra.mxu0 %v637
    %639 = vmatprep.subr.mxu0 0.0
    %v640 = vand.u32 %v182, 4294901760
    %641 = vmatpush1.msra.mxu0 %v640
    %642 = vmatprep.subr.mxu0 0.0
    %v643 = vand.u32 %v183, 4294901760
    %644 = vmatpush1.msra.mxu0 %v643
    %645 = vmatprep.subr.mxu0 0.0
    %v646 = vand.u32 %v184, 4294901760
    %647 = vmatpush1.msra.mxu0 %v646
    %648 = vmatprep.subr.mxu0 0.0
    %649 = vmatpush1.msra.mxu0 0.0
    %650 = vmatprep.subr.mxu0 0.0
    %651 = vmatpush1.msra.mxu0 0.0
    %652 = vmatprep.subr.mxu0 0.0
    %653 = vmatpush1.msra.mxu0 0.0
    %654 = vmatprep.subr.mxu0 0.0
    %655 = vmatpush1.msra.mxu0 0.0
    %656 = vmatprep.subr.mxu0 0.0
    %657 = vmatpush1.msra.mxu0 0.0
    %658 = vmatprep.subr.mxu0 0.0
    %659 = vmatpush1.msra.mxu0 0.0
    %660 = vmatprep.subr.mxu0 0.0
    %661 = vmatpush1.msra.mxu0 0.0
    %662 = vmatprep.subr.mxu0 0.0
    %663 = vmatpush1.msra.mxu0 0.0
    %664 = vmatprep.subr.mxu0 0.0
    %665 = vmatpush1.msra.mxu0 0.0
    %666 = vmatprep.subr.mxu0 0.0
    %667 = vmatpush1.msra.mxu0 0.0
    %668 = vmatprep.subr.mxu0 0.0
    %669 = vmatpush1.msra.mxu0 0.0
    %670 = vmatprep.subr.mxu0 0.0
    %671 = vmatpush1.msra.mxu0 0.0
    %672 = vmatprep.subr.mxu0 0.0
    %673 = vmatpush1.msra.mxu0 0.0
    %674 = vmatprep.subr.mxu0 0.0
    %675 = vmatpush1.msra.mxu0 0.0
    %676 = vmatprep.subr.mxu0 0.0
    %677 = vmatpush1.msra.mxu0 0.0
    %678 = vmatprep.subr.mxu0 0.0
    %679 = vmatpush1.msra.mxu0 0.0
    %680 = vmatprep.mubr.f32.mxu0 0.0
    %v681 = vand.u32 %v164, 4294901760
    %v682 = vsub.f32 %v164, %v681
    %v683 = vand.u32 %v682, 4294901760
    %684 = vmatmul.mubr.f32.gmra.mrb[0].mxu0 %v683
    %v685 = vpop.f32.mrb[0].mxu0
    %v686 = vadd.f32 %v576, %v685
    %v687 = vpop.f32.mrb[0].mxu0
    %688 = vmatprep.mubr.f32.mxu0 0.0
    %v689 = vand.u32 %v165, 4294901760
    %v690 = vsub.f32 %v165, %v689
    %v691 = vand.u32 %v690, 4294901760
    %692 = vmatmul.mubr.f32.gmra.mrb[0].mxu0 %v691
    %v693 = vpop.f32.mrb[0].mxu0
    %v694 = vadd.f32 %v583, %v693
    %v695 = vpop.f32.mrb[0].mxu0
    %696 = vmatprep.mubr.f32.mxu0 0.0
    %v697 = vand.u32 %v166, 4294901760
    %v698 = vsub.f32 %v166, %v697
    %v699 = vand.u32 %v698, 4294901760
    %700 = vmatmul.mubr.f32.gmra.mrb[0].mxu0 %v699
    %v701 = vpop.f32.mrb[0].mxu0
    %v702 = vadd.f32 %v590, %v701
    %v703 = vpop.f32.mrb[0].mxu0
    %704 = vmatprep.mubr.f32.mxu0 0.0
    %v705 = vand.u32 %v167, 4294901760
    %v706 = vsub.f32 %v167, %v705
    %v707 = vand.u32 %v706, 4294901760
    %708 = vmatmul.mubr.f32.gmra.mrb[0].mxu0 %v707
    %v709 = vpop.f32.mrb[0].mxu0
    %v710 = vadd.f32 %v597, %v709
    %v711 = vpop.f32.mrb[0].mxu0
    %712 = vdwg.mxu0
    %713 = vmatprep.subr.mxu0 0.0
    %v714 = vand.u32 %v169, 4294901760
    %v715 = vsub.f32 %v169, %v714
    %v716 = vand.u32 %v715, 4294901760
    %717 = vmatpush1.msra.mxu0 %v716
    %718 = vmatprep.subr.mxu0 0.0
    %v719 = vand.u32 %v170, 4294901760
    %v720 = vsub.f32 %v170, %v719
    %v721 = vand.u32 %v720, 4294901760
    %722 = vmatpush1.msra.mxu0 %v721
    %723 = vmatprep.subr.mxu0 0.0
    %v724 = vand.u32 %v171, 4294901760
    %v725 = vsub.f32 %v171, %v724
    %v726 = vand.u32 %v725, 4294901760
    %727 = vmatpush1.msra.mxu0 %v726
    %728 = vmatprep.subr.mxu0 0.0
    %v729 = vand.u32 %v172, 4294901760
    %v730 = vsub.f32 %v172, %v729
    %v731 = vand.u32 %v730, 4294901760
    %732 = vmatpush1.msra.mxu0 %v731
    %733 = vmatprep.subr.mxu0 0.0
    %v734 = vand.u32 %v173, 4294901760
    %v735 = vsub.f32 %v173, %v734
    %v736 = vand.u32 %v735, 4294901760
    %737 = vmatpush1.msra.mxu0 %v736
    %738 = vmatprep.subr.mxu0 0.0
    %v739 = vand.u32 %v174, 4294901760
    %v740 = vsub.f32 %v174, %v739
    %v741 = vand.u32 %v740, 4294901760
    %742 = vmatpush1.msra.mxu0 %v741
    %743 = vmatprep.subr.mxu0 0.0
    %v744 = vand.u32 %v175, 4294901760
    %v745 = vsub.f32 %v175, %v744
    %v746 = vand.u32 %v745, 4294901760
    %747 = vmatpush1.msra.mxu0 %v746
    %748 = vmatprep.subr.mxu0 0.0
    %v749 = vand.u32 %v176, 4294901760
    %v750 = vsub.f32 %v176, %v749
    %v751 = vand.u32 %v750, 4294901760
    %752 = vmatpush1.msra.mxu0 %v751
    %753 = vmatprep.subr.mxu0 0.0
    %v754 = vand.u32 %v177, 4294901760
    %v755 = vsub.f32 %v177, %v754
    %v756 = vand.u32 %v755, 4294901760
    %757 = vmatpush1.msra.mxu0 %v756
    %758 = vmatprep.subr.mxu0 0.0
    %v759 = vand.u32 %v178, 4294901760
    %v760 = vsub.f32 %v178, %v759
    %v761 = vand.u32 %v760, 4294901760
    %762 = vmatpush1.msra.mxu0 %v761
    %763 = vmatprep.subr.mxu0 0.0
    %v764 = vand.u32 %v179, 4294901760
    %v765 = vsub.f32 %v179, %v764
    %v766 = vand.u32 %v765, 4294901760
    %767 = vmatpush1.msra.mxu0 %v766
    %768 = vmatprep.subr.mxu0 0.0
    %v769 = vand.u32 %v180, 4294901760
    %v770 = vsub.f32 %v180, %v769
    %v771 = vand.u32 %v770, 4294901760
    %772 = vmatpush1.msra.mxu0 %v771
    %773 = vmatprep.subr.mxu0 0.0
    %v774 = vand.u32 %v181, 4294901760
    %v775 = vsub.f32 %v181, %v774
    %v776 = vand.u32 %v775, 4294901760
    %777 = vmatpush1.msra.mxu0 %v776
    %778 = vmatprep.subr.mxu0 0.0
    %v779 = vand.u32 %v182, 4294901760
    %v780 = vsub.f32 %v182, %v779
    %v781 = vand.u32 %v780, 4294901760
    %782 = vmatpush1.msra.mxu0 %v781
    %783 = vmatprep.subr.mxu0 0.0
    %v784 = vand.u32 %v183, 4294901760
    %v785 = vsub.f32 %v183, %v784
    %v786 = vand.u32 %v785, 4294901760
    %787 = vmatpush1.msra.mxu0 %v786
    %788 = vmatprep.subr.mxu0 0.0
    %v789 = vand.u32 %v184, 4294901760
    %v790 = vsub.f32 %v184, %v789
    %v791 = vand.u32 %v790, 4294901760
    %792 = vmatpush1.msra.mxu0 %v791
    %793 = vmatprep.subr.mxu0 0.0
    %794 = vmatpush1.msra.mxu0 0.0
    %795 = vmatprep.subr.mxu0 0.0
    %796 = vmatpush1.msra.mxu0 0.0
    %797 = vmatprep.subr.mxu0 0.0
    %798 = vmatpush1.msra.mxu0 0.0
    %799 = vmatprep.subr.mxu0 0.0
    %800 = vmatpush1.msra.mxu0 0.0
    %801 = vmatprep.subr.mxu0 0.0
    %802 = vmatpush1.msra.mxu0 0.0
    %803 = vmatprep.subr.mxu0 0.0
    %804 = vmatpush1.msra.mxu0 0.0
    %805 = vmatprep.subr.mxu0 0.0
    %806 = vmatpush1.msra.mxu0 0.0
    %807 = vmatprep.subr.mxu0 0.0
    %808 = vmatpush1.msra.mxu0 0.0
    %809 = vmatprep.subr.mxu0 0.0
    %810 = vmatpush1.msra.mxu0 0.0
    %811 = vmatprep.subr.mxu0 0.0
    %812 = vmatpush1.msra.mxu0 0.0
    %813 = vmatprep.subr.mxu0 0.0
    %814 = vmatpush1.msra.mxu0 0.0
    %815 = vmatprep.subr.mxu0 0.0
    %816 = vmatpush1.msra.mxu0 0.0
    %817 = vmatprep.subr.mxu0 0.0
    %818 = vmatpush1.msra.mxu0 0.0
    %819 = vmatprep.subr.mxu0 0.0
    %820 = vmatpush1.msra.mxu0 0.0
    %821 = vmatprep.subr.mxu0 0.0
    %822 = vmatpush1.msra.mxu0 0.0
    %823 = vmatprep.subr.mxu0 0.0
    %824 = vmatpush1.msra.mxu0 0.0
    %825 = vmatprep.mubr.f32.mxu0 0.0
    %v826 = vand.u32 %v164, 4294901760
    %827 = vmatmul.mubr.f32.gmra.mrb[0].mxu0 %v826
    %v828 = vpop.f32.mrb[0].mxu0
    %v829 = vadd.f32 %v686, %v828
    %v830 = vpop.f32.mrb[0].mxu0
    %831 = vmatprep.mubr.f32.mxu0 0.0
    %v832 = vand.u32 %v165, 4294901760
    %833 = vmatmul.mubr.f32.gmra.mrb[0].mxu0 %v832
    %v834 = vpop.f32.mrb[0].mxu0
    %v835 = vadd.f32 %v694, %v834
    %v836 = vpop.f32.mrb[0].mxu0
    %837 = vmatprep.mubr.f32.mxu0 0.0
    %v838 = vand.u32 %v166, 4294901760
    %839 = vmatmul.mubr.f32.gmra.mrb[0].mxu0 %v838
    %v840 = vpop.f32.mrb[0].mxu0
    %v841 = vadd.f32 %v702, %v840
    %v842 = vpop.f32.mrb[0].mxu0
    %843 = vmatprep.mubr.f32.mxu0 0.0
    %v844 = vand.u32 %v167, 4294901760
    %845 = vmatmul.mubr.f32.gmra.mrb[0].mxu0 %v844
    %v846 = vpop.f32.mrb[0].mxu0
    %v847 = vadd.f32 %v710, %v846
    %v848 = vpop.f32.mrb[0].mxu0
    %849 = vdwg.mxu0
    %850 = vmatprep.subr.mxu0 0.0
    %v851 = vand.u32 %v169, 4294901760
    %852 = vmatpush1.msra.mxu0 %v851
    %853 = vmatprep.subr.mxu0 0.0
    %v854 = vand.u32 %v170, 4294901760
    %855 = vmatpush1.msra.mxu0 %v854
    %856 = vmatprep.subr.mxu0 0.0
    %v857 = vand.u32 %v171, 4294901760
    %858 = vmatpush1.msra.mxu0 %v857
    %859 = vmatprep.subr.mxu0 0.0
    %v860 = vand.u32 %v172, 4294901760
    %861 = vmatpush1.msra.mxu0 %v860
    %862 = vmatprep.subr.mxu0 0.0
    %v863 = vand.u32 %v173, 4294901760
    %864 = vmatpush1.msra.mxu0 %v863
    %865 = vmatprep.subr.mxu0 0.0
    %v866 = vand.u32 %v174, 4294901760
    %867 = vmatpush1.msra.mxu0 %v866
    %868 = vmatprep.subr.mxu0 0.0
    %v869 = vand.u32 %v175, 4294901760
    %870 = vmatpush1.msra.mxu0 %v869
    %871 = vmatprep.subr.mxu0 0.0
    %v872 = vand.u32 %v176, 4294901760
    %873 = vmatpush1.msra.mxu0 %v872
    %874 = vmatprep.subr.mxu0 0.0
    %v875 = vand.u32 %v177, 4294901760
    %876 = vmatpush1.msra.mxu0 %v875
    %877 = vmatprep.subr.mxu0 0.0
    %v878 = vand.u32 %v178, 4294901760
    %879 = vmatpush1.msra.mxu0 %v878
    %880 = vmatprep.subr.mxu0 0.0
    %v881 = vand.u32 %v179, 4294901760
    %882 = vmatpush1.msra.mxu0 %v881
    %883 = vmatprep.subr.mxu0 0.0
    %v884 = vand.u32 %v180, 4294901760
    %885 = vmatpush1.msra.mxu0 %v884
    %886 = vmatprep.subr.mxu0 0.0
    %v887 = vand.u32 %v181, 4294901760
    %888 = vmatpush1.msra.mxu0 %v887
    %889 = vmatprep.subr.mxu0 0.0
    %v890 = vand.u32 %v182, 4294901760
    %891 = vmatpush1.msra.mxu0 %v890
    %892 = vmatprep.subr.mxu0 0.0
    %v893 = vand.u32 %v183, 4294901760
    %894 = vmatpush1.msra.mxu0 %v893
    %895 = vmatprep.subr.mxu0 0.0
    %v896 = vand.u32 %v184, 4294901760
    %897 = vmatpush1.msra.mxu0 %v896
    %898 = vmatprep.subr.mxu0 0.0
    %899 = vmatpush1.msra.mxu0 0.0
    %900 = vmatprep.subr.mxu0 0.0
    %901 = vmatpush1.msra.mxu0 0.0
    %902 = vmatprep.subr.mxu0 0.0
    %903 = vmatpush1.msra.mxu0 0.0
    %904 = vmatprep.subr.mxu0 0.0
    %905 = vmatpush1.msra.mxu0 0.0
    %906 = vmatprep.subr.mxu0 0.0
    %907 = vmatpush1.msra.mxu0 0.0
    %908 = vmatprep.subr.mxu0 0.0
    %909 = vmatpush1.msra.mxu0 0.0
    %910 = vmatprep.subr.mxu0 0.0
    %911 = vmatpush1.msra.mxu0 0.0
    %912 = vmatprep.subr.mxu0 0.0
    %913 = vmatpush1.msra.mxu0 0.0
    %914 = vmatprep.subr.mxu0 0.0
    %915 = vmatpush1.msra.mxu0 0.0
    %916 = vmatprep.subr.mxu0 0.0
    %917 = vmatpush1.msra.mxu0 0.0
    %918 = vmatprep.subr.mxu0 0.0
    %919 = vmatpush1.msra.mxu0 0.0
    %920 = vmatprep.subr.mxu0 0.0
    %921 = vmatpush1.msra.mxu0 0.0
    %922 = vmatprep.subr.mxu0 0.0
    %923 = vmatpush1.msra.mxu0 0.0
    %924 = vmatprep.subr.mxu0 0.0
    %925 = vmatpush1.msra.mxu0 0.0
    %926 = vmatprep.subr.mxu0 0.0
    %927 = vmatpush1.msra.mxu0 0.0
    %928 = vmatprep.subr.mxu0 0.0
    %929 = vmatpush1.msra.mxu0 0.0
    %930 = vmatprep.mubr.f32.mxu0 0.0
    %v931 = vand.u32 %v164, 4294901760
    %932 = vmatmul.mubr.f32.gmra.mrb[0].mxu0 %v931
    %v933 = vpop.f32.mrb[0].mxu0
    %v934 = vadd.f32 %v829, %v933
    %v935 = vpop.f32.mrb[0].mxu0
    %936 = vmatprep.mubr.f32.mxu0 0.0
    %v937 = vand.u32 %v165, 4294901760
    %938 = vmatmul.mubr.f32.gmra.mrb[0].mxu0 %v937
    %v939 = vpop.f32.mrb[0].mxu0
    %v940 = vadd.f32 %v835, %v939
    %v941 = vpop.f32.mrb[0].mxu0
    %942 = vmatprep.mubr.f32.mxu0 0.0
    %v943 = vand.u32 %v166, 4294901760
    %944 = vmatmul.mubr.f32.gmra.mrb[0].mxu0 %v943
    %v945 = vpop.f32.mrb[0].mxu0
    %v946 = vadd.f32 %v841, %v945
    %v947 = vpop.f32.mrb[0].mxu0
    %948 = vmatprep.mubr.f32.mxu0 0.0
    %v949 = vand.u32 %v167, 4294901760
    %950 = vmatmul.mubr.f32.gmra.mrb[0].mxu0 %v949
    %v951 = vpop.f32.mrb[0].mxu0
    %v952 = vadd.f32 %v847, %v951
    %v953 = vpop.f32.mrb[0].mxu0
    %954 = vdwg.mxu0
    %955 = vmatprep.subr.mxu0 0.0
    %v956 = vand.u32 %v116, 4294901760
    %957 = vmatpush1.msra.mxu0 %v956
    %958 = vmatprep.subr.mxu0 0.0
    %v959 = vand.u32 %v117, 4294901760
    %960 = vmatpush1.msra.mxu0 %v959
    %961 = vmatprep.subr.mxu0 0.0
    %v962 = vand.u32 %v118, 4294901760
    %963 = vmatpush1.msra.mxu0 %v962
    %964 = vmatprep.subr.mxu0 0.0
    %v965 = vand.u32 %v119, 4294901760
    %966 = vmatpush1.msra.mxu0 %v965
    %967 = vmatprep.subr.mxu0 0.0
    %v968 = vand.u32 %v120, 4294901760
    %969 = vmatpush1.msra.mxu0 %v968
    %970 = vmatprep.subr.mxu0 0.0
    %v971 = vand.u32 %v121, 4294901760
    %972 = vmatpush1.msra.mxu0 %v971
    %973 = vmatprep.subr.mxu0 0.0
    %v974 = vand.u32 %v122, 4294901760
    %975 = vmatpush1.msra.mxu0 %v974
    %976 = vmatprep.subr.mxu0 0.0
    %v977 = vand.u32 %v123, 4294901760
    %978 = vmatpush1.msra.mxu0 %v977
    %979 = vmatprep.subr.mxu0 0.0
    %v980 = vand.u32 %v124, 4294901760
    %981 = vmatpush1.msra.mxu0 %v980
    %982 = vmatprep.subr.mxu0 0.0
    %v983 = vand.u32 %v125, 4294901760
    %984 = vmatpush1.msra.mxu0 %v983
    %985 = vmatprep.subr.mxu0 0.0
    %v986 = vand.u32 %v126, 4294901760
    %987 = vmatpush1.msra.mxu0 %v986
    %988 = vmatprep.subr.mxu0 0.0
    %v989 = vand.u32 %v127, 4294901760
    %990 = vmatpush1.msra.mxu0 %v989
    %991 = vmatprep.subr.mxu0 0.0
    %v992 = vand.u32 %v128, 4294901760
    %993 = vmatpush1.msra.mxu0 %v992
    %994 = vmatprep.subr.mxu0 0.0
    %v995 = vand.u32 %v129, 4294901760
    %996 = vmatpush1.msra.mxu0 %v995
    %997 = vmatprep.subr.mxu0 0.0
    %v998 = vand.u32 %v130, 4294901760
    %999 = vmatpush1.msra.mxu0 %v998
    %1000 = vmatprep.subr.mxu0 0.0
    %v1001 = vand.u32 %v131, 4294901760
    %1002 = vmatpush1.msra.mxu0 %v1001
    %1003 = vmatprep.subr.mxu0 0.0
    %1004 = vmatpush1.msra.mxu0 0.0
    %1005 = vmatprep.subr.mxu0 0.0
    %1006 = vmatpush1.msra.mxu0 0.0
    %1007 = vmatprep.subr.mxu0 0.0
    %1008 = vmatpush1.msra.mxu0 0.0
    %1009 = vmatprep.subr.mxu0 0.0
    %1010 = vmatpush1.msra.mxu0 0.0
    %1011 = vmatprep.subr.mxu0 0.0
    %1012 = vmatpush1.msra.mxu0 0.0
    %1013 = vmatprep.subr.mxu0 0.0
    %1014 = vmatpush1.msra.mxu0 0.0
    %1015 = vmatprep.subr.mxu0 0.0
    %1016 = vmatpush1.msra.mxu0 0.0
    %1017 = vmatprep.subr.mxu0 0.0
    %1018 = vmatpush1.msra.mxu0 0.0
    %1019 = vmatprep.subr.mxu0 0.0
    %1020 = vmatpush1.msra.mxu0 0.0
    %1021 = vmatprep.subr.mxu0 0.0
    %1022 = vmatpush1.msra.mxu0 0.0
    %1023 = vmatprep.subr.mxu0 0.0
    %1024 = vmatpush1.msra.mxu0 0.0
    %1025 = vmatprep.subr.mxu0 0.0
    %1026 = vmatpush1.msra.mxu0 0.0
    %1027 = vmatprep.subr.mxu0 0.0
    %1028 = vmatpush1.msra.mxu0 0.0
    %1029 = vmatprep.subr.mxu0 0.0
    %1030 = vmatpush1.msra.mxu0 0.0
    %1031 = vmatprep.subr.mxu0 0.0
    %1032 = vmatpush1.msra.mxu0 0.0
    %1033 = vmatprep.subr.mxu0 0.0
    %1034 = vmatpush1.msra.mxu0 0.0
    %1035 = vmatprep.mubr.f32.mxu0 0.0
    %v1036 = vand.u32 %v112, 4294901760
    %v1037 = vsub.f32 %v112, %v1036
    %v1038 = vand.u32 %v1037, 4294901760
    %v1039 = vsub.f32 %v1037, %v1038
    %v1040 = vand.u32 %v1039, 4294901760
    %1041 = vmatmul.mubr.f32.gmra.mrb[0].mxu0 %v1040
    %v1042 = vpop.f32.mrb[0].mxu0
    %v1043 = vadd.f32 %v934, %v1042
    %v1044 = vpop.f32.mrb[0].mxu0
    %1045 = vmatprep.mubr.f32.mxu0 0.0
    %v1046 = vand.u32 %v113, 4294901760
    %v1047 = vsub.f32 %v113, %v1046
    %v1048 = vand.u32 %v1047, 4294901760
    %v1049 = vsub.f32 %v1047, %v1048
    %v1050 = vand.u32 %v1049, 4294901760
    %1051 = vmatmul.mubr.f32.gmra.mrb[0].mxu0 %v1050
    %v1052 = vpop.f32.mrb[0].mxu0
    %v1053 = vadd.f32 %v940, %v1052
    %v1054 = vpop.f32.mrb[0].mxu0
    %1055 = vmatprep.mubr.f32.mxu0 0.0
    %v1056 = vand.u32 %v114, 4294901760
    %v1057 = vsub.f32 %v114, %v1056
    %v1058 = vand.u32 %v1057, 4294901760
    %v1059 = vsub.f32 %v1057, %v1058
    %v1060 = vand.u32 %v1059, 4294901760
    %1061 = vmatmul.mubr.f32.gmra.mrb[0].mxu0 %v1060
    %v1062 = vpop.f32.mrb[0].mxu0
    %v1063 = vadd.f32 %v946, %v1062
    %v1064 = vpop.f32.mrb[0].mxu0
    %1065 = vmatprep.mubr.f32.mxu0 0.0
    %v1066 = vand.u32 %v115, 4294901760
    %v1067 = vsub.f32 %v115, %v1066
    %v1068 = vand.u32 %v1067, 4294901760
    %v1069 = vsub.f32 %v1067, %v1068
    %v1070 = vand.u32 %v1069, 4294901760
    %1071 = vmatmul.mubr.f32.gmra.mrb[0].mxu0 %v1070
    %v1072 = vpop.f32.mrb[0].mxu0
    %v1073 = vadd.f32 %v952, %v1072
    %v1074 = vpop.f32.mrb[0].mxu0
    %1075 = vdwg.mxu0
    %1076 = vmatprep.subr.mxu0 0.0
    %v1077 = vand.u32 %v116, 4294901760
    %v1078 = vsub.f32 %v116, %v1077
    %v1079 = vand.u32 %v1078, 4294901760
    %v1080 = vsub.f32 %v1078, %v1079
    %v1081 = vand.u32 %v1080, 4294901760
    %1082 = vmatpush1.msra.mxu0 %v1081
    %1083 = vmatprep.subr.mxu0 0.0
    %v1084 = vand.u32 %v117, 4294901760
    %v1085 = vsub.f32 %v117, %v1084
    %v1086 = vand.u32 %v1085, 4294901760
    %v1087 = vsub.f32 %v1085, %v1086
    %v1088 = vand.u32 %v1087, 4294901760
    %1089 = vmatpush1.msra.mxu0 %v1088
    %1090 = vmatprep.subr.mxu0 0.0
    %v1091 = vand.u32 %v118, 4294901760
    %v1092 = vsub.f32 %v118, %v1091
    %v1093 = vand.u32 %v1092, 4294901760
    %v1094 = vsub.f32 %v1092, %v1093
    %v1095 = vand.u32 %v1094, 4294901760
    %1096 = vmatpush1.msra.mxu0 %v1095
    %1097 = vmatprep.subr.mxu0 0.0
    %v1098 = vand.u32 %v119, 4294901760
    %v1099 = vsub.f32 %v119, %v1098
    %v1100 = vand.u32 %v1099, 4294901760
    %v1101 = vsub.f32 %v1099, %v1100
    %v1102 = vand.u32 %v1101, 4294901760
    %1103 = vmatpush1.msra.mxu0 %v1102
    %1104 = vmatprep.subr.mxu0 0.0
    %v1105 = vand.u32 %v120, 4294901760
    %v1106 = vsub.f32 %v120, %v1105
    %v1107 = vand.u32 %v1106, 4294901760
    %v1108 = vsub.f32 %v1106, %v1107
    %v1109 = vand.u32 %v1108, 4294901760
    %1110 = vmatpush1.msra.mxu0 %v1109
    %1111 = vmatprep.subr.mxu0 0.0
    %v1112 = vand.u32 %v121, 4294901760
    %v1113 = vsub.f32 %v121, %v1112
    %v1114 = vand.u32 %v1113, 4294901760
    %v1115 = vsub.f32 %v1113, %v1114
    %v1116 = vand.u32 %v1115, 4294901760
    %1117 = vmatpush1.msra.mxu0 %v1116
    %1118 = vmatprep.subr.mxu0 0.0
    %v1119 = vand.u32 %v122, 4294901760
    %v1120 = vsub.f32 %v122, %v1119
    %v1121 = vand.u32 %v1120, 4294901760
    %v1122 = vsub.f32 %v1120, %v1121
    %v1123 = vand.u32 %v1122, 4294901760
    %1124 = vmatpush1.msra.mxu0 %v1123
    %1125 = vmatprep.subr.mxu0 0.0
    %v1126 = vand.u32 %v123, 4294901760
    %v1127 = vsub.f32 %v123, %v1126
    %v1128 = vand.u32 %v1127, 4294901760
    %v1129 = vsub.f32 %v1127, %v1128
    %v1130 = vand.u32 %v1129, 4294901760
    %1131 = vmatpush1.msra.mxu0 %v1130
    %1132 = vmatprep.subr.mxu0 0.0
    %v1133 = vand.u32 %v124, 4294901760
    %v1134 = vsub.f32 %v124, %v1133
    %v1135 = vand.u32 %v1134, 4294901760
    %v1136 = vsub.f32 %v1134, %v1135
    %v1137 = vand.u32 %v1136, 4294901760
    %1138 = vmatpush1.msra.mxu0 %v1137
    %1139 = vmatprep.subr.mxu0 0.0
    %v1140 = vand.u32 %v125, 4294901760
    %v1141 = vsub.f32 %v125, %v1140
    %v1142 = vand.u32 %v1141, 4294901760
    %v1143 = vsub.f32 %v1141, %v1142
    %v1144 = vand.u32 %v1143, 4294901760
    %1145 = vmatpush1.msra.mxu0 %v1144
    %1146 = vmatprep.subr.mxu0 0.0
    %v1147 = vand.u32 %v126, 4294901760
    %v1148 = vsub.f32 %v126, %v1147
    %v1149 = vand.u32 %v1148, 4294901760
    %v1150 = vsub.f32 %v1148, %v1149
    %v1151 = vand.u32 %v1150, 4294901760
    %1152 = vmatpush1.msra.mxu0 %v1151
    %1153 = vmatprep.subr.mxu0 0.0
    %v1154 = vand.u32 %v127, 4294901760
    %v1155 = vsub.f32 %v127, %v1154
    %v1156 = vand.u32 %v1155, 4294901760
    %v1157 = vsub.f32 %v1155, %v1156
    %v1158 = vand.u32 %v1157, 4294901760
    %1159 = vmatpush1.msra.mxu0 %v1158
    %1160 = vmatprep.subr.mxu0 0.0
    %v1161 = vand.u32 %v128, 4294901760
    %v1162 = vsub.f32 %v128, %v1161
    %v1163 = vand.u32 %v1162, 4294901760
    %v1164 = vsub.f32 %v1162, %v1163
    %v1165 = vand.u32 %v1164, 4294901760
    %1166 = vmatpush1.msra.mxu0 %v1165
    %1167 = vmatprep.subr.mxu0 0.0
    %v1168 = vand.u32 %v129, 4294901760
    %v1169 = vsub.f32 %v129, %v1168
    %v1170 = vand.u32 %v1169, 4294901760
    %v1171 = vsub.f32 %v1169, %v1170
    %v1172 = vand.u32 %v1171, 4294901760
    %1173 = vmatpush1.msra.mxu0 %v1172
    %1174 = vmatprep.subr.mxu0 0.0
    %v1175 = vand.u32 %v130, 4294901760
    %v1176 = vsub.f32 %v130, %v1175
    %v1177 = vand.u32 %v1176, 4294901760
    %v1178 = vsub.f32 %v1176, %v1177
    %v1179 = vand.u32 %v1178, 4294901760
    %1180 = vmatpush1.msra.mxu0 %v1179
    %1181 = vmatprep.subr.mxu0 0.0
    %v1182 = vand.u32 %v131, 4294901760
    %v1183 = vsub.f32 %v131, %v1182
    %v1184 = vand.u32 %v1183, 4294901760
    %v1185 = vsub.f32 %v1183, %v1184
    %v1186 = vand.u32 %v1185, 4294901760
    %1187 = vmatpush1.msra.mxu0 %v1186
    %1188 = vmatprep.subr.mxu0 0.0
    %1189 = vmatpush1.msra.mxu0 0.0
    %1190 = vmatprep.subr.mxu0 0.0
    %1191 = vmatpush1.msra.mxu0 0.0
    %1192 = vmatprep.subr.mxu0 0.0
    %1193 = vmatpush1.msra.mxu0 0.0
    %1194 = vmatprep.subr.mxu0 0.0
    %1195 = vmatpush1.msra.mxu0 0.0
    %1196 = vmatprep.subr.mxu0 0.0
    %1197 = vmatpush1.msra.mxu0 0.0
    %1198 = vmatprep.subr.mxu0 0.0
    %1199 = vmatpush1.msra.mxu0 0.0
    %1200 = vmatprep.subr.mxu0 0.0
    %1201 = vmatpush1.msra.mxu0 0.0
    %1202 = vmatprep.subr.mxu0 0.0
    %1203 = vmatpush1.msra.mxu0 0.0
    %1204 = vmatprep.subr.mxu0 0.0
    %1205 = vmatpush1.msra.mxu0 0.0
    %1206 = vmatprep.subr.mxu0 0.0
    %1207 = vmatpush1.msra.mxu0 0.0
    %1208 = vmatprep.subr.mxu0 0.0
    %1209 = vmatpush1.msra.mxu0 0.0
    %1210 = vmatprep.subr.mxu0 0.0
    %1211 = vmatpush1.msra.mxu0 0.0
    %1212 = vmatprep.subr.mxu0 0.0
    %1213 = vmatpush1.msra.mxu0 0.0
    %1214 = vmatprep.subr.mxu0 0.0
    %1215 = vmatpush1.msra.mxu0 0.0
    %1216 = vmatprep.subr.mxu0 0.0
    %1217 = vmatpush1.msra.mxu0 0.0
    %1218 = vmatprep.subr.mxu0 0.0
    %1219 = vmatpush1.msra.mxu0 0.0
    %1220 = vmatprep.mubr.f32.mxu0 0.0
    %v1221 = vand.u32 %v112, 4294901760
    %1222 = vmatmul.mubr.f32.gmra.mrb[0].mxu0 %v1221
    %v1223 = vpop.f32.mrb[0].mxu0
    %v1224 = vadd.f32 %v1043, %v1223
    %v1225 = vpop.f32.mrb[0].mxu0
    %1226 = vmatprep.mubr.f32.mxu0 0.0
    %v1227 = vand.u32 %v113, 4294901760
    %1228 = vmatmul.mubr.f32.gmra.mrb[0].mxu0 %v1227
    %v1229 = vpop.f32.mrb[0].mxu0
    %v1230 = vadd.f32 %v1053, %v1229
    %v1231 = vpop.f32.mrb[0].mxu0
    %1232 = vmatprep.mubr.f32.mxu0 0.0
    %v1233 = vand.u32 %v114, 4294901760
    %1234 = vmatmul.mubr.f32.gmra.mrb[0].mxu0 %v1233
    %v1235 = vpop.f32.mrb[0].mxu0
    %v1236 = vadd.f32 %v1063, %v1235
    %v1237 = vpop.f32.mrb[0].mxu0
    %1238 = vmatprep.mubr.f32.mxu0 0.0
    %v1239 = vand.u32 %v115, 4294901760
    %1240 = vmatmul.mubr.f32.gmra.mrb[0].mxu0 %v1239
    %v1241 = vpop.f32.mrb[0].mxu0
    %v1242 = vadd.f32 %v1073, %v1241
    %v1243 = vpop.f32.mrb[0].mxu0
    %1244 = vdwg.mxu0
    %1245 = vmatprep.subr.mxu0 0.0
    %v1246 = vand.u32 %v116, 4294901760
    %v1247 = vsub.f32 %v116, %v1246
    %1248 = vmatpush1.msra.mxu0 %v1247
    %1249 = vmatprep.subr.mxu0 0.0
    %v1250 = vand.u32 %v117, 4294901760
    %v1251 = vsub.f32 %v117, %v1250
    %1252 = vmatpush1.msra.mxu0 %v1251
    %1253 = vmatprep.subr.mxu0 0.0
    %v1254 = vand.u32 %v118, 4294901760
    %v1255 = vsub.f32 %v118, %v1254
    %1256 = vmatpush1.msra.mxu0 %v1255
    %1257 = vmatprep.subr.mxu0 0.0
    %v1258 = vand.u32 %v119, 4294901760
    %v1259 = vsub.f32 %v119, %v1258
    %1260 = vmatpush1.msra.mxu0 %v1259
    %1261 = vmatprep.subr.mxu0 0.0
    %v1262 = vand.u32 %v120, 4294901760
    %v1263 = vsub.f32 %v120, %v1262
    %1264 = vmatpush1.msra.mxu0 %v1263
    %1265 = vmatprep.subr.mxu0 0.0
    %v1266 = vand.u32 %v121, 4294901760
    %v1267 = vsub.f32 %v121, %v1266
    %1268 = vmatpush1.msra.mxu0 %v1267
    %1269 = vmatprep.subr.mxu0 0.0
    %v1270 = vand.u32 %v122, 4294901760
    %v1271 = vsub.f32 %v122, %v1270
    %1272 = vmatpush1.msra.mxu0 %v1271
    %1273 = vmatprep.subr.mxu0 0.0
    %v1274 = vand.u32 %v123, 4294901760
    %v1275 = vsub.f32 %v123, %v1274
    %1276 = vmatpush1.msra.mxu0 %v1275
    %1277 = vmatprep.subr.mxu0 0.0
    %v1278 = vand.u32 %v124, 4294901760
    %v1279 = vsub.f32 %v124, %v1278
    %1280 = vmatpush1.msra.mxu0 %v1279
    %1281 = vmatprep.subr.mxu0 0.0
    %v1282 = vand.u32 %v125, 4294901760
    %v1283 = vsub.f32 %v125, %v1282
    %1284 = vmatpush1.msra.mxu0 %v1283
    %1285 = vmatprep.subr.mxu0 0.0
    %v1286 = vand.u32 %v126, 4294901760
    %v1287 = vsub.f32 %v126, %v1286
    %1288 = vmatpush1.msra.mxu0 %v1287
    %1289 = vmatprep.subr.mxu0 0.0
    %v1290 = vand.u32 %v127, 4294901760
    %v1291 = vsub.f32 %v127, %v1290
    %1292 = vmatpush1.msra.mxu0 %v1291
    %1293 = vmatprep.subr.mxu0 0.0
    %v1294 = vand.u32 %v128, 4294901760
    %v1295 = vsub.f32 %v128, %v1294
    %1296 = vmatpush1.msra.mxu0 %v1295
    %1297 = vmatprep.subr.mxu0 0.0
    %v1298 = vand.u32 %v129, 4294901760
    %v1299 = vsub.f32 %v129, %v1298
    %1300 = vmatpush1.msra.mxu0 %v1299
    %1301 = vmatprep.subr.mxu0 0.0
    %v1302 = vand.u32 %v130, 4294901760
    %v1303 = vsub.f32 %v130, %v1302
    %1304 = vmatpush1.msra.mxu0 %v1303
    %1305 = vmatprep.subr.mxu0 0.0
    %v1306 = vand.u32 %v131, 4294901760
    %v1307 = vsub.f32 %v131, %v1306
    %1308 = vmatpush1.msra.mxu0 %v1307
    %1309 = vmatprep.subr.mxu0 0.0
    %1310 = vmatpush1.msra.mxu0 0.0
    %1311 = vmatprep.subr.mxu0 0.0
    %1312 = vmatpush1.msra.mxu0 0.0
    %1313 = vmatprep.subr.mxu0 0.0
    %1314 = vmatpush1.msra.mxu0 0.0
    %1315 = vmatprep.subr.mxu0 0.0
    %1316 = vmatpush1.msra.mxu0 0.0
    %1317 = vmatprep.subr.mxu0 0.0
    %1318 = vmatpush1.msra.mxu0 0.0
    %1319 = vmatprep.subr.mxu0 0.0
    %1320 = vmatpush1.msra.mxu0 0.0
    %1321 = vmatprep.subr.mxu0 0.0
    %1322 = vmatpush1.msra.mxu0 0.0
    %1323 = vmatprep.subr.mxu0 0.0
    %1324 = vmatpush1.msra.mxu0 0.0
    %1325 = vmatprep.subr.mxu0 0.0
    %1326 = vmatpush1.msra.mxu0 0.0
    %1327 = vmatprep.subr.mxu0 0.0
    %1328 = vmatpush1.msra.mxu0 0.0
    %1329 = vmatprep.subr.mxu0 0.0
    %1330 = vmatpush1.msra.mxu0 0.0
    %1331 = vmatprep.subr.mxu0 0.0
    %1332 = vmatpush1.msra.mxu0 0.0
    %1333 = vmatprep.subr.mxu0 0.0
    %1334 = vmatpush1.msra.mxu0 0.0
    %1335 = vmatprep.subr.mxu0 0.0
    %1336 = vmatpush1.msra.mxu0 0.0
    %1337 = vmatprep.subr.mxu0 0.0
    %1338 = vmatpush1.msra.mxu0 0.0
    %1339 = vmatprep.subr.mxu0 0.0
    %1340 = vmatpush1.msra.mxu0 0.0
    %1341 = vmatprep.mubr.f32.mxu0 0.0
    %v1342 = vand.u32 %v112, 4294901760
    %v1343 = vsub.f32 %v112, %v1342
    %1344 = vmatmul.mubr.f32.gmra.mrb[0].mxu0 %v1343
    %v1345 = vpop.f32.mrb[0].mxu0
    %v1346 = vadd.f32 %v1224, %v1345
    %v1347 = vpop.f32.mrb[0].mxu0
    %1348 = vmatprep.mubr.f32.mxu0 0.0
    %v1349 = vand.u32 %v113, 4294901760
    %v1350 = vsub.f32 %v113, %v1349
    %1351 = vmatmul.mubr.f32.gmra.mrb[0].mxu0 %v1350
    %v1352 = vpop.f32.mrb[0].mxu0
    %v1353 = vadd.f32 %v1230, %v1352
    %v1354 = vpop.f32.mrb[0].mxu0
    %1355 = vmatprep.mubr.f32.mxu0 0.0
    %v1356 = vand.u32 %v114, 4294901760
    %v1357 = vsub.f32 %v114, %v1356
    %1358 = vmatmul.mubr.f32.gmra.mrb[0].mxu0 %v1357
    %v1359 = vpop.f32.mrb[0].mxu0
    %v1360 = vadd.f32 %v1236, %v1359
    %v1361 = vpop.f32.mrb[0].mxu0
    %1362 = vmatprep.mubr.f32.mxu0 0.0
    %v1363 = vand.u32 %v115, 4294901760
    %v1364 = vsub.f32 %v115, %v1363
    %1365 = vmatmul.mubr.f32.gmra.mrb[0].mxu0 %v1364
    %v1366 = vpop.f32.mrb[0].mxu0
    %v1367 = vadd.f32 %v1242, %v1366
    %v1368 = vpop.f32.mrb[0].mxu0
    %1369 = vdwg.mxu0
    %1370 = vmatprep.subr.mxu0 0.0
    %v1371 = vand.u32 %v116, 4294901760
    %1372 = vmatpush1.msra.mxu0 %v1371
    %1373 = vmatprep.subr.mxu0 0.0
    %v1374 = vand.u32 %v117, 4294901760
    %1375 = vmatpush1.msra.mxu0 %v1374
    %1376 = vmatprep.subr.mxu0 0.0
    %v1377 = vand.u32 %v118, 4294901760
    %1378 = vmatpush1.msra.mxu0 %v1377
    %1379 = vmatprep.subr.mxu0 0.0
    %v1380 = vand.u32 %v119, 4294901760
    %1381 = vmatpush1.msra.mxu0 %v1380
    %1382 = vmatprep.subr.mxu0 0.0
    %v1383 = vand.u32 %v120, 4294901760
    %1384 = vmatpush1.msra.mxu0 %v1383
    %1385 = vmatprep.subr.mxu0 0.0
    %v1386 = vand.u32 %v121, 4294901760
    %1387 = vmatpush1.msra.mxu0 %v1386
    %1388 = vmatprep.subr.mxu0 0.0
    %v1389 = vand.u32 %v122, 4294901760
    %1390 = vmatpush1.msra.mxu0 %v1389
    %1391 = vmatprep.subr.mxu0 0.0
    %v1392 = vand.u32 %v123, 4294901760
    %1393 = vmatpush1.msra.mxu0 %v1392
    %1394 = vmatprep.subr.mxu0 0.0
    %v1395 = vand.u32 %v124, 4294901760
    %1396 = vmatpush1.msra.mxu0 %v1395
    %1397 = vmatprep.subr.mxu0 0.0
    %v1398 = vand.u32 %v125, 4294901760
    %1399 = vmatpush1.msra.mxu0 %v1398
    %1400 = vmatprep.subr.mxu0 0.0
    %v1401 = vand.u32 %v126, 4294901760
    %1402 = vmatpush1.msra.mxu0 %v1401
    %1403 = vmatprep.subr.mxu0 0.0
    %v1404 = vand.u32 %v127, 4294901760
    %1405 = vmatpush1.msra.mxu0 %v1404
    %1406 = vmatprep.subr.mxu0 0.0
    %v1407 = vand.u32 %v128, 4294901760
    %1408 = vmatpush1.msra.mxu0 %v1407
    %1409 = vmatprep.subr.mxu0 0.0
    %v1410 = vand.u32 %v129, 4294901760
    %1411 = vmatpush1.msra.mxu0 %v1410
    %1412 = vmatprep.subr.mxu0 0.0
    %v1413 = vand.u32 %v130, 4294901760
    %1414 = vmatpush1.msra.mxu0 %v1413
    %1415 = vmatprep.subr.mxu0 0.0
    %v1416 = vand.u32 %v131, 4294901760
    %1417 = vmatpush1.msra.mxu0 %v1416
    %1418 = vmatprep.subr.mxu0 0.0
    %1419 = vmatpush1.msra.mxu0 0.0
    %1420 = vmatprep.subr.mxu0 0.0
    %1421 = vmatpush1.msra.mxu0 0.0
    %1422 = vmatprep.subr.mxu0 0.0
    %1423 = vmatpush1.msra.mxu0 0.0
    %1424 = vmatprep.subr.mxu0 0.0
    %1425 = vmatpush1.msra.mxu0 0.0
    %1426 = vmatprep.subr.mxu0 0.0
    %1427 = vmatpush1.msra.mxu0 0.0
    %1428 = vmatprep.subr.mxu0 0.0
    %1429 = vmatpush1.msra.mxu0 0.0
    %1430 = vmatprep.subr.mxu0 0.0
    %1431 = vmatpush1.msra.mxu0 0.0
    %1432 = vmatprep.subr.mxu0 0.0
    %1433 = vmatpush1.msra.mxu0 0.0
    %1434 = vmatprep.subr.mxu0 0.0
    %1435 = vmatpush1.msra.mxu0 0.0
    %1436 = vmatprep.subr.mxu0 0.0
    %1437 = vmatpush1.msra.mxu0 0.0
    %1438 = vmatprep.subr.mxu0 0.0
    %1439 = vmatpush1.msra.mxu0 0.0
    %1440 = vmatprep.subr.mxu0 0.0
    %1441 = vmatpush1.msra.mxu0 0.0
    %1442 = vmatprep.subr.mxu0 0.0
    %1443 = vmatpush1.msra.mxu0 0.0
    %1444 = vmatprep.subr.mxu0 0.0
    %1445 = vmatpush1.msra.mxu0 0.0
    %1446 = vmatprep.subr.mxu0 0.0
    %1447 = vmatpush1.msra.mxu0 0.0
    %1448 = vmatprep.subr.mxu0 0.0
    %1449 = vmatpush1.msra.mxu0 0.0
    %1450 = vmatprep.mubr.f32.mxu0 0.0
    %v1451 = vand.u32 %v112, 4294901760
    %v1452 = vsub.f32 %v112, %v1451
    %v1453 = vand.u32 %v1452, 4294901760
    %1454 = vmatmul.mubr.f32.gmra.mrb[0].mxu0 %v1453
    %v1455 = vpop.f32.mrb[0].mxu0
    %v1456 = vadd.f32 %v1346, %v1455
    %v1457 = vpop.f32.mrb[0].mxu0
    %1458 = vmatprep.mubr.f32.mxu0 0.0
    %v1459 = vand.u32 %v113, 4294901760
    %v1460 = vsub.f32 %v113, %v1459
    %v1461 = vand.u32 %v1460, 4294901760
    %1462 = vmatmul.mubr.f32.gmra.mrb[0].mxu0 %v1461
    %v1463 = vpop.f32.mrb[0].mxu0
    %v1464 = vadd.f32 %v1353, %v1463
    %v1465 = vpop.f32.mrb[0].mxu0
    %1466 = vmatprep.mubr.f32.mxu0 0.0
    %v1467 = vand.u32 %v114, 4294901760
    %v1468 = vsub.f32 %v114, %v1467
    %v1469 = vand.u32 %v1468, 4294901760
    %1470 = vmatmul.mubr.f32.gmra.mrb[0].mxu0 %v1469
    %v1471 = vpop.f32.mrb[0].mxu0
    %v1472 = vadd.f32 %v1360, %v1471
    %v1473 = vpop.f32.mrb[0].mxu0
    %1474 = vmatprep.mubr.f32.mxu0 0.0
    %v1475 = vand.u32 %v115, 4294901760
    %v1476 = vsub.f32 %v115, %v1475
    %v1477 = vand.u32 %v1476, 4294901760
    %1478 = vmatmul.mubr.f32.gmra.mrb[0].mxu0 %v1477
    %v1479 = vpop.f32.mrb[0].mxu0
    %v1480 = vadd.f32 %v1367, %v1479
    %v1481 = vpop.f32.mrb[0].mxu0
    %1482 = vdwg.mxu0
    %1483 = vmatprep.subr.mxu0 0.0
    %v1484 = vand.u32 %v116, 4294901760
    %v1485 = vsub.f32 %v116, %v1484
    %v1486 = vand.u32 %v1485, 4294901760
    %1487 = vmatpush1.msra.mxu0 %v1486
    %1488 = vmatprep.subr.mxu0 0.0
    %v1489 = vand.u32 %v117, 4294901760
    %v1490 = vsub.f32 %v117, %v1489
    %v1491 = vand.u32 %v1490, 4294901760
    %1492 = vmatpush1.msra.mxu0 %v1491
    %1493 = vmatprep.subr.mxu0 0.0
    %v1494 = vand.u32 %v118, 4294901760
    %v1495 = vsub.f32 %v118, %v1494
    %v1496 = vand.u32 %v1495, 4294901760
    %1497 = vmatpush1.msra.mxu0 %v1496
    %1498 = vmatprep.subr.mxu0 0.0
    %v1499 = vand.u32 %v119, 4294901760
    %v1500 = vsub.f32 %v119, %v1499
    %v1501 = vand.u32 %v1500, 4294901760
    %1502 = vmatpush1.msra.mxu0 %v1501
    %1503 = vmatprep.subr.mxu0 0.0
    %v1504 = vand.u32 %v120, 4294901760
    %v1505 = vsub.f32 %v120, %v1504
    %v1506 = vand.u32 %v1505, 4294901760
    %1507 = vmatpush1.msra.mxu0 %v1506
    %1508 = vmatprep.subr.mxu0 0.0
    %v1509 = vand.u32 %v121, 4294901760
    %v1510 = vsub.f32 %v121, %v1509
    %v1511 = vand.u32 %v1510, 4294901760
    %1512 = vmatpush1.msra.mxu0 %v1511
    %1513 = vmatprep.subr.mxu0 0.0
    %v1514 = vand.u32 %v122, 4294901760
    %v1515 = vsub.f32 %v122, %v1514
    %v1516 = vand.u32 %v1515, 4294901760
    %1517 = vmatpush1.msra.mxu0 %v1516
    %1518 = vmatprep.subr.mxu0 0.0
    %v1519 = vand.u32 %v123, 4294901760
    %v1520 = vsub.f32 %v123, %v1519
    %v1521 = vand.u32 %v1520, 4294901760
    %1522 = vmatpush1.msra.mxu0 %v1521
    %1523 = vmatprep.subr.mxu0 0.0
    %v1524 = vand.u32 %v124, 4294901760
    %v1525 = vsub.f32 %v124, %v1524
    %v1526 = vand.u32 %v1525, 4294901760
    %1527 = vmatpush1.msra.mxu0 %v1526
    %1528 = vmatprep.subr.mxu0 0.0
    %v1529 = vand.u32 %v125, 4294901760
    %v1530 = vsub.f32 %v125, %v1529
    %v1531 = vand.u32 %v1530, 4294901760
    %1532 = vmatpush1.msra.mxu0 %v1531
    %1533 = vmatprep.subr.mxu0 0.0
    %v1534 = vand.u32 %v126, 4294901760
    %v1535 = vsub.f32 %v126, %v1534
    %v1536 = vand.u32 %v1535, 4294901760
    %1537 = vmatpush1.msra.mxu0 %v1536
    %1538 = vmatprep.subr.mxu0 0.0
    %v1539 = vand.u32 %v127, 4294901760
    %v1540 = vsub.f32 %v127, %v1539
    %v1541 = vand.u32 %v1540, 4294901760
    %1542 = vmatpush1.msra.mxu0 %v1541
    %1543 = vmatprep.subr.mxu0 0.0
    %v1544 = vand.u32 %v128, 4294901760
    %v1545 = vsub.f32 %v128, %v1544
    %v1546 = vand.u32 %v1545, 4294901760
    %1547 = vmatpush1.msra.mxu0 %v1546
    %1548 = vmatprep.subr.mxu0 0.0
    %v1549 = vand.u32 %v129, 4294901760
    %v1550 = vsub.f32 %v129, %v1549
    %v1551 = vand.u32 %v1550, 4294901760
    %1552 = vmatpush1.msra.mxu0 %v1551
    %1553 = vmatprep.subr.mxu0 0.0
    %v1554 = vand.u32 %v130, 4294901760
    %v1555 = vsub.f32 %v130, %v1554
    %v1556 = vand.u32 %v1555, 4294901760
    %1557 = vmatpush1.msra.mxu0 %v1556
    %1558 = vmatprep.subr.mxu0 0.0
    %v1559 = vand.u32 %v131, 4294901760
    %v1560 = vsub.f32 %v131, %v1559
    %v1561 = vand.u32 %v1560, 4294901760
    %1562 = vmatpush1.msra.mxu0 %v1561
    %1563 = vmatprep.subr.mxu0 0.0
    %1564 = vmatpush1.msra.mxu0 0.0
    %1565 = vmatprep.subr.mxu0 0.0
    %1566 = vmatpush1.msra.mxu0 0.0
    %1567 = vmatprep.subr.mxu0 0.0
    %1568 = vmatpush1.msra.mxu0 0.0
    %1569 = vmatprep.subr.mxu0 0.0
    %1570 = vmatpush1.msra.mxu0 0.0
    %1571 = vmatprep.subr.mxu0 0.0
    %1572 = vmatpush1.msra.mxu0 0.0
    %1573 = vmatprep.subr.mxu0 0.0
    %1574 = vmatpush1.msra.mxu0 0.0
    %1575 = vmatprep.subr.mxu0 0.0
    %1576 = vmatpush1.msra.mxu0 0.0
    %1577 = vmatprep.subr.mxu0 0.0
    %1578 = vmatpush1.msra.mxu0 0.0
    %1579 = vmatprep.subr.mxu0 0.0
    %1580 = vmatpush1.msra.mxu0 0.0
    %1581 = vmatprep.subr.mxu0 0.0
    %1582 = vmatpush1.msra.mxu0 0.0
    %1583 = vmatprep.subr.mxu0 0.0
    %1584 = vmatpush1.msra.mxu0 0.0
    %1585 = vmatprep.subr.mxu0 0.0
    %1586 = vmatpush1.msra.mxu0 0.0
    %1587 = vmatprep.subr.mxu0 0.0
    %1588 = vmatpush1.msra.mxu0 0.0
    %1589 = vmatprep.subr.mxu0 0.0
    %1590 = vmatpush1.msra.mxu0 0.0
    %1591 = vmatprep.subr.mxu0 0.0
    %1592 = vmatpush1.msra.mxu0 0.0
    %1593 = vmatprep.subr.mxu0 0.0
    %1594 = vmatpush1.msra.mxu0 0.0
    %1595 = vmatprep.mubr.f32.mxu0 0.0
    %v1596 = vand.u32 %v112, 4294901760
    %1597 = vmatmul.mubr.f32.gmra.mrb[0].mxu0 %v1596
    %v1598 = vpop.f32.mrb[0].mxu0
    %v1599 = vadd.f32 %v1456, %v1598
    %v1600 = vpop.f32.mrb[0].mxu0
    %1601 = vmatprep.mubr.f32.mxu0 0.0
    %v1602 = vand.u32 %v113, 4294901760
    %1603 = vmatmul.mubr.f32.gmra.mrb[0].mxu0 %v1602
    %v1604 = vpop.f32.mrb[0].mxu0
    %v1605 = vadd.f32 %v1464, %v1604
    %v1606 = vpop.f32.mrb[0].mxu0
    %1607 = vmatprep.mubr.f32.mxu0 0.0
    %v1608 = vand.u32 %v114, 4294901760
    %1609 = vmatmul.mubr.f32.gmra.mrb[0].mxu0 %v1608
    %v1610 = vpop.f32.mrb[0].mxu0
    %v1611 = vadd.f32 %v1472, %v1610
    %v1612 = vpop.f32.mrb[0].mxu0
    %1613 = vmatprep.mubr.f32.mxu0 0.0
    %v1614 = vand.u32 %v115, 4294901760
    %1615 = vmatmul.mubr.f32.gmra.mrb[0].mxu0 %v1614
    %v1616 = vpop.f32.mrb[0].mxu0
    %v1617 = vadd.f32 %v1480, %v1616
    %v1618 = vpop.f32.mrb[0].mxu0
    %1619 = vdwg.mxu0
    %1620 = vmatprep.subr.mxu0 0.0
    %v1621 = vand.u32 %v116, 4294901760
    %1622 = vmatpush1.msra.mxu0 %v1621
    %1623 = vmatprep.subr.mxu0 0.0
    %v1624 = vand.u32 %v117, 4294901760
    %1625 = vmatpush1.msra.mxu0 %v1624
    %1626 = vmatprep.subr.mxu0 0.0
    %v1627 = vand.u32 %v118, 4294901760
    %1628 = vmatpush1.msra.mxu0 %v1627
    %1629 = vmatprep.subr.mxu0 0.0
    %v1630 = vand.u32 %v119, 4294901760
    %1631 = vmatpush1.msra.mxu0 %v1630
    %1632 = vmatprep.subr.mxu0 0.0
    %v1633 = vand.u32 %v120, 4294901760
    %1634 = vmatpush1.msra.mxu0 %v1633
    %1635 = vmatprep.subr.mxu0 0.0
    %v1636 = vand.u32 %v121, 4294901760
    %1637 = vmatpush1.msra.mxu0 %v1636
    %1638 = vmatprep.subr.mxu0 0.0
    %v1639 = vand.u32 %v122, 4294901760
    %1640 = vmatpush1.msra.mxu0 %v1639
    %1641 = vmatprep.subr.mxu0 0.0
    %v1642 = vand.u32 %v123, 4294901760
    %1643 = vmatpush1.msra.mxu0 %v1642
    %1644 = vmatprep.subr.mxu0 0.0
    %v1645 = vand.u32 %v124, 4294901760
    %1646 = vmatpush1.msra.mxu0 %v1645
    %1647 = vmatprep.subr.mxu0 0.0
    %v1648 = vand.u32 %v125, 4294901760
    %1649 = vmatpush1.msra.mxu0 %v1648
    %1650 = vmatprep.subr.mxu0 0.0
    %v1651 = vand.u32 %v126, 4294901760
    %1652 = vmatpush1.msra.mxu0 %v1651
    %1653 = vmatprep.subr.mxu0 0.0
    %v1654 = vand.u32 %v127, 4294901760
    %1655 = vmatpush1.msra.mxu0 %v1654
    %1656 = vmatprep.subr.mxu0 0.0
    %v1657 = vand.u32 %v128, 4294901760
    %1658 = vmatpush1.msra.mxu0 %v1657
    %1659 = vmatprep.subr.mxu0 0.0
    %v1660 = vand.u32 %v129, 4294901760
    %1661 = vmatpush1.msra.mxu0 %v1660
    %1662 = vmatprep.subr.mxu0 0.0
    %v1663 = vand.u32 %v130, 4294901760
    %1664 = vmatpush1.msra.mxu0 %v1663
    %1665 = vmatprep.subr.mxu0 0.0
    %v1666 = vand.u32 %v131, 4294901760
    %1667 = vmatpush1.msra.mxu0 %v1666
    %1668 = vmatprep.subr.mxu0 0.0
    %1669 = vmatpush1.msra.mxu0 0.0
    %1670 = vmatprep.subr.mxu0 0.0
    %1671 = vmatpush1.msra.mxu0 0.0
    %1672 = vmatprep.subr.mxu0 0.0
    %1673 = vmatpush1.msra.mxu0 0.0
    %1674 = vmatprep.subr.mxu0 0.0
    %1675 = vmatpush1.msra.mxu0 0.0
    %1676 = vmatprep.subr.mxu0 0.0
    %1677 = vmatpush1.msra.mxu0 0.0
    %1678 = vmatprep.subr.mxu0 0.0
    %1679 = vmatpush1.msra.mxu0 0.0
    %1680 = vmatprep.subr.mxu0 0.0
    %1681 = vmatpush1.msra.mxu0 0.0
    %1682 = vmatprep.subr.mxu0 0.0
    %1683 = vmatpush1.msra.mxu0 0.0
    %1684 = vmatprep.subr.mxu0 0.0
    %1685 = vmatpush1.msra.mxu0 0.0
    %1686 = vmatprep.subr.mxu0 0.0
    %1687 = vmatpush1.msra.mxu0 0.0
    %1688 = vmatprep.subr.mxu0 0.0
    %1689 = vmatpush1.msra.mxu0 0.0
    %1690 = vmatprep.subr.mxu0 0.0
    %1691 = vmatpush1.msra.mxu0 0.0
    %1692 = vmatprep.subr.mxu0 0.0
    %1693 = vmatpush1.msra.mxu0 0.0
    %1694 = vmatprep.subr.mxu0 0.0
    %1695 = vmatpush1.msra.mxu0 0.0
    %1696 = vmatprep.subr.mxu0 0.0
    %1697 = vmatpush1.msra.mxu0 0.0
    %1698 = vmatprep.subr.mxu0 0.0
    %1699 = vmatpush1.msra.mxu0 0.0
    %1700 = vmatprep.mubr.f32.mxu0 0.0
    %v1701 = vand.u32 %v112, 4294901760
    %1702 = vmatmul.mubr.f32.gmra.mrb[0].mxu0 %v1701
    %v1703 = vpop.f32.mrb[0].mxu0
    %v1704 = vadd.f32 %v1599, %v1703
    %v1705 = vpop.f32.mrb[0].mxu0
    %1706 = vmatprep.mubr.f32.mxu0 0.0
    %v1707 = vand.u32 %v113, 4294901760
    %1708 = vmatmul.mubr.f32.gmra.mrb[0].mxu0 %v1707
    %v1709 = vpop.f32.mrb[0].mxu0
    %v1710 = vadd.f32 %v1605, %v1709
    %v1711 = vpop.f32.mrb[0].mxu0
    %1712 = vmatprep.mubr.f32.mxu0 0.0
    %v1713 = vand.u32 %v114, 4294901760
    %1714 = vmatmul.mubr.f32.gmra.mrb[0].mxu0 %v1713
    %v1715 = vpop.f32.mrb[0].mxu0
    %v1716 = vadd.f32 %v1611, %v1715
    %v1717 = vpop.f32.mrb[0].mxu0
    %1718 = vmatprep.mubr.f32.mxu0 0.0
    %v1719 = vand.u32 %v115, 4294901760
    %1720 = vmatmul.mubr.f32.gmra.mrb[0].mxu0 %v1719
    %v1721 = vpop.f32.mrb[0].mxu0
    %v1722 = vadd.f32 %v1617, %v1721
    %v1723 = vpop.f32.mrb[0].mxu0
    %1724 = vdwg.mxu0
    %s1725 = scalar_lea.vmem [#allocation2], 4
    %v1726 = vld [vmem:[%s1725] sm:$0x3]
    %v1727 = vlaneseq
    %v1728 = vshrl.u32 %v1727, 7
    %v1729 = vsub.s32 0, %v1728
    %v1730 = vrot.slane %v1726, %v1729
    %1732 = vbcast.lane.b32.xlu0 %v1730, 256
    %v1733 = vpop.permute.xlu0 %1732
    %s1735 = sor.u32 256, 8
    %1736 = vbcast.lane.b32.xlu0 %v1730, %s1735
    %v1737 = vpop.permute.xlu0 %1736
    %v1738 = vlaneseq
    %v1739 = vshrl.u32 %v1738, 7
    %v1740 = vsub.s32 1, %v1739
    %v1741 = vrot.slane %v1726, %v1740
    %1743 = vbcast.lane.b32.xlu0 %v1741, 256
    %v1744 = vpop.permute.xlu0 %1743
    %s1746 = sor.u32 256, 8
    %1747 = vbcast.lane.b32.xlu0 %v1741, %s1746
    %v1748 = vpop.permute.xlu0 %1747
    %vm1749 = vcmp.eq.s32.totalorder %v1733, %v80
    %vm1750 = vcmp.eq.s32.totalorder %v1737, %v80
    %vm1751 = vcmp.eq.s32.totalorder %v1744, %v80
    %vm1752 = vcmp.eq.s32.totalorder %v1748, %v80
    %v1753 = vsel %vm1749, 1, 0
    %v1754 = vsel %vm1750, 1, 0
    %v1755 = vsel %vm1751, 1, 0
    %v1756 = vsel %vm1752, 1, 0
    %v1757 = vcvt.s32.f32 %v1753
    %v1758 = vcvt.s32.f32 %v1754
    %v1759 = vcvt.s32.f32 %v1755
    %v1760 = vcvt.s32.f32 %v1756
    %s1761 = scalar_lea.vmem [#allocation5], 256
    %v1762 = vld [vmem:[%s1761] sm:$0xff]
    %v1763 = vld [vmem:[%s1761 + $0x8] sm:$0xff]
    %v1764 = vld [vmem:[%s1761 + $0x10] sm:$0xff]
    %v1765 = vld [vmem:[%s1761 + $0x18] sm:$0xff]
    %v1766 = vld [vmem:[%s1761 + $0x20] sm:$0xff]
    %v1767 = vld [vmem:[%s1761 + $0x28] sm:$0xff]
    %v1768 = vld [vmem:[%s1761 + $0x30] sm:$0xff]
    %v1769 = vld [vmem:[%s1761 + $0x38] sm:$0xff]
    %v1770 = vld [vmem:[%s1761 + $0x40] sm:$0xff]
    %v1771 = vld [vmem:[%s1761 + $0x48] sm:$0xff]
    %v1772 = vld [vmem:[%s1761 + $0x50] sm:$0xff]
    %v1773 = vld [vmem:[%s1761 + $0x58] sm:$0xff]
    %v1774 = vld [vmem:[%s1761 + $0x60] sm:$0xff]
    %v1775 = vld [vmem:[%s1761 + $0x68] sm:$0xff]
    %v1776 = vld [vmem:[%s1761 + $0x70] sm:$0xff]
    %v1777 = vld [vmem:[%s1761 + $0x78] sm:$0xff]
    %1778 = vmatprep.subr.mxu0 0.0
    %v1779 = vand.u32 %v1762, 4294901760
    %1780 = vmatpush1.msra.mxu0 %v1779
    %1781 = vmatprep.subr.mxu0 0.0
    %v1782 = vand.u32 %v1763, 4294901760
    %1783 = vmatpush1.msra.mxu0 %v1782
    %1784 = vmatprep.subr.mxu0 0.0
    %v1785 = vand.u32 %v1764, 4294901760
    %1786 = vmatpush1.msra.mxu0 %v1785
    %1787 = vmatprep.subr.mxu0 0.0
    %v1788 = vand.u32 %v1765, 4294901760
    %1789 = vmatpush1.msra.mxu0 %v1788
    %1790 = vmatprep.subr.mxu0 0.0
    %v1791 = vand.u32 %v1766, 4294901760
    %1792 = vmatpush1.msra.mxu0 %v1791
    %1793 = vmatprep.subr.mxu0 0.0
    %v1794 = vand.u32 %v1767, 4294901760
    %1795 = vmatpush1.msra.mxu0 %v1794
    %1796 = vmatprep.subr.mxu0 0.0
    %v1797 = vand.u32 %v1768, 4294901760
    %1798 = vmatpush1.msra.mxu0 %v1797
    %1799 = vmatprep.subr.mxu0 0.0
    %v1800 = vand.u32 %v1769, 4294901760
    %1801 = vmatpush1.msra.mxu0 %v1800
    %1802 = vmatprep.subr.mxu0 0.0
    %v1803 = vand.u32 %v1770, 4294901760
    %1804 = vmatpush1.msra.mxu0 %v1803
    %1805 = vmatprep.subr.mxu0 0.0
    %v1806 = vand.u32 %v1771, 4294901760
    %1807 = vmatpush1.msra.mxu0 %v1806
    %1808 = vmatprep.subr.mxu0 0.0
    %v1809 = vand.u32 %v1772, 4294901760
    %1810 = vmatpush1.msra.mxu0 %v1809
    %1811 = vmatprep.subr.mxu0 0.0
    %v1812 = vand.u32 %v1773, 4294901760
    %1813 = vmatpush1.msra.mxu0 %v1812
    %1814 = vmatprep.subr.mxu0 0.0
    %v1815 = vand.u32 %v1774, 4294901760
    %1816 = vmatpush1.msra.mxu0 %v1815
    %1817 = vmatprep.subr.mxu0 0.0
    %v1818 = vand.u32 %v1775, 4294901760
    %1819 = vmatpush1.msra.mxu0 %v1818
    %1820 = vmatprep.subr.mxu0 0.0
    %v1821 = vand.u32 %v1776, 4294901760
    %1822 = vmatpush1.msra.mxu0 %v1821
    %1823 = vmatprep.subr.mxu0 0.0
    %v1824 = vand.u32 %v1777, 4294901760
    %1825 = vmatpush1.msra.mxu0 %v1824
    %1826 = vmatprep.subr.mxu0 0.0
    %1827 = vmatpush1.msra.mxu0 0.0
    %1828 = vmatprep.subr.mxu0 0.0
    %1829 = vmatpush1.msra.mxu0 0.0
    %1830 = vmatprep.subr.mxu0 0.0
    %1831 = vmatpush1.msra.mxu0 0.0
    %1832 = vmatprep.subr.mxu0 0.0
    %1833 = vmatpush1.msra.mxu0 0.0
    %1834 = vmatprep.subr.mxu0 0.0
    %1835 = vmatpush1.msra.mxu0 0.0
    %1836 = vmatprep.subr.mxu0 0.0
    %1837 = vmatpush1.msra.mxu0 0.0
    %1838 = vmatprep.subr.mxu0 0.0
    %1839 = vmatpush1.msra.mxu0 0.0
    %1840 = vmatprep.subr.mxu0 0.0
    %1841 = vmatpush1.msra.mxu0 0.0
    %1842 = vmatprep.subr.mxu0 0.0
    %1843 = vmatpush1.msra.mxu0 0.0
    %1844 = vmatprep.subr.mxu0 0.0
    %1845 = vmatpush1.msra.mxu0 0.0
    %1846 = vmatprep.subr.mxu0 0.0
    %1847 = vmatpush1.msra.mxu0 0.0
    %1848 = vmatprep.subr.mxu0 0.0
    %1849 = vmatpush1.msra.mxu0 0.0
    %1850 = vmatprep.subr.mxu0 0.0
    %1851 = vmatpush1.msra.mxu0 0.0
    %1852 = vmatprep.subr.mxu0 0.0
    %1853 = vmatpush1.msra.mxu0 0.0
    %1854 = vmatprep.subr.mxu0 0.0
    %1855 = vmatpush1.msra.mxu0 0.0
    %1856 = vmatprep.subr.mxu0 0.0
    %1857 = vmatpush1.msra.mxu0 0.0
    %1858 = vmatprep.mubr.f32.mxu0 0.0
    %v1859 = vand.u32 %v1757, 4294901760
    %v1860 = vsub.f32 %v1757, %v1859
    %v1861 = vand.u32 %v1860, 4294901760
    %v1862 = vsub.f32 %v1860, %v1861
    %v1863 = vand.u32 %v1862, 4294901760
    %1864 = vmatmul.mubr.f32.gmra.mrb[0].mxu0 %v1863
    %v1865 = vpop.f32.mrb[0].mxu0
    %v1866 = vadd.f32 0.0, %v1865
    %v1867 = vpop.f32.mrb[0].mxu0
    %1868 = vmatprep.mubr.f32.mxu0 0.0
    %v1869 = vand.u32 %v1758, 4294901760
    %v1870 = vsub.f32 %v1758, %v1869
    %v1871 = vand.u32 %v1870, 4294901760
    %v1872 = vsub.f32 %v1870, %v1871
    %v1873 = vand.u32 %v1872, 4294901760
    %1874 = vmatmul.mubr.f32.gmra.mrb[0].mxu0 %v1873
    %v1875 = vpop.f32.mrb[0].mxu0
    %v1876 = vadd.f32 0.0, %v1875
    %v1877 = vpop.f32.mrb[0].mxu0
    %1878 = vmatprep.mubr.f32.mxu0 0.0
    %v1879 = vand.u32 %v1759, 4294901760
    %v1880 = vsub.f32 %v1759, %v1879
    %v1881 = vand.u32 %v1880, 4294901760
    %v1882 = vsub.f32 %v1880, %v1881
    %v1883 = vand.u32 %v1882, 4294901760
    %1884 = vmatmul.mubr.f32.gmra.mrb[0].mxu0 %v1883
    %v1885 = vpop.f32.mrb[0].mxu0
    %v1886 = vadd.f32 0.0, %v1885
    %v1887 = vpop.f32.mrb[0].mxu0
    %1888 = vmatprep.mubr.f32.mxu0 0.0
    %v1889 = vand.u32 %v1760, 4294901760
    %v1890 = vsub.f32 %v1760, %v1889
    %v1891 = vand.u32 %v1890, 4294901760
    %v1892 = vsub.f32 %v1890, %v1891
    %v1893 = vand.u32 %v1892, 4294901760
    %1894 = vmatmul.mubr.f32.gmra.mrb[0].mxu0 %v1893
    %v1895 = vpop.f32.mrb[0].mxu0
    %v1896 = vadd.f32 0.0, %v1895
    %v1897 = vpop.f32.mrb[0].mxu0
    %1898 = vdwg.mxu0
    %1899 = vmatprep.subr.mxu0 0.0
    %v1900 = vand.u32 %v1762, 4294901760
    %v1901 = vsub.f32 %v1762, %v1900
    %v1902 = vand.u32 %v1901, 4294901760
    %v1903 = vsub.f32 %v1901, %v1902
    %v1904 = vand.u32 %v1903, 4294901760
    %1905 = vmatpush1.msra.mxu0 %v1904
    %1906 = vmatprep.subr.mxu0 0.0
    %v1907 = vand.u32 %v1763, 4294901760
    %v1908 = vsub.f32 %v1763, %v1907
    %v1909 = vand.u32 %v1908, 4294901760
    %v1910 = vsub.f32 %v1908, %v1909
    %v1911 = vand.u32 %v1910, 4294901760
    %1912 = vmatpush1.msra.mxu0 %v1911
    %1913 = vmatprep.subr.mxu0 0.0
    %v1914 = vand.u32 %v1764, 4294901760
    %v1915 = vsub.f32 %v1764, %v1914
    %v1916 = vand.u32 %v1915, 4294901760
    %v1917 = vsub.f32 %v1915, %v1916
    %v1918 = vand.u32 %v1917, 4294901760
    %1919 = vmatpush1.msra.mxu0 %v1918
    %1920 = vmatprep.subr.mxu0 0.0
    %v1921 = vand.u32 %v1765, 4294901760
    %v1922 = vsub.f32 %v1765, %v1921
    %v1923 = vand.u32 %v1922, 4294901760
    %v1924 = vsub.f32 %v1922, %v1923
    %v1925 = vand.u32 %v1924, 4294901760
    %1926 = vmatpush1.msra.mxu0 %v1925
    %1927 = vmatprep.subr.mxu0 0.0
    %v1928 = vand.u32 %v1766, 4294901760
    %v1929 = vsub.f32 %v1766, %v1928
    %v1930 = vand.u32 %v1929, 4294901760
    %v1931 = vsub.f32 %v1929, %v1930
    %v1932 = vand.u32 %v1931, 4294901760
    %1933 = vmatpush1.msra.mxu0 %v1932
    %1934 = vmatprep.subr.mxu0 0.0
    %v1935 = vand.u32 %v1767, 4294901760
    %v1936 = vsub.f32 %v1767, %v1935
    %v1937 = vand.u32 %v1936, 4294901760
    %v1938 = vsub.f32 %v1936, %v1937
    %v1939 = vand.u32 %v1938, 4294901760
    %1940 = vmatpush1.msra.mxu0 %v1939
    %1941 = vmatprep.subr.mxu0 0.0
    %v1942 = vand.u32 %v1768, 4294901760
    %v1943 = vsub.f32 %v1768, %v1942
    %v1944 = vand.u32 %v1943, 4294901760
    %v1945 = vsub.f32 %v1943, %v1944
    %v1946 = vand.u32 %v1945, 4294901760
    %1947 = vmatpush1.msra.mxu0 %v1946
    %1948 = vmatprep.subr.mxu0 0.0
    %v1949 = vand.u32 %v1769, 4294901760
    %v1950 = vsub.f32 %v1769, %v1949
    %v1951 = vand.u32 %v1950, 4294901760
    %v1952 = vsub.f32 %v1950, %v1951
    %v1953 = vand.u32 %v1952, 4294901760
    %1954 = vmatpush1.msra.mxu0 %v1953
    %1955 = vmatprep.subr.mxu0 0.0
    %v1956 = vand.u32 %v1770, 4294901760
    %v1957 = vsub.f32 %v1770, %v1956
    %v1958 = vand.u32 %v1957, 4294901760
    %v1959 = vsub.f32 %v1957, %v1958
    %v1960 = vand.u32 %v1959, 4294901760
    %1961 = vmatpush1.msra.mxu0 %v1960
    %1962 = vmatprep.subr.mxu0 0.0
    %v1963 = vand.u32 %v1771, 4294901760
    %v1964 = vsub.f32 %v1771, %v1963
    %v1965 = vand.u32 %v1964, 4294901760
    %v1966 = vsub.f32 %v1964, %v1965
    %v1967 = vand.u32 %v1966, 4294901760
    %1968 = vmatpush1.msra.mxu0 %v1967
    %1969 = vmatprep.subr.mxu0 0.0
    %v1970 = vand.u32 %v1772, 4294901760
    %v1971 = vsub.f32 %v1772, %v1970
    %v1972 = vand.u32 %v1971, 4294901760
    %v1973 = vsub.f32 %v1971, %v1972
    %v1974 = vand.u32 %v1973, 4294901760
    %1975 = vmatpush1.msra.mxu0 %v1974
    %1976 = vmatprep.subr.mxu0 0.0
    %v1977 = vand.u32 %v1773, 4294901760
    %v1978 = vsub.f32 %v1773, %v1977
    %v1979 = vand.u32 %v1978, 4294901760
    %v1980 = vsub.f32 %v1978, %v1979
    %v1981 = vand.u32 %v1980, 4294901760
    %1982 = vmatpush1.msra.mxu0 %v1981
    %1983 = vmatprep.subr.mxu0 0.0
    %v1984 = vand.u32 %v1774, 4294901760
    %v1985 = vsub.f32 %v1774, %v1984
    %v1986 = vand.u32 %v1985, 4294901760
    %v1987 = vsub.f32 %v1985, %v1986
    %v1988 = vand.u32 %v1987, 4294901760
    %1989 = vmatpush1.msra.mxu0 %v1988
    %1990 = vmatprep.subr.mxu0 0.0
    %v1991 = vand.u32 %v1775, 4294901760
    %v1992 = vsub.f32 %v1775, %v1991
    %v1993 = vand.u32 %v1992, 4294901760
    %v1994 = vsub.f32 %v1992, %v1993
    %v1995 = vand.u32 %v1994, 4294901760
    %1996 = vmatpush1.msra.mxu0 %v1995
    %1997 = vmatprep.subr.mxu0 0.0
    %v1998 = vand.u32 %v1776, 4294901760
    %v1999 = vsub.f32 %v1776, %v1998
    %v2000 = vand.u32 %v1999, 4294901760
    %v2001 = vsub.f32 %v1999, %v2000
    %v2002 = vand.u32 %v2001, 4294901760
    %2003 = vmatpush1.msra.mxu0 %v2002
    %2004 = vmatprep.subr.mxu0 0.0
    %v2005 = vand.u32 %v1777, 4294901760
    %v2006 = vsub.f32 %v1777, %v2005
    %v2007 = vand.u32 %v2006, 4294901760
    %v2008 = vsub.f32 %v2006, %v2007
    %v2009 = vand.u32 %v2008, 4294901760
    %2010 = vmatpush1.msra.mxu0 %v2009
    %2011 = vmatprep.subr.mxu0 0.0
    %2012 = vmatpush1.msra.mxu0 0.0
    %2013 = vmatprep.subr.mxu0 0.0
    %2014 = vmatpush1.msra.mxu0 0.0
    %2015 = vmatprep.subr.mxu0 0.0
    %2016 = vmatpush1.msra.mxu0 0.0
    %2017 = vmatprep.subr.mxu0 0.0
    %2018 = vmatpush1.msra.mxu0 0.0
    %2019 = vmatprep.subr.mxu0 0.0
    %2020 = vmatpush1.msra.mxu0 0.0
    %2021 = vmatprep.subr.mxu0 0.0
    %2022 = vmatpush1.msra.mxu0 0.0
    %2023 = vmatprep.subr.mxu0 0.0
    %2024 = vmatpush1.msra.mxu0 0.0
    %2025 = vmatprep.subr.mxu0 0.0
    %2026 = vmatpush1.msra.mxu0 0.0
    %2027 = vmatprep.subr.mxu0 0.0
    %2028 = vmatpush1.msra.mxu0 0.0
    %2029 = vmatprep.subr.mxu0 0.0
    %2030 = vmatpush1.msra.mxu0 0.0
    %2031 = vmatprep.subr.mxu0 0.0
    %2032 = vmatpush1.msra.mxu0 0.0
    %2033 = vmatprep.subr.mxu0 0.0
    %2034 = vmatpush1.msra.mxu0 0.0
    %2035 = vmatprep.subr.mxu0 0.0
    %2036 = vmatpush1.msra.mxu0 0.0
    %2037 = vmatprep.subr.mxu0 0.0
    %2038 = vmatpush1.msra.mxu0 0.0
    %2039 = vmatprep.subr.mxu0 0.0
    %2040 = vmatpush1.msra.mxu0 0.0
    %2041 = vmatprep.subr.mxu0 0.0
    %2042 = vmatpush1.msra.mxu0 0.0
    %2043 = vmatprep.mubr.f32.mxu0 0.0
    %v2044 = vand.u32 %v1757, 4294901760
    %2045 = vmatmul.mubr.f32.gmra.mrb[0].mxu0 %v2044
    %v2046 = vpop.f32.mrb[0].mxu0
    %v2047 = vadd.f32 %v1866, %v2046
    %v2048 = vpop.f32.mrb[0].mxu0
    %2049 = vmatprep.mubr.f32.mxu0 0.0
    %v2050 = vand.u32 %v1758, 4294901760
    %2051 = vmatmul.mubr.f32.gmra.mrb[0].mxu0 %v2050
    %v2052 = vpop.f32.mrb[0].mxu0
    %v2053 = vadd.f32 %v1876, %v2052
    %v2054 = vpop.f32.mrb[0].mxu0
    %2055 = vmatprep.mubr.f32.mxu0 0.0
    %v2056 = vand.u32 %v1759, 4294901760
    %2057 = vmatmul.mubr.f32.gmra.mrb[0].mxu0 %v2056
    %v2058 = vpop.f32.mrb[0].mxu0
    %v2059 = vadd.f32 %v1886, %v2058
    %v2060 = vpop.f32.mrb[0].mxu0
    %2061 = vmatprep.mubr.f32.mxu0 0.0
    %v2062 = vand.u32 %v1760, 4294901760
    %2063 = vmatmul.mubr.f32.gmra.mrb[0].mxu0 %v2062
    %v2064 = vpop.f32.mrb[0].mxu0
    %v2065 = vadd.f32 %v1896, %v2064
    %v2066 = vpop.f32.mrb[0].mxu0
    %2067 = vdwg.mxu0
    %2068 = vmatprep.subr.mxu0 0.0
    %v2069 = vand.u32 %v1762, 4294901760
    %v2070 = vsub.f32 %v1762, %v2069
    %2071 = vmatpush1.msra.mxu0 %v2070
    %2072 = vmatprep.subr.mxu0 0.0
    %v2073 = vand.u32 %v1763, 4294901760
    %v2074 = vsub.f32 %v1763, %v2073
    %2075 = vmatpush1.msra.mxu0 %v2074
    %2076 = vmatprep.subr.mxu0 0.0
    %v2077 = vand.u32 %v1764, 4294901760
    %v2078 = vsub.f32 %v1764, %v2077
    %2079 = vmatpush1.msra.mxu0 %v2078
    %2080 = vmatprep.subr.mxu0 0.0
    %v2081 = vand.u32 %v1765, 4294901760
    %v2082 = vsub.f32 %v1765, %v2081
    %2083 = vmatpush1.msra.mxu0 %v2082
    %2084 = vmatprep.subr.mxu0 0.0
    %v2085 = vand.u32 %v1766, 4294901760
    %v2086 = vsub.f32 %v1766, %v2085
    %2087 = vmatpush1.msra.mxu0 %v2086
    %2088 = vmatprep.subr.mxu0 0.0
    %v2089 = vand.u32 %v1767, 4294901760
    %v2090 = vsub.f32 %v1767, %v2089
    %2091 = vmatpush1.msra.mxu0 %v2090
    %2092 = vmatprep.subr.mxu0 0.0
    %v2093 = vand.u32 %v1768, 4294901760
    %v2094 = vsub.f32 %v1768, %v2093
    %2095 = vmatpush1.msra.mxu0 %v2094
    %2096 = vmatprep.subr.mxu0 0.0
    %v2097 = vand.u32 %v1769, 4294901760
    %v2098 = vsub.f32 %v1769, %v2097
    %2099 = vmatpush1.msra.mxu0 %v2098
    %2100 = vmatprep.subr.mxu0 0.0
    %v2101 = vand.u32 %v1770, 4294901760
    %v2102 = vsub.f32 %v1770, %v2101
    %2103 = vmatpush1.msra.mxu0 %v2102
    %2104 = vmatprep.subr.mxu0 0.0
    %v2105 = vand.u32 %v1771, 4294901760
    %v2106 = vsub.f32 %v1771, %v2105
    %2107 = vmatpush1.msra.mxu0 %v2106
    %2108 = vmatprep.subr.mxu0 0.0
    %v2109 = vand.u32 %v1772, 4294901760
    %v2110 = vsub.f32 %v1772, %v2109
    %2111 = vmatpush1.msra.mxu0 %v2110
    %2112 = vmatprep.subr.mxu0 0.0
    %v2113 = vand.u32 %v1773, 4294901760
    %v2114 = vsub.f32 %v1773, %v2113
    %2115 = vmatpush1.msra.mxu0 %v2114
    %2116 = vmatprep.subr.mxu0 0.0
    %v2117 = vand.u32 %v1774, 4294901760
    %v2118 = vsub.f32 %v1774, %v2117
    %2119 = vmatpush1.msra.mxu0 %v2118
    %2120 = vmatprep.subr.mxu0 0.0
    %v2121 = vand.u32 %v1775, 4294901760
    %v2122 = vsub.f32 %v1775, %v2121
    %2123 = vmatpush1.msra.mxu0 %v2122
    %2124 = vmatprep.subr.mxu0 0.0
    %v2125 = vand.u32 %v1776, 4294901760
    %v2126 = vsub.f32 %v1776, %v2125
    %2127 = vmatpush1.msra.mxu0 %v2126
    %2128 = vmatprep.subr.mxu0 0.0
    %v2129 = vand.u32 %v1777, 4294901760
    %v2130 = vsub.f32 %v1777, %v2129
    %2131 = vmatpush1.msra.mxu0 %v2130
    %2132 = vmatprep.subr.mxu0 0.0
    %2133 = vmatpush1.msra.mxu0 0.0
    %2134 = vmatprep.subr.mxu0 0.0
    %2135 = vmatpush1.msra.mxu0 0.0
    %2136 = vmatprep.subr.mxu0 0.0
    %2137 = vmatpush1.msra.mxu0 0.0
    %2138 = vmatprep.subr.mxu0 0.0
    %2139 = vmatpush1.msra.mxu0 0.0
    %2140 = vmatprep.subr.mxu0 0.0
    %2141 = vmatpush1.msra.mxu0 0.0
    %2142 = vmatprep.subr.mxu0 0.0
    %2143 = vmatpush1.msra.mxu0 0.0
    %2144 = vmatprep.subr.mxu0 0.0
    %2145 = vmatpush1.msra.mxu0 0.0
    %2146 = vmatprep.subr.mxu0 0.0
    %2147 = vmatpush1.msra.mxu0 0.0
    %2148 = vmatprep.subr.mxu0 0.0
    %2149 = vmatpush1.msra.mxu0 0.0
    %2150 = vmatprep.subr.mxu0 0.0
    %2151 = vmatpush1.msra.mxu0 0.0
    %2152 = vmatprep.subr.mxu0 0.0
    %2153 = vmatpush1.msra.mxu0 0.0
    %2154 = vmatprep.subr.mxu0 0.0
    %2155 = vmatpush1.msra.mxu0 0.0
    %2156 = vmatprep.subr.mxu0 0.0
    %2157 = vmatpush1.msra.mxu0 0.0
    %2158 = vmatprep.subr.mxu0 0.0
    %2159 = vmatpush1.msra.mxu0 0.0
    %2160 = vmatprep.subr.mxu0 0.0
    %2161 = vmatpush1.msra.mxu0 0.0
    %2162 = vmatprep.subr.mxu0 0.0
    %2163 = vmatpush1.msra.mxu0 0.0
    %2164 = vmatprep.mubr.f32.mxu0 0.0
    %v2165 = vand.u32 %v1757, 4294901760
    %v2166 = vsub.f32 %v1757, %v2165
    %2167 = vmatmul.mubr.f32.gmra.mrb[0].mxu0 %v2166
    %v2168 = vpop.f32.mrb[0].mxu0
    %v2169 = vadd.f32 %v2047, %v2168
    %v2170 = vpop.f32.mrb[0].mxu0
    %2171 = vmatprep.mubr.f32.mxu0 0.0
    %v2172 = vand.u32 %v1758, 4294901760
    %v2173 = vsub.f32 %v1758, %v2172
    %2174 = vmatmul.mubr.f32.gmra.mrb[0].mxu0 %v2173
    %v2175 = vpop.f32.mrb[0].mxu0
    %v2176 = vadd.f32 %v2053, %v2175
    %v2177 = vpop.f32.mrb[0].mxu0
    %2178 = vmatprep.mubr.f32.mxu0 0.0
    %v2179 = vand.u32 %v1759, 4294901760
    %v2180 = vsub.f32 %v1759, %v2179
    %2181 = vmatmul.mubr.f32.gmra.mrb[0].mxu0 %v2180
    %v2182 = vpop.f32.mrb[0].mxu0
    %v2183 = vadd.f32 %v2059, %v2182
    %v2184 = vpop.f32.mrb[0].mxu0
    %2185 = vmatprep.mubr.f32.mxu0 0.0
    %v2186 = vand.u32 %v1760, 4294901760
    %v2187 = vsub.f32 %v1760, %v2186
    %2188 = vmatmul.mubr.f32.gmra.mrb[0].mxu0 %v2187
    %v2189 = vpop.f32.mrb[0].mxu0
    %v2190 = vadd.f32 %v2065, %v2189
    %v2191 = vpop.f32.mrb[0].mxu0
    %2192 = vdwg.mxu0
    %2193 = vmatprep.subr.mxu0 0.0
    %v2194 = vand.u32 %v1762, 4294901760
    %2195 = vmatpush1.msra.mxu0 %v2194
    %2196 = vmatprep.subr.mxu0 0.0
    %v2197 = vand.u32 %v1763, 4294901760
    %2198 = vmatpush1.msra.mxu0 %v2197
    %2199 = vmatprep.subr.mxu0 0.0
    %v2200 = vand.u32 %v1764, 4294901760
    %2201 = vmatpush1.msra.mxu0 %v2200
    %2202 = vmatprep.subr.mxu0 0.0
    %v2203 = vand.u32 %v1765, 4294901760
    %2204 = vmatpush1.msra.mxu0 %v2203
    %2205 = vmatprep.subr.mxu0 0.0
    %v2206 = vand.u32 %v1766, 4294901760
    %2207 = vmatpush1.msra.mxu0 %v2206
    %2208 = vmatprep.subr.mxu0 0.0
    %v2209 = vand.u32 %v1767, 4294901760
    %2210 = vmatpush1.msra.mxu0 %v2209
    %2211 = vmatprep.subr.mxu0 0.0
    %v2212 = vand.u32 %v1768, 4294901760
    %2213 = vmatpush1.msra.mxu0 %v2212
    %2214 = vmatprep.subr.mxu0 0.0
    %v2215 = vand.u32 %v1769, 4294901760
    %2216 = vmatpush1.msra.mxu0 %v2215
    %2217 = vmatprep.subr.mxu0 0.0
    %v2218 = vand.u32 %v1770, 4294901760
    %2219 = vmatpush1.msra.mxu0 %v2218
    %2220 = vmatprep.subr.mxu0 0.0
    %v2221 = vand.u32 %v1771, 4294901760
    %2222 = vmatpush1.msra.mxu0 %v2221
    %2223 = vmatprep.subr.mxu0 0.0
    %v2224 = vand.u32 %v1772, 4294901760
    %2225 = vmatpush1.msra.mxu0 %v2224
    %2226 = vmatprep.subr.mxu0 0.0
    %v2227 = vand.u32 %v1773, 4294901760
    %2228 = vmatpush1.msra.mxu0 %v2227
    %2229 = vmatprep.subr.mxu0 0.0
    %v2230 = vand.u32 %v1774, 4294901760
    %2231 = vmatpush1.msra.mxu0 %v2230
    %2232 = vmatprep.subr.mxu0 0.0
    %v2233 = vand.u32 %v1775, 4294901760
    %2234 = vmatpush1.msra.mxu0 %v2233
    %2235 = vmatprep.subr.mxu0 0.0
    %v2236 = vand.u32 %v1776, 4294901760
    %2237 = vmatpush1.msra.mxu0 %v2236
    %2238 = vmatprep.subr.mxu0 0.0
    %v2239 = vand.u32 %v1777, 4294901760
    %2240 = vmatpush1.msra.mxu0 %v2239
    %2241 = vmatprep.subr.mxu0 0.0
    %2242 = vmatpush1.msra.mxu0 0.0
    %2243 = vmatprep.subr.mxu0 0.0
    %2244 = vmatpush1.msra.mxu0 0.0
    %2245 = vmatprep.subr.mxu0 0.0
    %2246 = vmatpush1.msra.mxu0 0.0
    %2247 = vmatprep.subr.mxu0 0.0
    %2248 = vmatpush1.msra.mxu0 0.0
    %2249 = vmatprep.subr.mxu0 0.0
    %2250 = vmatpush1.msra.mxu0 0.0
    %2251 = vmatprep.subr.mxu0 0.0
    %2252 = vmatpush1.msra.mxu0 0.0
    %2253 = vmatprep.subr.mxu0 0.0
    %2254 = vmatpush1.msra.mxu0 0.0
    %2255 = vmatprep.subr.mxu0 0.0
    %2256 = vmatpush1.msra.mxu0 0.0
    %2257 = vmatprep.subr.mxu0 0.0
    %2258 = vmatpush1.msra.mxu0 0.0
    %2259 = vmatprep.subr.mxu0 0.0
    %2260 = vmatpush1.msra.mxu0 0.0
    %2261 = vmatprep.subr.mxu0 0.0
    %2262 = vmatpush1.msra.mxu0 0.0
    %2263 = vmatprep.subr.mxu0 0.0
    %2264 = vmatpush1.msra.mxu0 0.0
    %2265 = vmatprep.subr.mxu0 0.0
    %2266 = vmatpush1.msra.mxu0 0.0
    %2267 = vmatprep.subr.mxu0 0.0
    %2268 = vmatpush1.msra.mxu0 0.0
    %2269 = vmatprep.subr.mxu0 0.0
    %2270 = vmatpush1.msra.mxu0 0.0
    %2271 = vmatprep.subr.mxu0 0.0
    %2272 = vmatpush1.msra.mxu0 0.0
    %2273 = vmatprep.mubr.f32.mxu0 0.0
    %v2274 = vand.u32 %v1757, 4294901760
    %v2275 = vsub.f32 %v1757, %v2274
    %v2276 = vand.u32 %v2275, 4294901760
    %2277 = vmatmul.mubr.f32.gmra.mrb[0].mxu0 %v2276
    %v2278 = vpop.f32.mrb[0].mxu0
    %v2279 = vadd.f32 %v2169, %v2278
    %v2280 = vpop.f32.mrb[0].mxu0
    %2281 = vmatprep.mubr.f32.mxu0 0.0
    %v2282 = vand.u32 %v1758, 4294901760
    %v2283 = vsub.f32 %v1758, %v2282
    %v2284 = vand.u32 %v2283, 4294901760
    %2285 = vmatmul.mubr.f32.gmra.mrb[0].mxu0 %v2284
    %v2286 = vpop.f32.mrb[0].mxu0
    %v2287 = vadd.f32 %v2176, %v2286
    %v2288 = vpop.f32.mrb[0].mxu0
    %2289 = vmatprep.mubr.f32.mxu0 0.0
    %v2290 = vand.u32 %v1759, 4294901760
    %v2291 = vsub.f32 %v1759, %v2290
    %v2292 = vand.u32 %v2291, 4294901760
    %2293 = vmatmul.mubr.f32.gmra.mrb[0].mxu0 %v2292
    %v2294 = vpop.f32.mrb[0].mxu0
    %v2295 = vadd.f32 %v2183, %v2294
    %v2296 = vpop.f32.mrb[0].mxu0
    %2297 = vmatprep.mubr.f32.mxu0 0.0
    %v2298 = vand.u32 %v1760, 4294901760
    %v2299 = vsub.f32 %v1760, %v2298
    %v2300 = vand.u32 %v2299, 4294901760
    %2301 = vmatmul.mubr.f32.gmra.mrb[0].mxu0 %v2300
    %v2302 = vpop.f32.mrb[0].mxu0
    %v2303 = vadd.f32 %v2190, %v2302
    %v2304 = vpop.f32.mrb[0].mxu0
    %2305 = vdwg.mxu0
    %2306 = vmatprep.subr.mxu0 0.0
    %v2307 = vand.u32 %v1762, 4294901760
    %v2308 = vsub.f32 %v1762, %v2307
    %v2309 = vand.u32 %v2308, 4294901760
    %2310 = vmatpush1.msra.mxu0 %v2309
    %2311 = vmatprep.subr.mxu0 0.0
    %v2312 = vand.u32 %v1763, 4294901760
    %v2313 = vsub.f32 %v1763, %v2312
    %v2314 = vand.u32 %v2313, 4294901760
    %2315 = vmatpush1.msra.mxu0 %v2314
    %2316 = vmatprep.subr.mxu0 0.0
    %v2317 = vand.u32 %v1764, 4294901760
    %v2318 = vsub.f32 %v1764, %v2317
    %v2319 = vand.u32 %v2318, 4294901760
    %2320 = vmatpush1.msra.mxu0 %v2319
    %2321 = vmatprep.subr.mxu0 0.0
    %v2322 = vand.u32 %v1765, 4294901760
    %v2323 = vsub.f32 %v1765, %v2322
    %v2324 = vand.u32 %v2323, 4294901760
    %2325 = vmatpush1.msra.mxu0 %v2324
    %2326 = vmatprep.subr.mxu0 0.0
    %v2327 = vand.u32 %v1766, 4294901760
    %v2328 = vsub.f32 %v1766, %v2327
    %v2329 = vand.u32 %v2328, 4294901760
    %2330 = vmatpush1.msra.mxu0 %v2329
    %2331 = vmatprep.subr.mxu0 0.0
    %v2332 = vand.u32 %v1767, 4294901760
    %v2333 = vsub.f32 %v1767, %v2332
    %v2334 = vand.u32 %v2333, 4294901760
    %2335 = vmatpush1.msra.mxu0 %v2334
    %2336 = vmatprep.subr.mxu0 0.0
    %v2337 = vand.u32 %v1768, 4294901760
    %v2338 = vsub.f32 %v1768, %v2337
    %v2339 = vand.u32 %v2338, 4294901760
    %2340 = vmatpush1.msra.mxu0 %v2339
    %2341 = vmatprep.subr.mxu0 0.0
    %v2342 = vand.u32 %v1769, 4294901760
    %v2343 = vsub.f32 %v1769, %v2342
    %v2344 = vand.u32 %v2343, 4294901760
    %2345 = vmatpush1.msra.mxu0 %v2344
    %2346 = vmatprep.subr.mxu0 0.0
    %v2347 = vand.u32 %v1770, 4294901760
    %v2348 = vsub.f32 %v1770, %v2347
    %v2349 = vand.u32 %v2348, 4294901760
    %2350 = vmatpush1.msra.mxu0 %v2349
    %2351 = vmatprep.subr.mxu0 0.0
    %v2352 = vand.u32 %v1771, 4294901760
    %v2353 = vsub.f32 %v1771, %v2352
    %v2354 = vand.u32 %v2353, 4294901760
    %2355 = vmatpush1.msra.mxu0 %v2354
    %2356 = vmatprep.subr.mxu0 0.0
    %v2357 = vand.u32 %v1772, 4294901760
    %v2358 = vsub.f32 %v1772, %v2357
    %v2359 = vand.u32 %v2358, 4294901760
    %2360 = vmatpush1.msra.mxu0 %v2359
    %2361 = vmatprep.subr.mxu0 0.0
    %v2362 = vand.u32 %v1773, 4294901760
    %v2363 = vsub.f32 %v1773, %v2362
    %v2364 = vand.u32 %v2363, 4294901760
    %2365 = vmatpush1.msra.mxu0 %v2364
    %2366 = vmatprep.subr.mxu0 0.0
    %v2367 = vand.u32 %v1774, 4294901760
    %v2368 = vsub.f32 %v1774, %v2367
    %v2369 = vand.u32 %v2368, 4294901760
    %2370 = vmatpush1.msra.mxu0 %v2369
    %2371 = vmatprep.subr.mxu0 0.0
    %v2372 = vand.u32 %v1775, 4294901760
    %v2373 = vsub.f32 %v1775, %v2372
    %v2374 = vand.u32 %v2373, 4294901760
    %2375 = vmatpush1.msra.mxu0 %v2374
    %2376 = vmatprep.subr.mxu0 0.0
    %v2377 = vand.u32 %v1776, 4294901760
    %v2378 = vsub.f32 %v1776, %v2377
    %v2379 = vand.u32 %v2378, 4294901760
    %2380 = vmatpush1.msra.mxu0 %v2379
    %2381 = vmatprep.subr.mxu0 0.0
    %v2382 = vand.u32 %v1777, 4294901760
    %v2383 = vsub.f32 %v1777, %v2382
    %v2384 = vand.u32 %v2383, 4294901760
    %2385 = vmatpush1.msra.mxu0 %v2384
    %2386 = vmatprep.subr.mxu0 0.0
    %2387 = vmatpush1.msra.mxu0 0.0
    %2388 = vmatprep.subr.mxu0 0.0
    %2389 = vmatpush1.msra.mxu0 0.0
    %2390 = vmatprep.subr.mxu0 0.0
    %2391 = vmatpush1.msra.mxu0 0.0
    %2392 = vmatprep.subr.mxu0 0.0
    %2393 = vmatpush1.msra.mxu0 0.0
    %2394 = vmatprep.subr.mxu0 0.0
    %2395 = vmatpush1.msra.mxu0 0.0
    %2396 = vmatprep.subr.mxu0 0.0
    %2397 = vmatpush1.msra.mxu0 0.0
    %2398 = vmatprep.subr.mxu0 0.0
    %2399 = vmatpush1.msra.mxu0 0.0
    %2400 = vmatprep.subr.mxu0 0.0
    %2401 = vmatpush1.msra.mxu0 0.0
    %2402 = vmatprep.subr.mxu0 0.0
    %2403 = vmatpush1.msra.mxu0 0.0
    %2404 = vmatprep.subr.mxu0 0.0
    %2405 = vmatpush1.msra.mxu0 0.0
    %2406 = vmatprep.subr.mxu0 0.0
    %2407 = vmatpush1.msra.mxu0 0.0
    %2408 = vmatprep.subr.mxu0 0.0
    %2409 = vmatpush1.msra.mxu0 0.0
    %2410 = vmatprep.subr.mxu0 0.0
    %2411 = vmatpush1.msra.mxu0 0.0
    %2412 = vmatprep.subr.mxu0 0.0
    %2413 = vmatpush1.msra.mxu0 0.0
    %2414 = vmatprep.subr.mxu0 0.0
    %2415 = vmatpush1.msra.mxu0 0.0
    %2416 = vmatprep.subr.mxu0 0.0
    %2417 = vmatpush1.msra.mxu0 0.0
    %2418 = vmatprep.mubr.f32.mxu0 0.0
    %v2419 = vand.u32 %v1757, 4294901760
    %2420 = vmatmul.mubr.f32.gmra.mrb[0].mxu0 %v2419
    %v2421 = vpop.f32.mrb[0].mxu0
    %v2422 = vadd.f32 %v2279, %v2421
    %v2423 = vpop.f32.mrb[0].mxu0
    %2424 = vmatprep.mubr.f32.mxu0 0.0
    %v2425 = vand.u32 %v1758, 4294901760
    %2426 = vmatmul.mubr.f32.gmra.mrb[0].mxu0 %v2425
    %v2427 = vpop.f32.mrb[0].mxu0
    %v2428 = vadd.f32 %v2287, %v2427
    %v2429 = vpop.f32.mrb[0].mxu0
    %2430 = vmatprep.mubr.f32.mxu0 0.0
    %v2431 = vand.u32 %v1759, 4294901760
    %2432 = vmatmul.mubr.f32.gmra.mrb[0].mxu0 %v2431
    %v2433 = vpop.f32.mrb[0].mxu0
    %v2434 = vadd.f32 %v2295, %v2433
    %v2435 = vpop.f32.mrb[0].mxu0
    %2436 = vmatprep.mubr.f32.mxu0 0.0
    %v2437 = vand.u32 %v1760, 4294901760
    %2438 = vmatmul.mubr.f32.gmra.mrb[0].mxu0 %v2437
    %v2439 = vpop.f32.mrb[0].mxu0
    %v2440 = vadd.f32 %v2303, %v2439
    %v2441 = vpop.f32.mrb[0].mxu0
    %2442 = vdwg.mxu0
    %2443 = vmatprep.subr.mxu0 0.0
    %v2444 = vand.u32 %v1762, 4294901760
    %2445 = vmatpush1.msra.mxu0 %v2444
    %2446 = vmatprep.subr.mxu0 0.0
    %v2447 = vand.u32 %v1763, 4294901760
    %2448 = vmatpush1.msra.mxu0 %v2447
    %2449 = vmatprep.subr.mxu0 0.0
    %v2450 = vand.u32 %v1764, 4294901760
    %2451 = vmatpush1.msra.mxu0 %v2450
    %2452 = vmatprep.subr.mxu0 0.0
    %v2453 = vand.u32 %v1765, 4294901760
    %2454 = vmatpush1.msra.mxu0 %v2453
    %2455 = vmatprep.subr.mxu0 0.0
    %v2456 = vand.u32 %v1766, 4294901760
    %2457 = vmatpush1.msra.mxu0 %v2456
    %2458 = vmatprep.subr.mxu0 0.0
    %v2459 = vand.u32 %v1767, 4294901760
    %2460 = vmatpush1.msra.mxu0 %v2459
    %2461 = vmatprep.subr.mxu0 0.0
    %v2462 = vand.u32 %v1768, 4294901760
    %2463 = vmatpush1.msra.mxu0 %v2462
    %2464 = vmatprep.subr.mxu0 0.0
    %v2465 = vand.u32 %v1769, 4294901760
    %2466 = vmatpush1.msra.mxu0 %v2465
    %2467 = vmatprep.subr.mxu0 0.0
    %v2468 = vand.u32 %v1770, 4294901760
    %2469 = vmatpush1.msra.mxu0 %v2468
    %2470 = vmatprep.subr.mxu0 0.0
    %v2471 = vand.u32 %v1771, 4294901760
    %2472 = vmatpush1.msra.mxu0 %v2471
    %2473 = vmatprep.subr.mxu0 0.0
    %v2474 = vand.u32 %v1772, 4294901760
    %2475 = vmatpush1.msra.mxu0 %v2474
    %2476 = vmatprep.subr.mxu0 0.0
    %v2477 = vand.u32 %v1773, 4294901760
    %2478 = vmatpush1.msra.mxu0 %v2477
    %2479 = vmatprep.subr.mxu0 0.0
    %v2480 = vand.u32 %v1774, 4294901760
    %2481 = vmatpush1.msra.mxu0 %v2480
    %2482 = vmatprep.subr.mxu0 0.0
    %v2483 = vand.u32 %v1775, 4294901760
    %2484 = vmatpush1.msra.mxu0 %v2483
    %2485 = vmatprep.subr.mxu0 0.0
    %v2486 = vand.u32 %v1776, 4294901760
    %2487 = vmatpush1.msra.mxu0 %v2486
    %2488 = vmatprep.subr.mxu0 0.0
    %v2489 = vand.u32 %v1777, 4294901760
    %2490 = vmatpush1.msra.mxu0 %v2489
    %2491 = vmatprep.subr.mxu0 0.0
    %2492 = vmatpush1.msra.mxu0 0.0
    %2493 = vmatprep.subr.mxu0 0.0
    %2494 = vmatpush1.msra.mxu0 0.0
    %2495 = vmatprep.subr.mxu0 0.0
    %2496 = vmatpush1.msra.mxu0 0.0
    %2497 = vmatprep.subr.mxu0 0.0
    %2498 = vmatpush1.msra.mxu0 0.0
    %2499 = vmatprep.subr.mxu0 0.0
    %2500 = vmatpush1.msra.mxu0 0.0
    %2501 = vmatprep.subr.mxu0 0.0
    %2502 = vmatpush1.msra.mxu0 0.0
    %2503 = vmatprep.subr.mxu0 0.0
    %2504 = vmatpush1.msra.mxu0 0.0
    %2505 = vmatprep.subr.mxu0 0.0
    %2506 = vmatpush1.msra.mxu0 0.0
    %2507 = vmatprep.subr.mxu0 0.0
    %2508 = vmatpush1.msra.mxu0 0.0
    %2509 = vmatprep.subr.mxu0 0.0
    %2510 = vmatpush1.msra.mxu0 0.0
    %2511 = vmatprep.subr.mxu0 0.0
    %2512 = vmatpush1.msra.mxu0 0.0
    %2513 = vmatprep.subr.mxu0 0.0
    %2514 = vmatpush1.msra.mxu0 0.0
    %2515 = vmatprep.subr.mxu0 0.0
    %2516 = vmatpush1.msra.mxu0 0.0
    %2517 = vmatprep.subr.mxu0 0.0
    %2518 = vmatpush1.msra.mxu0 0.0
    %2519 = vmatprep.subr.mxu0 0.0
    %2520 = vmatpush1.msra.mxu0 0.0
    %2521 = vmatprep.subr.mxu0 0.0
    %2522 = vmatpush1.msra.mxu0 0.0
    %2523 = vmatprep.mubr.f32.mxu0 0.0
    %v2524 = vand.u32 %v1757, 4294901760
    %2525 = vmatmul.mubr.f32.gmra.mrb[0].mxu0 %v2524
    %v2526 = vpop.f32.mrb[0].mxu0
    %v2527 = vadd.f32 %v2422, %v2526
    %v2528 = vpop.f32.mrb[0].mxu0
    %2529 = vmatprep.mubr.f32.mxu0 0.0
    %v2530 = vand.u32 %v1758, 4294901760
    %2531 = vmatmul.mubr.f32.gmra.mrb[0].mxu0 %v2530
    %v2532 = vpop.f32.mrb[0].mxu0
    %v2533 = vadd.f32 %v2428, %v2532
    %v2534 = vpop.f32.mrb[0].mxu0
    %2535 = vmatprep.mubr.f32.mxu0 0.0
    %v2536 = vand.u32 %v1759, 4294901760
    %2537 = vmatmul.mubr.f32.gmra.mrb[0].mxu0 %v2536
    %v2538 = vpop.f32.mrb[0].mxu0
    %v2539 = vadd.f32 %v2434, %v2538
    %v2540 = vpop.f32.mrb[0].mxu0
    %2541 = vmatprep.mubr.f32.mxu0 0.0
    %v2542 = vand.u32 %v1760, 4294901760
    %2543 = vmatmul.mubr.f32.gmra.mrb[0].mxu0 %v2542
    %v2544 = vpop.f32.mrb[0].mxu0
    %v2545 = vadd.f32 %v2440, %v2544
    %v2546 = vpop.f32.mrb[0].mxu0
    %2547 = vdwg.mxu0
    %v2548 = vadd.f32 %v1704, %v2527
    %v2549 = vadd.f32 %v1710, %v2533
    %v2550 = vadd.f32 %v1716, %v2539
    %v2551 = vadd.f32 %v1722, %v2545
    %s2552 = scalar_lea.vmem [#allocation2], 6
    %v2553 = vld [vmem:[%s2552] sm:$0x3]
    %v2554 = vlaneseq
    %v2555 = vshrl.u32 %v2554, 7
    %v2556 = vsub.s32 0, %v2555
    %v2557 = vrot.slane %v2553, %v2556
    %2559 = vbcast.lane.b32.xlu0 %v2557, 256
    %v2560 = vpop.permute.xlu0 %2559
    %s2562 = sor.u32 256, 8
    %2563 = vbcast.lane.b32.xlu0 %v2557, %s2562
    %v2564 = vpop.permute.xlu0 %2563
    %v2565 = vlaneseq
    %v2566 = vshrl.u32 %v2565, 7
    %v2567 = vsub.s32 1, %v2566
    %v2568 = vrot.slane %v2553, %v2567
    %2570 = vbcast.lane.b32.xlu0 %v2568, 256
    %v2571 = vpop.permute.xlu0 %2570
    %s2573 = sor.u32 256, 8
    %2574 = vbcast.lane.b32.xlu0 %v2568, %s2573
    %v2575 = vpop.permute.xlu0 %2574
    %vm2576 = vcmp.eq.s32.totalorder %v2560, %v80
    %vm2577 = vcmp.eq.s32.totalorder %v2564, %v80
    %vm2578 = vcmp.eq.s32.totalorder %v2571, %v80
    %vm2579 = vcmp.eq.s32.totalorder %v2575, %v80
    %v2580 = vsel %vm2576, 1, 0
    %v2581 = vsel %vm2577, 1, 0
    %v2582 = vsel %vm2578, 1, 0
    %v2583 = vsel %vm2579, 1, 0
    %v2584 = vcvt.s32.f32 %v2580
    %v2585 = vcvt.s32.f32 %v2581
    %v2586 = vcvt.s32.f32 %v2582
    %v2587 = vcvt.s32.f32 %v2583
    %s2588 = scalar_lea.vmem [#allocation5], 384
    %v2589 = vld [vmem:[%s2588] sm:$0xff]
    %v2590 = vld [vmem:[%s2588 + $0x8] sm:$0xff]
    %v2591 = vld [vmem:[%s2588 + $0x10] sm:$0xff]
    %v2592 = vld [vmem:[%s2588 + $0x18] sm:$0xff]
    %v2593 = vld [vmem:[%s2588 + $0x20] sm:$0xff]
    %v2594 = vld [vmem:[%s2588 + $0x28] sm:$0xff]
    %v2595 = vld [vmem:[%s2588 + $0x30] sm:$0xff]
    %v2596 = vld [vmem:[%s2588 + $0x38] sm:$0xff]
    %v2597 = vld [vmem:[%s2588 + $0x40] sm:$0xff]
    %v2598 = vld [vmem:[%s2588 + $0x48] sm:$0xff]
    %v2599 = vld [vmem:[%s2588 + $0x50] sm:$0xff]
    %v2600 = vld [vmem:[%s2588 + $0x58] sm:$0xff]
    %v2601 = vld [vmem:[%s2588 + $0x60] sm:$0xff]
    %v2602 = vld [vmem:[%s2588 + $0x68] sm:$0xff]
    %v2603 = vld [vmem:[%s2588 + $0x70] sm:$0xff]
    %v2604 = vld [vmem:[%s2588 + $0x78] sm:$0xff]
    %2605 = vmatprep.subr.mxu0 0.0
    %v2606 = vand.u32 %v2589, 4294901760
    %2607 = vmatpush1.msra.mxu0 %v2606
    %2608 = vmatprep.subr.mxu0 0.0
    %v2609 = vand.u32 %v2590, 4294901760
    %2610 = vmatpush1.msra.mxu0 %v2609
    %2611 = vmatprep.subr.mxu0 0.0
    %v2612 = vand.u32 %v2591, 4294901760
    %2613 = vmatpush1.msra.mxu0 %v2612
    %2614 = vmatprep.subr.mxu0 0.0
    %v2615 = vand.u32 %v2592, 4294901760
    %2616 = vmatpush1.msra.mxu0 %v2615
    %2617 = vmatprep.subr.mxu0 0.0
    %v2618 = vand.u32 %v2593, 4294901760
    %2619 = vmatpush1.msra.mxu0 %v2618
    %2620 = vmatprep.subr.mxu0 0.0
    %v2621 = vand.u32 %v2594, 4294901760
    %2622 = vmatpush1.msra.mxu0 %v2621
    %2623 = vmatprep.subr.mxu0 0.0
    %v2624 = vand.u32 %v2595, 4294901760
    %2625 = vmatpush1.msra.mxu0 %v2624
    %2626 = vmatprep.subr.mxu0 0.0
    %v2627 = vand.u32 %v2596, 4294901760
    %2628 = vmatpush1.msra.mxu0 %v2627
    %2629 = vmatprep.subr.mxu0 0.0
    %v2630 = vand.u32 %v2597, 4294901760
    %2631 = vmatpush1.msra.mxu0 %v2630
    %2632 = vmatprep.subr.mxu0 0.0
    %v2633 = vand.u32 %v2598, 4294901760
    %2634 = vmatpush1.msra.mxu0 %v2633
    %2635 = vmatprep.subr.mxu0 0.0
    %v2636 = vand.u32 %v2599, 4294901760
    %2637 = vmatpush1.msra.mxu0 %v2636
    %2638 = vmatprep.subr.mxu0 0.0
    %v2639 = vand.u32 %v2600, 4294901760
    %2640 = vmatpush1.msra.mxu0 %v2639
    %2641 = vmatprep.subr.mxu0 0.0
    %v2642 = vand.u32 %v2601, 4294901760
    %2643 = vmatpush1.msra.mxu0 %v2642
    %2644 = vmatprep.subr.mxu0 0.0
    %v2645 = vand.u32 %v2602, 4294901760
    %2646 = vmatpush1.msra.mxu0 %v2645
    %2647 = vmatprep.subr.mxu0 0.0
    %v2648 = vand.u32 %v2603, 4294901760
    %2649 = vmatpush1.msra.mxu0 %v2648
    %2650 = vmatprep.subr.mxu0 0.0
    %v2651 = vand.u32 %v2604, 4294901760
    %2652 = vmatpush1.msra.mxu0 %v2651
    %2653 = vmatprep.subr.mxu0 0.0
    %2654 = vmatpush1.msra.mxu0 0.0
    %2655 = vmatprep.subr.mxu0 0.0
    %2656 = vmatpush1.msra.mxu0 0.0
    %2657 = vmatprep.subr.mxu0 0.0
    %2658 = vmatpush1.msra.mxu0 0.0
    %2659 = vmatprep.subr.mxu0 0.0
    %2660 = vmatpush1.msra.mxu0 0.0
    %2661 = vmatprep.subr.mxu0 0.0
    %2662 = vmatpush1.msra.mxu0 0.0
    %2663 = vmatprep.subr.mxu0 0.0
    %2664 = vmatpush1.msra.mxu0 0.0
    %2665 = vmatprep.subr.mxu0 0.0
    %2666 = vmatpush1.msra.mxu0 0.0
    %2667 = vmatprep.subr.mxu0 0.0
    %2668 = vmatpush1.msra.mxu0 0.0
    %2669 = vmatprep.subr.mxu0 0.0
    %2670 = vmatpush1.msra.mxu0 0.0
    %2671 = vmatprep.subr.mxu0 0.0
    %2672 = vmatpush1.msra.mxu0 0.0
    %2673 = vmatprep.subr.mxu0 0.0
    %2674 = vmatpush1.msra.mxu0 0.0
    %2675 = vmatprep.subr.mxu0 0.0
    %2676 = vmatpush1.msra.mxu0 0.0
    %2677 = vmatprep.subr.mxu0 0.0
    %2678 = vmatpush1.msra.mxu0 0.0
    %2679 = vmatprep.subr.mxu0 0.0
    %2680 = vmatpush1.msra.mxu0 0.0
    %2681 = vmatprep.subr.mxu0 0.0
    %2682 = vmatpush1.msra.mxu0 0.0
    %2683 = vmatprep.subr.mxu0 0.0
    %2684 = vmatpush1.msra.mxu0 0.0
    %2685 = vmatprep.mubr.f32.mxu0 0.0
    %v2686 = vand.u32 %v2584, 4294901760
    %v2687 = vsub.f32 %v2584, %v2686
    %v2688 = vand.u32 %v2687, 4294901760
    %v2689 = vsub.f32 %v2687, %v2688
    %v2690 = vand.u32 %v2689, 4294901760
    %2691 = vmatmul.mubr.f32.gmra.mrb[0].mxu0 %v2690
    %v2692 = vpop.f32.mrb[0].mxu0
    %v2693 = vadd.f32 0.0, %v2692
    %v2694 = vpop.f32.mrb[0].mxu0
    %2695 = vmatprep.mubr.f32.mxu0 0.0
    %v2696 = vand.u32 %v2585, 4294901760
    %v2697 = vsub.f32 %v2585, %v2696
    %v2698 = vand.u32 %v2697, 4294901760
    %v2699 = vsub.f32 %v2697, %v2698
    %v2700 = vand.u32 %v2699, 4294901760
    %2701 = vmatmul.mubr.f32.gmra.mrb[0].mxu0 %v2700
    %v2702 = vpop.f32.mrb[0].mxu0
    %v2703 = vadd.f32 0.0, %v2702
    %v2704 = vpop.f32.mrb[0].mxu0
    %2705 = vmatprep.mubr.f32.mxu0 0.0
    %v2706 = vand.u32 %v2586, 4294901760
    %v2707 = vsub.f32 %v2586, %v2706
    %v2708 = vand.u32 %v2707, 4294901760
    %v2709 = vsub.f32 %v2707, %v2708
    %v2710 = vand.u32 %v2709, 4294901760
    %2711 = vmatmul.mubr.f32.gmra.mrb[0].mxu0 %v2710
    %v2712 = vpop.f32.mrb[0].mxu0
    %v2713 = vadd.f32 0.0, %v2712
    %v2714 = vpop.f32.mrb[0].mxu0
    %2715 = vmatprep.mubr.f32.mxu0 0.0
    %v2716 = vand.u32 %v2587, 4294901760
    %v2717 = vsub.f32 %v2587, %v2716
    %v2718 = vand.u32 %v2717, 4294901760
    %v2719 = vsub.f32 %v2717, %v2718
    %v2720 = vand.u32 %v2719, 4294901760
    %2721 = vmatmul.mubr.f32.gmra.mrb[0].mxu0 %v2720
    %v2722 = vpop.f32.mrb[0].mxu0
    %v2723 = vadd.f32 0.0, %v2722
    %v2724 = vpop.f32.mrb[0].mxu0
    %2725 = vdwg.mxu0
    %2726 = vmatprep.subr.mxu0 0.0
    %v2727 = vand.u32 %v2589, 4294901760
    %v2728 = vsub.f32 %v2589, %v2727
    %v2729 = vand.u32 %v2728, 4294901760
    %v2730 = vsub.f32 %v2728, %v2729
    %v2731 = vand.u32 %v2730, 4294901760
    %2732 = vmatpush1.msra.mxu0 %v2731
    %2733 = vmatprep.subr.mxu0 0.0
    %v2734 = vand.u32 %v2590, 4294901760
    %v2735 = vsub.f32 %v2590, %v2734
    %v2736 = vand.u32 %v2735, 4294901760
    %v2737 = vsub.f32 %v2735, %v2736
    %v2738 = vand.u32 %v2737, 4294901760
    %2739 = vmatpush1.msra.mxu0 %v2738
    %2740 = vmatprep.subr.mxu0 0.0
    %v2741 = vand.u32 %v2591, 4294901760
    %v2742 = vsub.f32 %v2591, %v2741
    %v2743 = vand.u32 %v2742, 4294901760
    %v2744 = vsub.f32 %v2742, %v2743
    %v2745 = vand.u32 %v2744, 4294901760
    %2746 = vmatpush1.msra.mxu0 %v2745
    %2747 = vmatprep.subr.mxu0 0.0
    %v2748 = vand.u32 %v2592, 4294901760
    %v2749 = vsub.f32 %v2592, %v2748
    %v2750 = vand.u32 %v2749, 4294901760
    %v2751 = vsub.f32 %v2749, %v2750
    %v2752 = vand.u32 %v2751, 4294901760
    %2753 = vmatpush1.msra.mxu0 %v2752
    %2754 = vmatprep.subr.mxu0 0.0
    %v2755 = vand.u32 %v2593, 4294901760
    %v2756 = vsub.f32 %v2593, %v2755
    %v2757 = vand.u32 %v2756, 4294901760
    %v2758 = vsub.f32 %v2756, %v2757
    %v2759 = vand.u32 %v2758, 4294901760
    %2760 = vmatpush1.msra.mxu0 %v2759
    %2761 = vmatprep.subr.mxu0 0.0
    %v2762 = vand.u32 %v2594, 4294901760
    %v2763 = vsub.f32 %v2594, %v2762
    %v2764 = vand.u32 %v2763, 4294901760
    %v2765 = vsub.f32 %v2763, %v2764
    %v2766 = vand.u32 %v2765, 4294901760
    %2767 = vmatpush1.msra.mxu0 %v2766
    %2768 = vmatprep.subr.mxu0 0.0
    %v2769 = vand.u32 %v2595, 4294901760
    %v2770 = vsub.f32 %v2595, %v2769
    %v2771 = vand.u32 %v2770, 4294901760
    %v2772 = vsub.f32 %v2770, %v2771
    %v2773 = vand.u32 %v2772, 4294901760
    %2774 = vmatpush1.msra.mxu0 %v2773
    %2775 = vmatprep.subr.mxu0 0.0
    %v2776 = vand.u32 %v2596, 4294901760
    %v2777 = vsub.f32 %v2596, %v2776
    %v2778 = vand.u32 %v2777, 4294901760
    %v2779 = vsub.f32 %v2777, %v2778
    %v2780 = vand.u32 %v2779, 4294901760
    %2781 = vmatpush1.msra.mxu0 %v2780
    %2782 = vmatprep.subr.mxu0 0.0
    %v2783 = vand.u32 %v2597, 4294901760
    %v2784 = vsub.f32 %v2597, %v2783
    %v2785 = vand.u32 %v2784, 4294901760
    %v2786 = vsub.f32 %v2784, %v2785
    %v2787 = vand.u32 %v2786, 4294901760
    %2788 = vmatpush1.msra.mxu0 %v2787
    %2789 = vmatprep.subr.mxu0 0.0
    %v2790 = vand.u32 %v2598, 4294901760
    %v2791 = vsub.f32 %v2598, %v2790
    %v2792 = vand.u32 %v2791, 4294901760
    %v2793 = vsub.f32 %v2791, %v2792
    %v2794 = vand.u32 %v2793, 4294901760
    %2795 = vmatpush1.msra.mxu0 %v2794
    %2796 = vmatprep.subr.mxu0 0.0
    %v2797 = vand.u32 %v2599, 4294901760
    %v2798 = vsub.f32 %v2599, %v2797
    %v2799 = vand.u32 %v2798, 4294901760
    %v2800 = vsub.f32 %v2798, %v2799
    %v2801 = vand.u32 %v2800, 4294901760
    %2802 = vmatpush1.msra.mxu0 %v2801
    %2803 = vmatprep.subr.mxu0 0.0
    %v2804 = vand.u32 %v2600, 4294901760
    %v2805 = vsub.f32 %v2600, %v2804
    %v2806 = vand.u32 %v2805, 4294901760
    %v2807 = vsub.f32 %v2805, %v2806
    %v2808 = vand.u32 %v2807, 4294901760
    %2809 = vmatpush1.msra.mxu0 %v2808
    %2810 = vmatprep.subr.mxu0 0.0
    %v2811 = vand.u32 %v2601, 4294901760
    %v2812 = vsub.f32 %v2601, %v2811
    %v2813 = vand.u32 %v2812, 4294901760
    %v2814 = vsub.f32 %v2812, %v2813
    %v2815 = vand.u32 %v2814, 4294901760
    %2816 = vmatpush1.msra.mxu0 %v2815
    %2817 = vmatprep.subr.mxu0 0.0
    %v2818 = vand.u32 %v2602, 4294901760
    %v2819 = vsub.f32 %v2602, %v2818
    %v2820 = vand.u32 %v2819, 4294901760
    %v2821 = vsub.f32 %v2819, %v2820
    %v2822 = vand.u32 %v2821, 4294901760
    %2823 = vmatpush1.msra.mxu0 %v2822
    %2824 = vmatprep.subr.mxu0 0.0
    %v2825 = vand.u32 %v2603, 4294901760
    %v2826 = vsub.f32 %v2603, %v2825
    %v2827 = vand.u32 %v2826, 4294901760
    %v2828 = vsub.f32 %v2826, %v2827
    %v2829 = vand.u32 %v2828, 4294901760
    %2830 = vmatpush1.msra.mxu0 %v2829
    %2831 = vmatprep.subr.mxu0 0.0
    %v2832 = vand.u32 %v2604, 4294901760
    %v2833 = vsub.f32 %v2604, %v2832
    %v2834 = vand.u32 %v2833, 4294901760
    %v2835 = vsub.f32 %v2833, %v2834
    %v2836 = vand.u32 %v2835, 4294901760
    %2837 = vmatpush1.msra.mxu0 %v2836
    %2838 = vmatprep.subr.mxu0 0.0
    %2839 = vmatpush1.msra.mxu0 0.0
    %2840 = vmatprep.subr.mxu0 0.0
    %2841 = vmatpush1.msra.mxu0 0.0
    %2842 = vmatprep.subr.mxu0 0.0
    %2843 = vmatpush1.msra.mxu0 0.0
    %2844 = vmatprep.subr.mxu0 0.0
    %2845 = vmatpush1.msra.mxu0 0.0
    %2846 = vmatprep.subr.mxu0 0.0
    %2847 = vmatpush1.msra.mxu0 0.0
    %2848 = vmatprep.subr.mxu0 0.0
    %2849 = vmatpush1.msra.mxu0 0.0
    %2850 = vmatprep.subr.mxu0 0.0
    %2851 = vmatpush1.msra.mxu0 0.0
    %2852 = vmatprep.subr.mxu0 0.0
    %2853 = vmatpush1.msra.mxu0 0.0
    %2854 = vmatprep.subr.mxu0 0.0
    %2855 = vmatpush1.msra.mxu0 0.0
    %2856 = vmatprep.subr.mxu0 0.0
    %2857 = vmatpush1.msra.mxu0 0.0
    %2858 = vmatprep.subr.mxu0 0.0
    %2859 = vmatpush1.msra.mxu0 0.0
    %2860 = vmatprep.subr.mxu0 0.0
    %2861 = vmatpush1.msra.mxu0 0.0
    %2862 = vmatprep.subr.mxu0 0.0
    %2863 = vmatpush1.msra.mxu0 0.0
    %2864 = vmatprep.subr.mxu0 0.0
    %2865 = vmatpush1.msra.mxu0 0.0
    %2866 = vmatprep.subr.mxu0 0.0
    %2867 = vmatpush1.msra.mxu0 0.0
    %2868 = vmatprep.subr.mxu0 0.0
    %2869 = vmatpush1.msra.mxu0 0.0
    %2870 = vmatprep.mubr.f32.mxu0 0.0
    %v2871 = vand.u32 %v2584, 4294901760
    %2872 = vmatmul.mubr.f32.gmra.mrb[0].mxu0 %v2871
    %v2873 = vpop.f32.mrb[0].mxu0
    %v2874 = vadd.f32 %v2693, %v2873
    %v2875 = vpop.f32.mrb[0].mxu0
    %2876 = vmatprep.mubr.f32.mxu0 0.0
    %v2877 = vand.u32 %v2585, 4294901760
    %2878 = vmatmul.mubr.f32.gmra.mrb[0].mxu0 %v2877
    %v2879 = vpop.f32.mrb[0].mxu0
    %v2880 = vadd.f32 %v2703, %v2879
    %v2881 = vpop.f32.mrb[0].mxu0
    %2882 = vmatprep.mubr.f32.mxu0 0.0
    %v2883 = vand.u32 %v2586, 4294901760
    %2884 = vmatmul.mubr.f32.gmra.mrb[0].mxu0 %v2883
    %v2885 = vpop.f32.mrb[0].mxu0
    %v2886 = vadd.f32 %v2713, %v2885
    %v2887 = vpop.f32.mrb[0].mxu0
    %2888 = vmatprep.mubr.f32.mxu0 0.0
    %v2889 = vand.u32 %v2587, 4294901760
    %2890 = vmatmul.mubr.f32.gmra.mrb[0].mxu0 %v2889
    %v2891 = vpop.f32.mrb[0].mxu0
    %v2892 = vadd.f32 %v2723, %v2891
    %v2893 = vpop.f32.mrb[0].mxu0
    %2894 = vdwg.mxu0
    %2895 = vmatprep.subr.mxu0 0.0
    %v2896 = vand.u32 %v2589, 4294901760
    %v2897 = vsub.f32 %v2589, %v2896
    %2898 = vmatpush1.msra.mxu0 %v2897
    %2899 = vmatprep.subr.mxu0 0.0
    %v2900 = vand.u32 %v2590, 4294901760
    %v2901 = vsub.f32 %v2590, %v2900
    %2902 = vmatpush1.msra.mxu0 %v2901
    %2903 = vmatprep.subr.mxu0 0.0
    %v2904 = vand.u32 %v2591, 4294901760
    %v2905 = vsub.f32 %v2591, %v2904
    %2906 = vmatpush1.msra.mxu0 %v2905
    %2907 = vmatprep.subr.mxu0 0.0
    %v2908 = vand.u32 %v2592, 4294901760
    %v2909 = vsub.f32 %v2592, %v2908
    %2910 = vmatpush1.msra.mxu0 %v2909
    %2911 = vmatprep.subr.mxu0 0.0
    %v2912 = vand.u32 %v2593, 4294901760
    %v2913 = vsub.f32 %v2593, %v2912
    %2914 = vmatpush1.msra.mxu0 %v2913
    %2915 = vmatprep.subr.mxu0 0.0
    %v2916 = vand.u32 %v2594, 4294901760
    %v2917 = vsub.f32 %v2594, %v2916
    %2918 = vmatpush1.msra.mxu0 %v2917
    %2919 = vmatprep.subr.mxu0 0.0
    %v2920 = vand.u32 %v2595, 4294901760
    %v2921 = vsub.f32 %v2595, %v2920
    %2922 = vmatpush1.msra.mxu0 %v2921
    %2923 = vmatprep.subr.mxu0 0.0
    %v2924 = vand.u32 %v2596, 4294901760
    %v2925 = vsub.f32 %v2596, %v2924
    %2926 = vmatpush1.msra.mxu0 %v2925
    %2927 = vmatprep.subr.mxu0 0.0
    %v2928 = vand.u32 %v2597, 4294901760
    %v2929 = vsub.f32 %v2597, %v2928
    %2930 = vmatpush1.msra.mxu0 %v2929
    %2931 = vmatprep.subr.mxu0 0.0
    %v2932 = vand.u32 %v2598, 4294901760
    %v2933 = vsub.f32 %v2598, %v2932
    %2934 = vmatpush1.msra.mxu0 %v2933
    %2935 = vmatprep.subr.mxu0 0.0
    %v2936 = vand.u32 %v2599, 4294901760
    %v2937 = vsub.f32 %v2599, %v2936
    %2938 = vmatpush1.msra.mxu0 %v2937
    %2939 = vmatprep.subr.mxu0 0.0
    %v2940 = vand.u32 %v2600, 4294901760
    %v2941 = vsub.f32 %v2600, %v2940
    %2942 = vmatpush1.msra.mxu0 %v2941
    %2943 = vmatprep.subr.mxu0 0.0
    %v2944 = vand.u32 %v2601, 4294901760
    %v2945 = vsub.f32 %v2601, %v2944
    %2946 = vmatpush1.msra.mxu0 %v2945
    %2947 = vmatprep.subr.mxu0 0.0
    %v2948 = vand.u32 %v2602, 4294901760
    %v2949 = vsub.f32 %v2602, %v2948
    %2950 = vmatpush1.msra.mxu0 %v2949
    %2951 = vmatprep.subr.mxu0 0.0
    %v2952 = vand.u32 %v2603, 4294901760
    %v2953 = vsub.f32 %v2603, %v2952
    %2954 = vmatpush1.msra.mxu0 %v2953
    %2955 = vmatprep.subr.mxu0 0.0
    %v2956 = vand.u32 %v2604, 4294901760
    %v2957 = vsub.f32 %v2604, %v2956
    %2958 = vmatpush1.msra.mxu0 %v2957
    %2959 = vmatprep.subr.mxu0 0.0
    %2960 = vmatpush1.msra.mxu0 0.0
    %2961 = vmatprep.subr.mxu0 0.0
    %2962 = vmatpush1.msra.mxu0 0.0
    %2963 = vmatprep.subr.mxu0 0.0
    %2964 = vmatpush1.msra.mxu0 0.0
    %2965 = vmatprep.subr.mxu0 0.0
    %2966 = vmatpush1.msra.mxu0 0.0
    %2967 = vmatprep.subr.mxu0 0.0
    %2968 = vmatpush1.msra.mxu0 0.0
    %2969 = vmatprep.subr.mxu0 0.0
    %2970 = vmatpush1.msra.mxu0 0.0
    %2971 = vmatprep.subr.mxu0 0.0
    %2972 = vmatpush1.msra.mxu0 0.0
    %2973 = vmatprep.subr.mxu0 0.0
    %2974 = vmatpush1.msra.mxu0 0.0
    %2975 = vmatprep.subr.mxu0 0.0
    %2976 = vmatpush1.msra.mxu0 0.0
    %2977 = vmatprep.subr.mxu0 0.0
    %2978 = vmatpush1.msra.mxu0 0.0
    %2979 = vmatprep.subr.mxu0 0.0
    %2980 = vmatpush1.msra.mxu0 0.0
    %2981 = vmatprep.subr.mxu0 0.0
    %2982 = vmatpush1.msra.mxu0 0.0
    %2983 = vmatprep.subr.mxu0 0.0
    %2984 = vmatpush1.msra.mxu0 0.0
    %2985 = vmatprep.subr.mxu0 0.0
    %2986 = vmatpush1.msra.mxu0 0.0
    %2987 = vmatprep.subr.mxu0 0.0
    %2988 = vmatpush1.msra.mxu0 0.0
    %2989 = vmatprep.subr.mxu0 0.0
    %2990 = vmatpush1.msra.mxu0 0.0
    %2991 = vmatprep.mubr.f32.mxu0 0.0
    %v2992 = vand.u32 %v2584, 4294901760
    %v2993 = vsub.f32 %v2584, %v2992
    %2994 = vmatmul.mubr.f32.gmra.mrb[0].mxu0 %v2993
    %v2995 = vpop.f32.mrb[0].mxu0
    %v2996 = vadd.f32 %v2874, %v2995
    %v2997 = vpop.f32.mrb[0].mxu0
    %2998 = vmatprep.mubr.f32.mxu0 0.0
    %v2999 = vand.u32 %v2585, 4294901760
    %v3000 = vsub.f32 %v2585, %v2999
    %3001 = vmatmul.mubr.f32.gmra.mrb[0].mxu0 %v3000
    %v3002 = vpop.f32.mrb[0].mxu0
    %v3003 = vadd.f32 %v2880, %v3002
    %v3004 = vpop.f32.mrb[0].mxu0
    %3005 = vmatprep.mubr.f32.mxu0 0.0
    %v3006 = vand.u32 %v2586, 4294901760
    %v3007 = vsub.f32 %v2586, %v3006
    %3008 = vmatmul.mubr.f32.gmra.mrb[0].mxu0 %v3007
    %v3009 = vpop.f32.mrb[0].mxu0
    %v3010 = vadd.f32 %v2886, %v3009
    %v3011 = vpop.f32.mrb[0].mxu0
    %3012 = vmatprep.mubr.f32.mxu0 0.0
    %v3013 = vand.u32 %v2587, 4294901760
    %v3014 = vsub.f32 %v2587, %v3013
    %3015 = vmatmul.mubr.f32.gmra.mrb[0].mxu0 %v3014
    %v3016 = vpop.f32.mrb[0].mxu0
    %v3017 = vadd.f32 %v2892, %v3016
    %v3018 = vpop.f32.mrb[0].mxu0
    %3019 = vdwg.mxu0
    %3020 = vmatprep.subr.mxu0 0.0
    %v3021 = vand.u32 %v2589, 4294901760
    %3022 = vmatpush1.msra.mxu0 %v3021
    %3023 = vmatprep.subr.mxu0 0.0
    %v3024 = vand.u32 %v2590, 4294901760
    %3025 = vmatpush1.msra.mxu0 %v3024
    %3026 = vmatprep.subr.mxu0 0.0
    %v3027 = vand.u32 %v2591, 4294901760
    %3028 = vmatpush1.msra.mxu0 %v3027
    %3029 = vmatprep.subr.mxu0 0.0
    %v3030 = vand.u32 %v2592, 4294901760
    %3031 = vmatpush1.msra.mxu0 %v3030
    %3032 = vmatprep.subr.mxu0 0.0
    %v3033 = vand.u32 %v2593, 4294901760
    %3034 = vmatpush1.msra.mxu0 %v3033
    %3035 = vmatprep.subr.mxu0 0.0
    %v3036 = vand.u32 %v2594, 4294901760
    %3037 = vmatpush1.msra.mxu0 %v3036
    %3038 = vmatprep.subr.mxu0 0.0
    %v3039 = vand.u32 %v2595, 4294901760
    %3040 = vmatpush1.msra.mxu0 %v3039
    %3041 = vmatprep.subr.mxu0 0.0
    %v3042 = vand.u32 %v2596, 4294901760
    %3043 = vmatpush1.msra.mxu0 %v3042
    %3044 = vmatprep.subr.mxu0 0.0
    %v3045 = vand.u32 %v2597, 4294901760
    %3046 = vmatpush1.msra.mxu0 %v3045
    %3047 = vmatprep.subr.mxu0 0.0
    %v3048 = vand.u32 %v2598, 4294901760
    %3049 = vmatpush1.msra.mxu0 %v3048
    %3050 = vmatprep.subr.mxu0 0.0
    %v3051 = vand.u32 %v2599, 4294901760
    %3052 = vmatpush1.msra.mxu0 %v3051
    %3053 = vmatprep.subr.mxu0 0.0
    %v3054 = vand.u32 %v2600, 4294901760
    %3055 = vmatpush1.msra.mxu0 %v3054
    %3056 = vmatprep.subr.mxu0 0.0
    %v3057 = vand.u32 %v2601, 4294901760
    %3058 = vmatpush1.msra.mxu0 %v3057
    %3059 = vmatprep.subr.mxu0 0.0
    %v3060 = vand.u32 %v2602, 4294901760
    %3061 = vmatpush1.msra.mxu0 %v3060
    %3062 = vmatprep.subr.mxu0 0.0
    %v3063 = vand.u32 %v2603, 4294901760
    %3064 = vmatpush1.msra.mxu0 %v3063
    %3065 = vmatprep.subr.mxu0 0.0
    %v3066 = vand.u32 %v2604, 4294901760
    %3067 = vmatpush1.msra.mxu0 %v3066
    %3068 = vmatprep.subr.mxu0 0.0
    %3069 = vmatpush1.msra.mxu0 0.0
    %3070 = vmatprep.subr.mxu0 0.0
    %3071 = vmatpush1.msra.mxu0 0.0
    %3072 = vmatprep.subr.mxu0 0.0
    %3073 = vmatpush1.msra.mxu0 0.0
    %3074 = vmatprep.subr.mxu0 0.0
    %3075 = vmatpush1.msra.mxu0 0.0
    %3076 = vmatprep.subr.mxu0 0.0
    %3077 = vmatpush1.msra.mxu0 0.0
    %3078 = vmatprep.subr.mxu0 0.0
    %3079 = vmatpush1.msra.mxu0 0.0
    %3080 = vmatprep.subr.mxu0 0.0
    %3081 = vmatpush1.msra.mxu0 0.0
    %3082 = vmatprep.subr.mxu0 0.0
    %3083 = vmatpush1.msra.mxu0 0.0
    %3084 = vmatprep.subr.mxu0 0.0
    %3085 = vmatpush1.msra.mxu0 0.0
    %3086 = vmatprep.subr.mxu0 0.0
    %3087 = vmatpush1.msra.mxu0 0.0
    %3088 = vmatprep.subr.mxu0 0.0
    %3089 = vmatpush1.msra.mxu0 0.0
    %3090 = vmatprep.subr.mxu0 0.0
    %3091 = vmatpush1.msra.mxu0 0.0
    %3092 = vmatprep.subr.mxu0 0.0
    %3093 = vmatpush1.msra.mxu0 0.0
    %3094 = vmatprep.subr.mxu0 0.0
    %3095 = vmatpush1.msra.mxu0 0.0
    %3096 = vmatprep.subr.mxu0 0.0
    %3097 = vmatpush1.msra.mxu0 0.0
    %3098 = vmatprep.subr.mxu0 0.0
    %3099 = vmatpush1.msra.mxu0 0.0
    %3100 = vmatprep.mubr.f32.mxu0 0.0
    %v3101 = vand.u32 %v2584, 4294901760
    %v3102 = vsub.f32 %v2584, %v3101
    %v3103 = vand.u32 %v3102, 4294901760
    %3104 = vmatmul.mubr.f32.gmra.mrb[0].mxu0 %v3103
    %v3105 = vpop.f32.mrb[0].mxu0
    %v3106 = vadd.f32 %v2996, %v3105
    %v3107 = vpop.f32.mrb[0].mxu0
    %3108 = vmatprep.mubr.f32.mxu0 0.0
    %v3109 = vand.u32 %v2585, 4294901760
    %v3110 = vsub.f32 %v2585, %v3109
    %v3111 = vand.u32 %v3110, 4294901760
    %3112 = vmatmul.mubr.f32.gmra.mrb[0].mxu0 %v3111
    %v3113 = vpop.f32.mrb[0].mxu0
    %v3114 = vadd.f32 %v3003, %v3113
    %v3115 = vpop.f32.mrb[0].mxu0
    %3116 = vmatprep.mubr.f32.mxu0 0.0
    %v3117 = vand.u32 %v2586, 4294901760
    %v3118 = vsub.f32 %v2586, %v3117
    %v3119 = vand.u32 %v3118, 4294901760
    %3120 = vmatmul.mubr.f32.gmra.mrb[0].mxu0 %v3119
    %v3121 = vpop.f32.mrb[0].mxu0
    %v3122 = vadd.f32 %v3010, %v3121
    %v3123 = vpop.f32.mrb[0].mxu0
    %3124 = vmatprep.mubr.f32.mxu0 0.0
    %v3125 = vand.u32 %v2587, 4294901760
    %v3126 = vsub.f32 %v2587, %v3125
    %v3127 = vand.u32 %v3126, 4294901760
    %3128 = vmatmul.mubr.f32.gmra.mrb[0].mxu0 %v3127
    %v3129 = vpop.f32.mrb[0].mxu0
    %v3130 = vadd.f32 %v3017, %v3129
    %v3131 = vpop.f32.mrb[0].mxu0
    %3132 = vdwg.mxu0
    %3133 = vmatprep.subr.mxu0 0.0
    %v3134 = vand.u32 %v2589, 4294901760
    %v3135 = vsub.f32 %v2589, %v3134
    %v3136 = vand.u32 %v3135, 4294901760
    %3137 = vmatpush1.msra.mxu0 %v3136
    %3138 = vmatprep.subr.mxu0 0.0
    %v3139 = vand.u32 %v2590, 4294901760
    %v3140 = vsub.f32 %v2590, %v3139
    %v3141 = vand.u32 %v3140, 4294901760
    %3142 = vmatpush1.msra.mxu0 %v3141
    %3143 = vmatprep.subr.mxu0 0.0
    %v3144 = vand.u32 %v2591, 4294901760
    %v3145 = vsub.f32 %v2591, %v3144
    %v3146 = vand.u32 %v3145, 4294901760
    %3147 = vmatpush1.msra.mxu0 %v3146
    %3148 = vmatprep.subr.mxu0 0.0
    %v3149 = vand.u32 %v2592, 4294901760
    %v3150 = vsub.f32 %v2592, %v3149
    %v3151 = vand.u32 %v3150, 4294901760
    %3152 = vmatpush1.msra.mxu0 %v3151
    %3153 = vmatprep.subr.mxu0 0.0
    %v3154 = vand.u32 %v2593, 4294901760
    %v3155 = vsub.f32 %v2593, %v3154
    %v3156 = vand.u32 %v3155, 4294901760
    %3157 = vmatpush1.msra.mxu0 %v3156
    %3158 = vmatprep.subr.mxu0 0.0
    %v3159 = vand.u32 %v2594, 4294901760
    %v3160 = vsub.f32 %v2594, %v3159
    %v3161 = vand.u32 %v3160, 4294901760
    %3162 = vmatpush1.msra.mxu0 %v3161
    %3163 = vmatprep.subr.mxu0 0.0
    %v3164 = vand.u32 %v2595, 4294901760
    %v3165 = vsub.f32 %v2595, %v3164
    %v3166 = vand.u32 %v3165, 4294901760
    %3167 = vmatpush1.msra.mxu0 %v3166
    %3168 = vmatprep.subr.mxu0 0.0
    %v3169 = vand.u32 %v2596, 4294901760
    %v3170 = vsub.f32 %v2596, %v3169
    %v3171 = vand.u32 %v3170, 4294901760
    %3172 = vmatpush1.msra.mxu0 %v3171
    %3173 = vmatprep.subr.mxu0 0.0
    %v3174 = vand.u32 %v2597, 4294901760
    %v3175 = vsub.f32 %v2597, %v3174
    %v3176 = vand.u32 %v3175, 4294901760
    %3177 = vmatpush1.msra.mxu0 %v3176
    %3178 = vmatprep.subr.mxu0 0.0
    %v3179 = vand.u32 %v2598, 4294901760
    %v3180 = vsub.f32 %v2598, %v3179
    %v3181 = vand.u32 %v3180, 4294901760
    %3182 = vmatpush1.msra.mxu0 %v3181
    %3183 = vmatprep.subr.mxu0 0.0
    %v3184 = vand.u32 %v2599, 4294901760
    %v3185 = vsub.f32 %v2599, %v3184
    %v3186 = vand.u32 %v3185, 4294901760
    %3187 = vmatpush1.msra.mxu0 %v3186
    %3188 = vmatprep.subr.mxu0 0.0
    %v3189 = vand.u32 %v2600, 4294901760
    %v3190 = vsub.f32 %v2600, %v3189
    %v3191 = vand.u32 %v3190, 4294901760
    %3192 = vmatpush1.msra.mxu0 %v3191
    %3193 = vmatprep.subr.mxu0 0.0
    %v3194 = vand.u32 %v2601, 4294901760
    %v3195 = vsub.f32 %v2601, %v3194
    %v3196 = vand.u32 %v3195, 4294901760
    %3197 = vmatpush1.msra.mxu0 %v3196
    %3198 = vmatprep.subr.mxu0 0.0
    %v3199 = vand.u32 %v2602, 4294901760
    %v3200 = vsub.f32 %v2602, %v3199
    %v3201 = vand.u32 %v3200, 4294901760
    %3202 = vmatpush1.msra.mxu0 %v3201
    %3203 = vmatprep.subr.mxu0 0.0
    %v3204 = vand.u32 %v2603, 4294901760
    %v3205 = vsub.f32 %v2603, %v3204
    %v3206 = vand.u32 %v3205, 4294901760
    %3207 = vmatpush1.msra.mxu0 %v3206
    %3208 = vmatprep.subr.mxu0 0.0
    %v3209 = vand.u32 %v2604, 4294901760
    %v3210 = vsub.f32 %v2604, %v3209
    %v3211 = vand.u32 %v3210, 4294901760
    %3212 = vmatpush1.msra.mxu0 %v3211
    %3213 = vmatprep.subr.mxu0 0.0
    %3214 = vmatpush1.msra.mxu0 0.0
    %3215 = vmatprep.subr.mxu0 0.0
    %3216 = vmatpush1.msra.mxu0 0.0
    %3217 = vmatprep.subr.mxu0 0.0
    %3218 = vmatpush1.msra.mxu0 0.0
    %3219 = vmatprep.subr.mxu0 0.0
    %3220 = vmatpush1.msra.mxu0 0.0
    %3221 = vmatprep.subr.mxu0 0.0
    %3222 = vmatpush1.msra.mxu0 0.0
    %3223 = vmatprep.subr.mxu0 0.0
    %3224 = vmatpush1.msra.mxu0 0.0
    %3225 = vmatprep.subr.mxu0 0.0
    %3226 = vmatpush1.msra.mxu0 0.0
    %3227 = vmatprep.subr.mxu0 0.0
    %3228 = vmatpush1.msra.mxu0 0.0
    %3229 = vmatprep.subr.mxu0 0.0
    %3230 = vmatpush1.msra.mxu0 0.0
    %3231 = vmatprep.subr.mxu0 0.0
    %3232 = vmatpush1.msra.mxu0 0.0
    %3233 = vmatprep.subr.mxu0 0.0
    %3234 = vmatpush1.msra.mxu0 0.0
    %3235 = vmatprep.subr.mxu0 0.0
    %3236 = vmatpush1.msra.mxu0 0.0
    %3237 = vmatprep.subr.mxu0 0.0
    %3238 = vmatpush1.msra.mxu0 0.0
    %3239 = vmatprep.subr.mxu0 0.0
    %3240 = vmatpush1.msra.mxu0 0.0
    %3241 = vmatprep.subr.mxu0 0.0
    %3242 = vmatpush1.msra.mxu0 0.0
    %3243 = vmatprep.subr.mxu0 0.0
    %3244 = vmatpush1.msra.mxu0 0.0
    %3245 = vmatprep.mubr.f32.mxu0 0.0
    %v3246 = vand.u32 %v2584, 4294901760
    %3247 = vmatmul.mubr.f32.gmra.mrb[0].mxu0 %v3246
    %v3248 = vpop.f32.mrb[0].mxu0
    %v3249 = vadd.f32 %v3106, %v3248
    %v3250 = vpop.f32.mrb[0].mxu0
    %3251 = vmatprep.mubr.f32.mxu0 0.0
    %v3252 = vand.u32 %v2585, 4294901760
    %3253 = vmatmul.mubr.f32.gmra.mrb[0].mxu0 %v3252
    %v3254 = vpop.f32.mrb[0].mxu0
    %v3255 = vadd.f32 %v3114, %v3254
    %v3256 = vpop.f32.mrb[0].mxu0
    %3257 = vmatprep.mubr.f32.mxu0 0.0
    %v3258 = vand.u32 %v2586, 4294901760
    %3259 = vmatmul.mubr.f32.gmra.mrb[0].mxu0 %v3258
    %v3260 = vpop.f32.mrb[0].mxu0
    %v3261 = vadd.f32 %v3122, %v3260
    %v3262 = vpop.f32.mrb[0].mxu0
    %3263 = vmatprep.mubr.f32.mxu0 0.0
    %v3264 = vand.u32 %v2587, 4294901760
    %3265 = vmatmul.mubr.f32.gmra.mrb[0].mxu0 %v3264
    %v3266 = vpop.f32.mrb[0].mxu0
    %v3267 = vadd.f32 %v3130, %v3266
    %v3268 = vpop.f32.mrb[0].mxu0
    %3269 = vdwg.mxu0
    %3270 = vmatprep.subr.mxu0 0.0
    %v3271 = vand.u32 %v2589, 4294901760
    %3272 = vmatpush1.msra.mxu0 %v3271
    %3273 = vmatprep.subr.mxu0 0.0
    %v3274 = vand.u32 %v2590, 4294901760
    %3275 = vmatpush1.msra.mxu0 %v3274
    %3276 = vmatprep.subr.mxu0 0.0
    %v3277 = vand.u32 %v2591, 4294901760
    %3278 = vmatpush1.msra.mxu0 %v3277
    %3279 = vmatprep.subr.mxu0 0.0
    %v3280 = vand.u32 %v2592, 4294901760
    %3281 = vmatpush1.msra.mxu0 %v3280
    %3282 = vmatprep.subr.mxu0 0.0
    %v3283 = vand.u32 %v2593, 4294901760
    %3284 = vmatpush1.msra.mxu0 %v3283
    %3285 = vmatprep.subr.mxu0 0.0
    %v3286 = vand.u32 %v2594, 4294901760
    %3287 = vmatpush1.msra.mxu0 %v3286
    %3288 = vmatprep.subr.mxu0 0.0
    %v3289 = vand.u32 %v2595, 4294901760
    %3290 = vmatpush1.msra.mxu0 %v3289
    %3291 = vmatprep.subr.mxu0 0.0
    %v3292 = vand.u32 %v2596, 4294901760
    %3293 = vmatpush1.msra.mxu0 %v3292
    %3294 = vmatprep.subr.mxu0 0.0
    %v3295 = vand.u32 %v2597, 4294901760
    %3296 = vmatpush1.msra.mxu0 %v3295
    %3297 = vmatprep.subr.mxu0 0.0
    %v3298 = vand.u32 %v2598, 4294901760
    %3299 = vmatpush1.msra.mxu0 %v3298
    %3300 = vmatprep.subr.mxu0 0.0
    %v3301 = vand.u32 %v2599, 4294901760
    %3302 = vmatpush1.msra.mxu0 %v3301
    %3303 = vmatprep.subr.mxu0 0.0
    %v3304 = vand.u32 %v2600, 4294901760
    %3305 = vmatpush1.msra.mxu0 %v3304
    %3306 = vmatprep.subr.mxu0 0.0
    %v3307 = vand.u32 %v2601, 4294901760
    %3308 = vmatpush1.msra.mxu0 %v3307
    %3309 = vmatprep.subr.mxu0 0.0
    %v3310 = vand.u32 %v2602, 4294901760
    %3311 = vmatpush1.msra.mxu0 %v3310
    %3312 = vmatprep.subr.mxu0 0.0
    %v3313 = vand.u32 %v2603, 4294901760
    %3314 = vmatpush1.msra.mxu0 %v3313
    %3315 = vmatprep.subr.mxu0 0.0
    %v3316 = vand.u32 %v2604, 4294901760
    %3317 = vmatpush1.msra.mxu0 %v3316
    %3318 = vmatprep.subr.mxu0 0.0
    %3319 = vmatpush1.msra.mxu0 0.0
    %3320 = vmatprep.subr.mxu0 0.0
    %3321 = vmatpush1.msra.mxu0 0.0
    %3322 = vmatprep.subr.mxu0 0.0
    %3323 = vmatpush1.msra.mxu0 0.0
    %3324 = vmatprep.subr.mxu0 0.0
    %3325 = vmatpush1.msra.mxu0 0.0
    %3326 = vmatprep.subr.mxu0 0.0
    %3327 = vmatpush1.msra.mxu0 0.0
    %3328 = vmatprep.subr.mxu0 0.0
    %3329 = vmatpush1.msra.mxu0 0.0
    %3330 = vmatprep.subr.mxu0 0.0
    %3331 = vmatpush1.msra.mxu0 0.0
    %3332 = vmatprep.subr.mxu0 0.0
    %3333 = vmatpush1.msra.mxu0 0.0
    %3334 = vmatprep.subr.mxu0 0.0
    %3335 = vmatpush1.msra.mxu0 0.0
    %3336 = vmatprep.subr.mxu0 0.0
    %3337 = vmatpush1.msra.mxu0 0.0
    %3338 = vmatprep.subr.mxu0 0.0
    %3339 = vmatpush1.msra.mxu0 0.0
    %3340 = vmatprep.subr.mxu0 0.0
    %3341 = vmatpush1.msra.mxu0 0.0
    %3342 = vmatprep.subr.mxu0 0.0
    %3343 = vmatpush1.msra.mxu0 0.0
    %3344 = vmatprep.subr.mxu0 0.0
    %3345 = vmatpush1.msra.mxu0 0.0
    %3346 = vmatprep.subr.mxu0 0.0
    %3347 = vmatpush1.msra.mxu0 0.0
    %3348 = vmatprep.subr.mxu0 0.0
    %3349 = vmatpush1.msra.mxu0 0.0
    %3350 = vmatprep.mubr.f32.mxu0 0.0
    %v3351 = vand.u32 %v2584, 4294901760
    %3352 = vmatmul.mubr.f32.gmra.mrb[0].mxu0 %v3351
    %v3353 = vpop.f32.mrb[0].mxu0
    %v3354 = vadd.f32 %v3249, %v3353
    %v3355 = vpop.f32.mrb[0].mxu0
    %3356 = vmatprep.mubr.f32.mxu0 0.0
    %v3357 = vand.u32 %v2585, 4294901760
    %3358 = vmatmul.mubr.f32.gmra.mrb[0].mxu0 %v3357
    %v3359 = vpop.f32.mrb[0].mxu0
    %v3360 = vadd.f32 %v3255, %v3359
    %v3361 = vpop.f32.mrb[0].mxu0
    %3362 = vmatprep.mubr.f32.mxu0 0.0
    %v3363 = vand.u32 %v2586, 4294901760
    %3364 = vmatmul.mubr.f32.gmra.mrb[0].mxu0 %v3363
    %v3365 = vpop.f32.mrb[0].mxu0
    %v3366 = vadd.f32 %v3261, %v3365
    %v3367 = vpop.f32.mrb[0].mxu0
    %3368 = vmatprep.mubr.f32.mxu0 0.0
    %v3369 = vand.u32 %v2587, 4294901760
    %3370 = vmatmul.mubr.f32.gmra.mrb[0].mxu0 %v3369
    %v3371 = vpop.f32.mrb[0].mxu0
    %v3372 = vadd.f32 %v3267, %v3371
    %v3373 = vpop.f32.mrb[0].mxu0
    %3374 = vdwg.mxu0
    %v3375 = vadd.f32 %v2548, %v3354
    %v3376 = vadd.f32 %v2549, %v3360
    %v3377 = vadd.f32 %v2550, %v3366
    %v3378 = vadd.f32 %v2551, %v3372
    %v3379 = vld [vmem:[%s2] sm:$0x1]
    %v3381 = vlaneseq
    %v3382 = vshrl.u32 %v3381, 7
    %v3383 = vsub.s32 0, %v3382
    %v3384 = vrot.slane %v3379, %v3383
    %v3386 = vadd.f32 %v3375, %v3384
    %v3387 = vadd.f32 %v3376, %v3384
    %v3388 = vadd.f32 %v3377, %v3384
    %v3389 = vadd.f32 %v3378, %v3384
    %v3390 = vmax.f32 %v3386, 0.0
    %v3391 = vmax.f32 %v3387, 0.0
    %v3392 = vmax.f32 %v3388, 0.0
    %v3393 = vmax.f32 %v3389, 0.0
    %v3394 = vld [vmem:[#allocation7] sm:$0xff]
    %v3395 = vld [vmem:[#allocation7 + $0x8] sm:$0xff]
    %v3396 = vmul.f32 %v3390, %v3394
    %v3397 = vmul.f32 %v3391, %v3395
    %v3398 = vmul.f32 %v3392, %v3394
    %v3399 = vmul.f32 %v3393, %v3395
    %v3400 = vmax.f32 %v3396, %v3397
    %v3401 = vrot.slane %v3400, 4
    %v3402 = vmax.f32 %v3400, %v3401
    %v3403 = vrot.slane %v3402, 2
    %v3404 = vmax.f32 %v3402, %v3403
    %v3405 = vrot.slane %v3404, 1
    %v3406 = vmax.f32 %v3404, %v3405
    %v3407 = vmax.f32 %v3398, %v3399
    %v3408 = vrot.slane %v3407, 4
    %v3409 = vmax.f32 %v3407, %v3408
    %v3410 = vrot.slane %v3409, 2
    %v3411 = vmax.f32 %v3409, %v3410
    %v3412 = vrot.slane %v3411, 1
    %v3413 = vmax.f32 %v3411, %v3412
    %v3414 = vld [vmem:[#allocation8] sm:$0xff]
    %v3415 = vld [vmem:[#allocation8 + $0x8] sm:$0xff]
    %v3416 = vld [vmem:[#allocation8 + $0x10] sm:$0xff]
    %v3417 = vld [vmem:[#allocation8 + $0x18] sm:$0xff]
    %v3418 = vld [vmem:[#allocation8 + $0x20] sm:$0xff]
    %v3419 = vld [vmem:[#allocation8 + $0x28] sm:$0xff]
    %v3420 = vld [vmem:[#allocation8 + $0x30] sm:$0xff]
    %v3421 = vld [vmem:[#allocation8 + $0x38] sm:$0xff]
    %v3422 = vld [vmem:[#allocation8 + $0x40] sm:$0xff]
    %v3423 = vld [vmem:[#allocation8 + $0x48] sm:$0xff]
    %v3424 = vld [vmem:[#allocation8 + $0x50] sm:$0xff]
    %v3425 = vld [vmem:[#allocation8 + $0x58] sm:$0xff]
    %v3426 = vld [vmem:[#allocation8 + $0x60] sm:$0xff]
    %v3427 = vld [vmem:[#allocation8 + $0x68] sm:$0xff]
    %v3428 = vld [vmem:[#allocation8 + $0x70] sm:$0xff]
    %v3429 = vld [vmem:[#allocation8 + $0x78] sm:$0xff]
    %v3430 = vld [vmem:[%s5] sm:$0x1]
    %v3432 = vlaneseq
    %v3433 = vshrl.u32 %v3432, 7
    %v3434 = vsub.s32 0, %v3433
    %v3435 = vrot.slane %v3430, %v3434
    %vm3439 = vcmask 1041409
    %v3440 = vsel %vm3439, %v3413, %v3406
    %3442 = vmatprep.subr.mxu0 0.0
    %v3443 = vand.u32 %v3414, 4294901760
    %3444 = vmatpush1.msra.mxu0 %v3443
    %3445 = vmatprep.subr.mxu0 0.0
    %v3446 = vand.u32 %v3415, 4294901760
    %3447 = vmatpush1.msra.mxu0 %v3446
    %3448 = vmatprep.subr.mxu0 0.0
    %v3449 = vand.u32 %v3416, 4294901760
    %3450 = vmatpush1.msra.mxu0 %v3449
    %3451 = vmatprep.subr.mxu0 0.0
    %v3452 = vand.u32 %v3417, 4294901760
    %3453 = vmatpush1.msra.mxu0 %v3452
    %3454 = vmatprep.subr.mxu0 0.0
    %v3455 = vand.u32 %v3418, 4294901760
    %3456 = vmatpush1.msra.mxu0 %v3455
    %3457 = vmatprep.subr.mxu0 0.0
    %v3458 = vand.u32 %v3419, 4294901760
    %3459 = vmatpush1.msra.mxu0 %v3458
    %3460 = vmatprep.subr.mxu0 0.0
    %v3461 = vand.u32 %v3420, 4294901760
    %3462 = vmatpush1.msra.mxu0 %v3461
    %3463 = vmatprep.subr.mxu0 0.0
    %v3464 = vand.u32 %v3421, 4294901760
    %3465 = vmatpush1.msra.mxu0 %v3464
    %3466 = vmatprep.subr.mxu0 0.0
    %v3467 = vand.u32 %v3422, 4294901760
    %3468 = vmatpush1.msra.mxu0 %v3467
    %3469 = vmatprep.subr.mxu0 0.0
    %v3470 = vand.u32 %v3423, 4294901760
    %3471 = vmatpush1.msra.mxu0 %v3470
    %3472 = vmatprep.subr.mxu0 0.0
    %v3473 = vand.u32 %v3424, 4294901760
    %3474 = vmatpush1.msra.mxu0 %v3473
    %3475 = vmatprep.subr.mxu0 0.0
    %v3476 = vand.u32 %v3425, 4294901760
    %3477 = vmatpush1.msra.mxu0 %v3476
    %3478 = vmatprep.subr.mxu0 0.0
    %v3479 = vand.u32 %v3426, 4294901760
    %3480 = vmatpush1.msra.mxu0 %v3479
    %3481 = vmatprep.subr.mxu0 0.0
    %v3482 = vand.u32 %v3427, 4294901760
    %3483 = vmatpush1.msra.mxu0 %v3482
    %3484 = vmatprep.subr.mxu0 0.0
    %v3485 = vand.u32 %v3428, 4294901760
    %3486 = vmatpush1.msra.mxu0 %v3485
    %3487 = vmatprep.subr.mxu0 0.0
    %v3488 = vand.u32 %v3429, 4294901760
    %3489 = vmatpush1.msra.mxu0 %v3488
    %3490 = vmatprep.subr.mxu0 0.0
    %3491 = vmatpush1.msra.mxu0 0.0
    %3492 = vmatprep.subr.mxu0 0.0
    %3493 = vmatpush1.msra.mxu0 0.0
    %3494 = vmatprep.subr.mxu0 0.0
    %3495 = vmatpush1.msra.mxu0 0.0
    %3496 = vmatprep.subr.mxu0 0.0
    %3497 = vmatpush1.msra.mxu0 0.0
    %3498 = vmatprep.subr.mxu0 0.0
    %3499 = vmatpush1.msra.mxu0 0.0
    %3500 = vmatprep.subr.mxu0 0.0
    %3501 = vmatpush1.msra.mxu0 0.0
    %3502 = vmatprep.subr.mxu0 0.0
    %3503 = vmatpush1.msra.mxu0 0.0
    %3504 = vmatprep.subr.mxu0 0.0
    %3505 = vmatpush1.msra.mxu0 0.0
    %3506 = vmatprep.subr.mxu0 0.0
    %3507 = vmatpush1.msra.mxu0 0.0
    %3508 = vmatprep.subr.mxu0 0.0
    %3509 = vmatpush1.msra.mxu0 0.0
    %3510 = vmatprep.subr.mxu0 0.0
    %3511 = vmatpush1.msra.mxu0 0.0
    %3512 = vmatprep.subr.mxu0 0.0
    %3513 = vmatpush1.msra.mxu0 0.0
    %3514 = vmatprep.subr.mxu0 0.0
    %3515 = vmatpush1.msra.mxu0 0.0
    %3516 = vmatprep.subr.mxu0 0.0
    %3517 = vmatpush1.msra.mxu0 0.0
    %3518 = vmatprep.subr.mxu0 0.0
    %3519 = vmatpush1.msra.mxu0 0.0
    %3520 = vmatprep.subr.mxu0 0.0
    %3521 = vmatpush1.msra.mxu0 0.0
    %3522 = vmatprep.mubr.f32.mxu0 0.0
    %v3523 = vand.u32 %v3440, 4294901760
    %v3524 = vsub.f32 %v3440, %v3523
    %v3525 = vand.u32 %v3524, 4294901760
    %v3526 = vsub.f32 %v3524, %v3525
    %v3527 = vand.u32 %v3526, 4294901760
    %3528 = vmatmul.mubr.f32.gmra.mrb[0].mxu0 %v3527
    %v3529 = vpop.f32.mrb[0].mxu0
    %v3530 = vadd.f32 %v3435, %v3529
    %v3531 = vpop.f32.mrb[0].mxu0
    %3532 = vdwg.mxu0
    %3533 = vmatprep.subr.mxu0 0.0
    %v3534 = vand.u32 %v3414, 4294901760
    %v3535 = vsub.f32 %v3414, %v3534
    %v3536 = vand.u32 %v3535, 4294901760
    %v3537 = vsub.f32 %v3535, %v3536
    %v3538 = vand.u32 %v3537, 4294901760
    %3539 = vmatpush1.msra.mxu0 %v3538
    %3540 = vmatprep.subr.mxu0 0.0
    %v3541 = vand.u32 %v3415, 4294901760
    %v3542 = vsub.f32 %v3415, %v3541
    %v3543 = vand.u32 %v3542, 4294901760
    %v3544 = vsub.f32 %v3542, %v3543
    %v3545 = vand.u32 %v3544, 4294901760
    %3546 = vmatpush1.msra.mxu0 %v3545
    %3547 = vmatprep.subr.mxu0 0.0
    %v3548 = vand.u32 %v3416, 4294901760
    %v3549 = vsub.f32 %v3416, %v3548
    %v3550 = vand.u32 %v3549, 4294901760
    %v3551 = vsub.f32 %v3549, %v3550
    %v3552 = vand.u32 %v3551, 4294901760
    %3553 = vmatpush1.msra.mxu0 %v3552
    %3554 = vmatprep.subr.mxu0 0.0
    %v3555 = vand.u32 %v3417, 4294901760
    %v3556 = vsub.f32 %v3417, %v3555
    %v3557 = vand.u32 %v3556, 4294901760
    %v3558 = vsub.f32 %v3556, %v3557
    %v3559 = vand.u32 %v3558, 4294901760
    %3560 = vmatpush1.msra.mxu0 %v3559
    %3561 = vmatprep.subr.mxu0 0.0
    %v3562 = vand.u32 %v3418, 4294901760
    %v3563 = vsub.f32 %v3418, %v3562
    %v3564 = vand.u32 %v3563, 4294901760
    %v3565 = vsub.f32 %v3563, %v3564
    %v3566 = vand.u32 %v3565, 4294901760
    %3567 = vmatpush1.msra.mxu0 %v3566
    %3568 = vmatprep.subr.mxu0 0.0
    %v3569 = vand.u32 %v3419, 4294901760
    %v3570 = vsub.f32 %v3419, %v3569
    %v3571 = vand.u32 %v3570, 4294901760
    %v3572 = vsub.f32 %v3570, %v3571
    %v3573 = vand.u32 %v3572, 4294901760
    %3574 = vmatpush1.msra.mxu0 %v3573
    %3575 = vmatprep.subr.mxu0 0.0
    %v3576 = vand.u32 %v3420, 4294901760
    %v3577 = vsub.f32 %v3420, %v3576
    %v3578 = vand.u32 %v3577, 4294901760
    %v3579 = vsub.f32 %v3577, %v3578
    %v3580 = vand.u32 %v3579, 4294901760
    %3581 = vmatpush1.msra.mxu0 %v3580
    %3582 = vmatprep.subr.mxu0 0.0
    %v3583 = vand.u32 %v3421, 4294901760
    %v3584 = vsub.f32 %v3421, %v3583
    %v3585 = vand.u32 %v3584, 4294901760
    %v3586 = vsub.f32 %v3584, %v3585
    %v3587 = vand.u32 %v3586, 4294901760
    %3588 = vmatpush1.msra.mxu0 %v3587
    %3589 = vmatprep.subr.mxu0 0.0
    %v3590 = vand.u32 %v3422, 4294901760
    %v3591 = vsub.f32 %v3422, %v3590
    %v3592 = vand.u32 %v3591, 4294901760
    %v3593 = vsub.f32 %v3591, %v3592
    %v3594 = vand.u32 %v3593, 4294901760
    %3595 = vmatpush1.msra.mxu0 %v3594
    %3596 = vmatprep.subr.mxu0 0.0
    %v3597 = vand.u32 %v3423, 4294901760
    %v3598 = vsub.f32 %v3423, %v3597
    %v3599 = vand.u32 %v3598, 4294901760
    %v3600 = vsub.f32 %v3598, %v3599
    %v3601 = vand.u32 %v3600, 4294901760
    %3602 = vmatpush1.msra.mxu0 %v3601
    %3603 = vmatprep.subr.mxu0 0.0
    %v3604 = vand.u32 %v3424, 4294901760
    %v3605 = vsub.f32 %v3424, %v3604
    %v3606 = vand.u32 %v3605, 4294901760
    %v3607 = vsub.f32 %v3605, %v3606
    %v3608 = vand.u32 %v3607, 4294901760
    %3609 = vmatpush1.msra.mxu0 %v3608
    %3610 = vmatprep.subr.mxu0 0.0
    %v3611 = vand.u32 %v3425, 4294901760
    %v3612 = vsub.f32 %v3425, %v3611
    %v3613 = vand.u32 %v3612, 4294901760
    %v3614 = vsub.f32 %v3612, %v3613
    %v3615 = vand.u32 %v3614, 4294901760
    %3616 = vmatpush1.msra.mxu0 %v3615
    %3617 = vmatprep.subr.mxu0 0.0
    %v3618 = vand.u32 %v3426, 4294901760
    %v3619 = vsub.f32 %v3426, %v3618
    %v3620 = vand.u32 %v3619, 4294901760
    %v3621 = vsub.f32 %v3619, %v3620
    %v3622 = vand.u32 %v3621, 4294901760
    %3623 = vmatpush1.msra.mxu0 %v3622
    %3624 = vmatprep.subr.mxu0 0.0
    %v3625 = vand.u32 %v3427, 4294901760
    %v3626 = vsub.f32 %v3427, %v3625
    %v3627 = vand.u32 %v3626, 4294901760
    %v3628 = vsub.f32 %v3626, %v3627
    %v3629 = vand.u32 %v3628, 4294901760
    %3630 = vmatpush1.msra.mxu0 %v3629
    %3631 = vmatprep.subr.mxu0 0.0
    %v3632 = vand.u32 %v3428, 4294901760
    %v3633 = vsub.f32 %v3428, %v3632
    %v3634 = vand.u32 %v3633, 4294901760
    %v3635 = vsub.f32 %v3633, %v3634
    %v3636 = vand.u32 %v3635, 4294901760
    %3637 = vmatpush1.msra.mxu0 %v3636
    %3638 = vmatprep.subr.mxu0 0.0
    %v3639 = vand.u32 %v3429, 4294901760
    %v3640 = vsub.f32 %v3429, %v3639
    %v3641 = vand.u32 %v3640, 4294901760
    %v3642 = vsub.f32 %v3640, %v3641
    %v3643 = vand.u32 %v3642, 4294901760
    %3644 = vmatpush1.msra.mxu0 %v3643
    %3645 = vmatprep.subr.mxu0 0.0
    %3646 = vmatpush1.msra.mxu0 0.0
    %3647 = vmatprep.subr.mxu0 0.0
    %3648 = vmatpush1.msra.mxu0 0.0
    %3649 = vmatprep.subr.mxu0 0.0
    %3650 = vmatpush1.msra.mxu0 0.0
    %3651 = vmatprep.subr.mxu0 0.0
    %3652 = vmatpush1.msra.mxu0 0.0
    %3653 = vmatprep.subr.mxu0 0.0
    %3654 = vmatpush1.msra.mxu0 0.0
    %3655 = vmatprep.subr.mxu0 0.0
    %3656 = vmatpush1.msra.mxu0 0.0
    %3657 = vmatprep.subr.mxu0 0.0
    %3658 = vmatpush1.msra.mxu0 0.0
    %3659 = vmatprep.subr.mxu0 0.0
    %3660 = vmatpush1.msra.mxu0 0.0
    %3661 = vmatprep.subr.mxu0 0.0
    %3662 = vmatpush1.msra.mxu0 0.0
    %3663 = vmatprep.subr.mxu0 0.0
    %3664 = vmatpush1.msra.mxu0 0.0
    %3665 = vmatprep.subr.mxu0 0.0
    %3666 = vmatpush1.msra.mxu0 0.0
    %3667 = vmatprep.subr.mxu0 0.0
    %3668 = vmatpush1.msra.mxu0 0.0
    %3669 = vmatprep.subr.mxu0 0.0
    %3670 = vmatpush1.msra.mxu0 0.0
    %3671 = vmatprep.subr.mxu0 0.0
    %3672 = vmatpush1.msra.mxu0 0.0
    %3673 = vmatprep.subr.mxu0 0.0
    %3674 = vmatpush1.msra.mxu0 0.0
    %3675 = vmatprep.subr.mxu0 0.0
    %3676 = vmatpush1.msra.mxu0 0.0
    %3677 = vmatprep.mubr.f32.mxu0 0.0
    %v3678 = vand.u32 %v3440, 4294901760
    %3679 = vmatmul.mubr.f32.gmra.mrb[0].mxu0 %v3678
    %v3680 = vpop.f32.mrb[0].mxu0
    %v3681 = vadd.f32 %v3530, %v3680
    %v3682 = vpop.f32.mrb[0].mxu0
    %3683 = vdwg.mxu0
    %3684 = vmatprep.subr.mxu0 0.0
    %v3685 = vand.u32 %v3414, 4294901760
    %v3686 = vsub.f32 %v3414, %v3685
    %3687 = vmatpush1.msra.mxu0 %v3686
    %3688 = vmatprep.subr.mxu0 0.0
    %v3689 = vand.u32 %v3415, 4294901760
    %v3690 = vsub.f32 %v3415, %v3689
    %3691 = vmatpush1.msra.mxu0 %v3690
    %3692 = vmatprep.subr.mxu0 0.0
    %v3693 = vand.u32 %v3416, 4294901760
    %v3694 = vsub.f32 %v3416, %v3693
    %3695 = vmatpush1.msra.mxu0 %v3694
    %3696 = vmatprep.subr.mxu0 0.0
    %v3697 = vand.u32 %v3417, 4294901760
    %v3698 = vsub.f32 %v3417, %v3697
    %3699 = vmatpush1.msra.mxu0 %v3698
    %3700 = vmatprep.subr.mxu0 0.0
    %v3701 = vand.u32 %v3418, 4294901760
    %v3702 = vsub.f32 %v3418, %v3701
    %3703 = vmatpush1.msra.mxu0 %v3702
    %3704 = vmatprep.subr.mxu0 0.0
    %v3705 = vand.u32 %v3419, 4294901760
    %v3706 = vsub.f32 %v3419, %v3705
    %3707 = vmatpush1.msra.mxu0 %v3706
    %3708 = vmatprep.subr.mxu0 0.0
    %v3709 = vand.u32 %v3420, 4294901760
    %v3710 = vsub.f32 %v3420, %v3709
    %3711 = vmatpush1.msra.mxu0 %v3710
    %3712 = vmatprep.subr.mxu0 0.0
    %v3713 = vand.u32 %v3421, 4294901760
    %v3714 = vsub.f32 %v3421, %v3713
    %3715 = vmatpush1.msra.mxu0 %v3714
    %3716 = vmatprep.subr.mxu0 0.0
    %v3717 = vand.u32 %v3422, 4294901760
    %v3718 = vsub.f32 %v3422, %v3717
    %3719 = vmatpush1.msra.mxu0 %v3718
    %3720 = vmatprep.subr.mxu0 0.0
    %v3721 = vand.u32 %v3423, 4294901760
    %v3722 = vsub.f32 %v3423, %v3721
    %3723 = vmatpush1.msra.mxu0 %v3722
    %3724 = vmatprep.subr.mxu0 0.0
    %v3725 = vand.u32 %v3424, 4294901760
    %v3726 = vsub.f32 %v3424, %v3725
    %3727 = vmatpush1.msra.mxu0 %v3726
    %3728 = vmatprep.subr.mxu0 0.0
    %v3729 = vand.u32 %v3425, 4294901760
    %v3730 = vsub.f32 %v3425, %v3729
    %3731 = vmatpush1.msra.mxu0 %v3730
    %3732 = vmatprep.subr.mxu0 0.0
    %v3733 = vand.u32 %v3426, 4294901760
    %v3734 = vsub.f32 %v3426, %v3733
    %3735 = vmatpush1.msra.mxu0 %v3734
    %3736 = vmatprep.subr.mxu0 0.0
    %v3737 = vand.u32 %v3427, 4294901760
    %v3738 = vsub.f32 %v3427, %v3737
    %3739 = vmatpush1.msra.mxu0 %v3738
    %3740 = vmatprep.subr.mxu0 0.0
    %v3741 = vand.u32 %v3428, 4294901760
    %v3742 = vsub.f32 %v3428, %v3741
    %3743 = vmatpush1.msra.mxu0 %v3742
    %3744 = vmatprep.subr.mxu0 0.0
    %v3745 = vand.u32 %v3429, 4294901760
    %v3746 = vsub.f32 %v3429, %v3745
    %3747 = vmatpush1.msra.mxu0 %v3746
    %3748 = vmatprep.subr.mxu0 0.0
    %3749 = vmatpush1.msra.mxu0 0.0
    %3750 = vmatprep.subr.mxu0 0.0
    %3751 = vmatpush1.msra.mxu0 0.0
    %3752 = vmatprep.subr.mxu0 0.0
    %3753 = vmatpush1.msra.mxu0 0.0
    %3754 = vmatprep.subr.mxu0 0.0
    %3755 = vmatpush1.msra.mxu0 0.0
    %3756 = vmatprep.subr.mxu0 0.0
    %3757 = vmatpush1.msra.mxu0 0.0
    %3758 = vmatprep.subr.mxu0 0.0
    %3759 = vmatpush1.msra.mxu0 0.0
    %3760 = vmatprep.subr.mxu0 0.0
    %3761 = vmatpush1.msra.mxu0 0.0
    %3762 = vmatprep.subr.mxu0 0.0
    %3763 = vmatpush1.msra.mxu0 0.0
    %3764 = vmatprep.subr.mxu0 0.0
    %3765 = vmatpush1.msra.mxu0 0.0
    %3766 = vmatprep.subr.mxu0 0.0
    %3767 = vmatpush1.msra.mxu0 0.0
    %3768 = vmatprep.subr.mxu0 0.0
    %3769 = vmatpush1.msra.mxu0 0.0
    %3770 = vmatprep.subr.mxu0 0.0
    %3771 = vmatpush1.msra.mxu0 0.0
    %3772 = vmatprep.subr.mxu0 0.0
    %3773 = vmatpush1.msra.mxu0 0.0
    %3774 = vmatprep.subr.mxu0 0.0
    %3775 = vmatpush1.msra.mxu0 0.0
    %3776 = vmatprep.subr.mxu0 0.0
    %3777 = vmatpush1.msra.mxu0 0.0
    %3778 = vmatprep.subr.mxu0 0.0
    %3779 = vmatpush1.msra.mxu0 0.0
    %3780 = vmatprep.mubr.f32.mxu0 0.0
    %v3781 = vand.u32 %v3440, 4294901760
    %v3782 = vsub.f32 %v3440, %v3781
    %3783 = vmatmul.mubr.f32.gmra.mrb[0].mxu0 %v3782
    %v3784 = vpop.f32.mrb[0].mxu0
    %v3785 = vadd.f32 %v3681, %v3784
    %v3786 = vpop.f32.mrb[0].mxu0
    %3787 = vdwg.mxu0
    %3788 = vmatprep.subr.mxu0 0.0
    %v3789 = vand.u32 %v3414, 4294901760
    %3790 = vmatpush1.msra.mxu0 %v3789
    %3791 = vmatprep.subr.mxu0 0.0
    %v3792 = vand.u32 %v3415, 4294901760
    %3793 = vmatpush1.msra.mxu0 %v3792
    %3794 = vmatprep.subr.mxu0 0.0
    %v3795 = vand.u32 %v3416, 4294901760
    %3796 = vmatpush1.msra.mxu0 %v3795
    %3797 = vmatprep.subr.mxu0 0.0
    %v3798 = vand.u32 %v3417, 4294901760
    %3799 = vmatpush1.msra.mxu0 %v3798
    %3800 = vmatprep.subr.mxu0 0.0
    %v3801 = vand.u32 %v3418, 4294901760
    %3802 = vmatpush1.msra.mxu0 %v3801
    %3803 = vmatprep.subr.mxu0 0.0
    %v3804 = vand.u32 %v3419, 4294901760
    %3805 = vmatpush1.msra.mxu0 %v3804
    %3806 = vmatprep.subr.mxu0 0.0
    %v3807 = vand.u32 %v3420, 4294901760
    %3808 = vmatpush1.msra.mxu0 %v3807
    %3809 = vmatprep.subr.mxu0 0.0
    %v3810 = vand.u32 %v3421, 4294901760
    %3811 = vmatpush1.msra.mxu0 %v3810
    %3812 = vmatprep.subr.mxu0 0.0
    %v3813 = vand.u32 %v3422, 4294901760
    %3814 = vmatpush1.msra.mxu0 %v3813
    %3815 = vmatprep.subr.mxu0 0.0
    %v3816 = vand.u32 %v3423, 4294901760
    %3817 = vmatpush1.msra.mxu0 %v3816
    %3818 = vmatprep.subr.mxu0 0.0
    %v3819 = vand.u32 %v3424, 4294901760
    %3820 = vmatpush1.msra.mxu0 %v3819
    %3821 = vmatprep.subr.mxu0 0.0
    %v3822 = vand.u32 %v3425, 4294901760
    %3823 = vmatpush1.msra.mxu0 %v3822
    %3824 = vmatprep.subr.mxu0 0.0
    %v3825 = vand.u32 %v3426, 4294901760
    %3826 = vmatpush1.msra.mxu0 %v3825
    %3827 = vmatprep.subr.mxu0 0.0
    %v3828 = vand.u32 %v3427, 4294901760
    %3829 = vmatpush1.msra.mxu0 %v3828
    %3830 = vmatprep.subr.mxu0 0.0
    %v3831 = vand.u32 %v3428, 4294901760
    %3832 = vmatpush1.msra.mxu0 %v3831
    %3833 = vmatprep.subr.mxu0 0.0
    %v3834 = vand.u32 %v3429, 4294901760
    %3835 = vmatpush1.msra.mxu0 %v3834
    %3836 = vmatprep.subr.mxu0 0.0
    %3837 = vmatpush1.msra.mxu0 0.0
    %3838 = vmatprep.subr.mxu0 0.0
    %3839 = vmatpush1.msra.mxu0 0.0
    %3840 = vmatprep.subr.mxu0 0.0
    %3841 = vmatpush1.msra.mxu0 0.0
    %3842 = vmatprep.subr.mxu0 0.0
    %3843 = vmatpush1.msra.mxu0 0.0
    %3844 = vmatprep.subr.mxu0 0.0
    %3845 = vmatpush1.msra.mxu0 0.0
    %3846 = vmatprep.subr.mxu0 0.0
    %3847 = vmatpush1.msra.mxu0 0.0
    %3848 = vmatprep.subr.mxu0 0.0
    %3849 = vmatpush1.msra.mxu0 0.0
    %3850 = vmatprep.subr.mxu0 0.0
    %3851 = vmatpush1.msra.mxu0 0.0
    %3852 = vmatprep.subr.mxu0 0.0
    %3853 = vmatpush1.msra.mxu0 0.0
    %3854 = vmatprep.subr.mxu0 0.0
    %3855 = vmatpush1.msra.mxu0 0.0
    %3856 = vmatprep.subr.mxu0 0.0
    %3857 = vmatpush1.msra.mxu0 0.0
    %3858 = vmatprep.subr.mxu0 0.0
    %3859 = vmatpush1.msra.mxu0 0.0
    %3860 = vmatprep.subr.mxu0 0.0
    %3861 = vmatpush1.msra.mxu0 0.0
    %3862 = vmatprep.subr.mxu0 0.0
    %3863 = vmatpush1.msra.mxu0 0.0
    %3864 = vmatprep.subr.mxu0 0.0
    %3865 = vmatpush1.msra.mxu0 0.0
    %3866 = vmatprep.subr.mxu0 0.0
    %3867 = vmatpush1.msra.mxu0 0.0
    %3868 = vmatprep.mubr.f32.mxu0 0.0
    %v3869 = vand.u32 %v3440, 4294901760
    %v3870 = vsub.f32 %v3440, %v3869
    %v3871 = vand.u32 %v3870, 4294901760
    %3872 = vmatmul.mubr.f32.gmra.mrb[0].mxu0 %v3871
    %v3873 = vpop.f32.mrb[0].mxu0
    %v3874 = vadd.f32 %v3785, %v3873
    %v3875 = vpop.f32.mrb[0].mxu0
    %3876 = vdwg.mxu0
    %3877 = vmatprep.subr.mxu0 0.0
    %v3878 = vand.u32 %v3414, 4294901760
    %v3879 = vsub.f32 %v3414, %v3878
    %v3880 = vand.u32 %v3879, 4294901760
    %3881 = vmatpush1.msra.mxu0 %v3880
    %3882 = vmatprep.subr.mxu0 0.0
    %v3883 = vand.u32 %v3415, 4294901760
    %v3884 = vsub.f32 %v3415, %v3883
    %v3885 = vand.u32 %v3884, 4294901760
    %3886 = vmatpush1.msra.mxu0 %v3885
    %3887 = vmatprep.subr.mxu0 0.0
    %v3888 = vand.u32 %v3416, 4294901760
    %v3889 = vsub.f32 %v3416, %v3888
    %v3890 = vand.u32 %v3889, 4294901760
    %3891 = vmatpush1.msra.mxu0 %v3890
    %3892 = vmatprep.subr.mxu0 0.0
    %v3893 = vand.u32 %v3417, 4294901760
    %v3894 = vsub.f32 %v3417, %v3893
    %v3895 = vand.u32 %v3894, 4294901760
    %3896 = vmatpush1.msra.mxu0 %v3895
    %3897 = vmatprep.subr.mxu0 0.0
    %v3898 = vand.u32 %v3418, 4294901760
    %v3899 = vsub.f32 %v3418, %v3898
    %v3900 = vand.u32 %v3899, 4294901760
    %3901 = vmatpush1.msra.mxu0 %v3900
    %3902 = vmatprep.subr.mxu0 0.0
    %v3903 = vand.u32 %v3419, 4294901760
    %v3904 = vsub.f32 %v3419, %v3903
    %v3905 = vand.u32 %v3904, 4294901760
    %3906 = vmatpush1.msra.mxu0 %v3905
    %3907 = vmatprep.subr.mxu0 0.0
    %v3908 = vand.u32 %v3420, 4294901760
    %v3909 = vsub.f32 %v3420, %v3908
    %v3910 = vand.u32 %v3909, 4294901760
    %3911 = vmatpush1.msra.mxu0 %v3910
    %3912 = vmatprep.subr.mxu0 0.0
    %v3913 = vand.u32 %v3421, 4294901760
    %v3914 = vsub.f32 %v3421, %v3913
    %v3915 = vand.u32 %v3914, 4294901760
    %3916 = vmatpush1.msra.mxu0 %v3915
    %3917 = vmatprep.subr.mxu0 0.0
    %v3918 = vand.u32 %v3422, 4294901760
    %v3919 = vsub.f32 %v3422, %v3918
    %v3920 = vand.u32 %v3919, 4294901760
    %3921 = vmatpush1.msra.mxu0 %v3920
    %3922 = vmatprep.subr.mxu0 0.0
    %v3923 = vand.u32 %v3423, 4294901760
    %v3924 = vsub.f32 %v3423, %v3923
    %v3925 = vand.u32 %v3924, 4294901760
    %3926 = vmatpush1.msra.mxu0 %v3925
    %3927 = vmatprep.subr.mxu0 0.0
    %v3928 = vand.u32 %v3424, 4294901760
    %v3929 = vsub.f32 %v3424, %v3928
    %v3930 = vand.u32 %v3929, 4294901760
    %3931 = vmatpush1.msra.mxu0 %v3930
    %3932 = vmatprep.subr.mxu0 0.0
    %v3933 = vand.u32 %v3425, 4294901760
    %v3934 = vsub.f32 %v3425, %v3933
    %v3935 = vand.u32 %v3934, 4294901760
    %3936 = vmatpush1.msra.mxu0 %v3935
    %3937 = vmatprep.subr.mxu0 0.0
    %v3938 = vand.u32 %v3426, 4294901760
    %v3939 = vsub.f32 %v3426, %v3938
    %v3940 = vand.u32 %v3939, 4294901760
    %3941 = vmatpush1.msra.mxu0 %v3940
    %3942 = vmatprep.subr.mxu0 0.0
    %v3943 = vand.u32 %v3427, 4294901760
    %v3944 = vsub.f32 %v3427, %v3943
    %v3945 = vand.u32 %v3944, 4294901760
    %3946 = vmatpush1.msra.mxu0 %v3945
    %3947 = vmatprep.subr.mxu0 0.0
    %v3948 = vand.u32 %v3428, 4294901760
    %v3949 = vsub.f32 %v3428, %v3948
    %v3950 = vand.u32 %v3949, 4294901760
    %3951 = vmatpush1.msra.mxu0 %v3950
    %3952 = vmatprep.subr.mxu0 0.0
    %v3953 = vand.u32 %v3429, 4294901760
    %v3954 = vsub.f32 %v3429, %v3953
    %v3955 = vand.u32 %v3954, 4294901760
    %3956 = vmatpush1.msra.mxu0 %v3955
    %3957 = vmatprep.subr.mxu0 0.0
    %3958 = vmatpush1.msra.mxu0 0.0
    %3959 = vmatprep.subr.mxu0 0.0
    %3960 = vmatpush1.msra.mxu0 0.0
    %3961 = vmatprep.subr.mxu0 0.0
    %3962 = vmatpush1.msra.mxu0 0.0
    %3963 = vmatprep.subr.mxu0 0.0
    %3964 = vmatpush1.msra.mxu0 0.0
    %3965 = vmatprep.subr.mxu0 0.0
    %3966 = vmatpush1.msra.mxu0 0.0
    %3967 = vmatprep.subr.mxu0 0.0
    %3968 = vmatpush1.msra.mxu0 0.0
    %3969 = vmatprep.subr.mxu0 0.0
    %3970 = vmatpush1.msra.mxu0 0.0
    %3971 = vmatprep.subr.mxu0 0.0
    %3972 = vmatpush1.msra.mxu0 0.0
    %3973 = vmatprep.subr.mxu0 0.0
    %3974 = vmatpush1.msra.mxu0 0.0
    %3975 = vmatprep.subr.mxu0 0.0
    %3976 = vmatpush1.msra.mxu0 0.0
    %3977 = vmatprep.subr.mxu0 0.0
    %3978 = vmatpush1.msra.mxu0 0.0
    %3979 = vmatprep.subr.mxu0 0.0
    %3980 = vmatpush1.msra.mxu0 0.0
    %3981 = vmatprep.subr.mxu0 0.0
    %3982 = vmatpush1.msra.mxu0 0.0
    %3983 = vmatprep.subr.mxu0 0.0
    %3984 = vmatpush1.msra.mxu0 0.0
    %3985 = vmatprep.subr.mxu0 0.0
    %3986 = vmatpush1.msra.mxu0 0.0
    %3987 = vmatprep.subr.mxu0 0.0
    %3988 = vmatpush1.msra.mxu0 0.0
    %3989 = vmatprep.mubr.f32.mxu0 0.0
    %v3990 = vand.u32 %v3440, 4294901760
    %3991 = vmatmul.mubr.f32.gmra.mrb[0].mxu0 %v3990
    %v3992 = vpop.f32.mrb[0].mxu0
    %v3993 = vadd.f32 %v3874, %v3992
    %v3994 = vpop.f32.mrb[0].mxu0
    %3995 = vdwg.mxu0
    %3996 = vmatprep.subr.mxu0 0.0
    %v3997 = vand.u32 %v3414, 4294901760
    %3998 = vmatpush1.msra.mxu0 %v3997
    %3999 = vmatprep.subr.mxu0 0.0
    %v4000 = vand.u32 %v3415, 4294901760
    %4001 = vmatpush1.msra.mxu0 %v4000
    %4002 = vmatprep.subr.mxu0 0.0
    %v4003 = vand.u32 %v3416, 4294901760
    %4004 = vmatpush1.msra.mxu0 %v4003
    %4005 = vmatprep.subr.mxu0 0.0
    %v4006 = vand.u32 %v3417, 4294901760
    %4007 = vmatpush1.msra.mxu0 %v4006
    %4008 = vmatprep.subr.mxu0 0.0
    %v4009 = vand.u32 %v3418, 4294901760
    %4010 = vmatpush1.msra.mxu0 %v4009
    %4011 = vmatprep.subr.mxu0 0.0
    %v4012 = vand.u32 %v3419, 4294901760
    %4013 = vmatpush1.msra.mxu0 %v4012
    %4014 = vmatprep.subr.mxu0 0.0
    %v4015 = vand.u32 %v3420, 4294901760
    %4016 = vmatpush1.msra.mxu0 %v4015
    %4017 = vmatprep.subr.mxu0 0.0
    %v4018 = vand.u32 %v3421, 4294901760
    %4019 = vmatpush1.msra.mxu0 %v4018
    %4020 = vmatprep.subr.mxu0 0.0
    %v4021 = vand.u32 %v3422, 4294901760
    %4022 = vmatpush1.msra.mxu0 %v4021
    %4023 = vmatprep.subr.mxu0 0.0
    %v4024 = vand.u32 %v3423, 4294901760
    %4025 = vmatpush1.msra.mxu0 %v4024
    %4026 = vmatprep.subr.mxu0 0.0
    %v4027 = vand.u32 %v3424, 4294901760
    %4028 = vmatpush1.msra.mxu0 %v4027
    %4029 = vmatprep.subr.mxu0 0.0
    %v4030 = vand.u32 %v3425, 4294901760
    %4031 = vmatpush1.msra.mxu0 %v4030
    %4032 = vmatprep.subr.mxu0 0.0
    %v4033 = vand.u32 %v3426, 4294901760
    %4034 = vmatpush1.msra.mxu0 %v4033
    %4035 = vmatprep.subr.mxu0 0.0
    %v4036 = vand.u32 %v3427, 4294901760
    %4037 = vmatpush1.msra.mxu0 %v4036
    %4038 = vmatprep.subr.mxu0 0.0
    %v4039 = vand.u32 %v3428, 4294901760
    %4040 = vmatpush1.msra.mxu0 %v4039
    %4041 = vmatprep.subr.mxu0 0.0
    %v4042 = vand.u32 %v3429, 4294901760
    %4043 = vmatpush1.msra.mxu0 %v4042
    %4044 = vmatprep.subr.mxu0 0.0
    %4045 = vmatpush1.msra.mxu0 0.0
    %4046 = vmatprep.subr.mxu0 0.0
    %4047 = vmatpush1.msra.mxu0 0.0
    %4048 = vmatprep.subr.mxu0 0.0
    %4049 = vmatpush1.msra.mxu0 0.0
    %4050 = vmatprep.subr.mxu0 0.0
    %4051 = vmatpush1.msra.mxu0 0.0
    %4052 = vmatprep.subr.mxu0 0.0
    %4053 = vmatpush1.msra.mxu0 0.0
    %4054 = vmatprep.subr.mxu0 0.0
    %4055 = vmatpush1.msra.mxu0 0.0
    %4056 = vmatprep.subr.mxu0 0.0
    %4057 = vmatpush1.msra.mxu0 0.0
    %4058 = vmatprep.subr.mxu0 0.0
    %4059 = vmatpush1.msra.mxu0 0.0
    %4060 = vmatprep.subr.mxu0 0.0
    %4061 = vmatpush1.msra.mxu0 0.0
    %4062 = vmatprep.subr.mxu0 0.0
    %4063 = vmatpush1.msra.mxu0 0.0
    %4064 = vmatprep.subr.mxu0 0.0
    %4065 = vmatpush1.msra.mxu0 0.0
    %4066 = vmatprep.subr.mxu0 0.0
    %4067 = vmatpush1.msra.mxu0 0.0
    %4068 = vmatprep.subr.mxu0 0.0
    %4069 = vmatpush1.msra.mxu0 0.0
    %4070 = vmatprep.subr.mxu0 0.0
    %4071 = vmatpush1.msra.mxu0 0.0
    %4072 = vmatprep.subr.mxu0 0.0
    %4073 = vmatpush1.msra.mxu0 0.0
    %4074 = vmatprep.subr.mxu0 0.0
    %4075 = vmatpush1.msra.mxu0 0.0
    %4076 = vmatprep.mubr.f32.mxu0 0.0
    %v4077 = vand.u32 %v3440, 4294901760
    %4078 = vmatmul.mubr.f32.gmra.mrb[0].mxu0 %v4077
    %v4079 = vpop.f32.mrb[0].mxu0
    %v4080 = vadd.f32 %v3993, %v4079
    %v4081 = vpop.f32.mrb[0].mxu0
    %4082 = vdwg.mxu0
    %4083 = vst [vmem:[#allocation10] sm:$0x3] %v4080
    // Predicated region
    $region42: #{tpu_custom_call.1} parent=1 // pred_check
      _
    $region43: #{tpu_custom_call.1} parent=1 // pred_check_branch
      %4085 = sbr.rel (0) target = $region45
    $region44: #{tpu_custom_call.1} parent=1 // pred_region
      %s4087 = ssub.s32 32, 32
      %4088 = vsyncadd [#allocation4], %s4087
      %s4090 = sshll.u32 [#allocation10], 4
      %s4091 = int_to_ptr.vmem [resolvable:$true] %s4090
      %4093 = dma.vmem_to_hbm [thread:$0]  %s4091, 32, %s6, [#allocation4]
    $region45: #{tpu_custom_call.1} parent=1 // pred_fallthru
      _
    // Predicated region
    $region46: #{tpu_custom_call.1} parent=1 // pred_check
      _
    $region47: #{tpu_custom_call.1} parent=1 // pred_check_branch
      %4095 = sbr.rel (0) target = $region49
    $region48: #{tpu_custom_call.1} parent=1 // pred_region
      %4096 = dma.done [#allocation4], 32
    $region49: #{tpu_custom_call.1} parent=1 // pred_fallthru
      _
    %4097 = vsyncpa [#allocation3], 1
    %4098 = vsyncpa [#allocation6], 1
    %4099 = vsyncpa [#allocation9], 1
    %4100 = vsyncpa [#allocation4], 1

</llo_original>
